<compile_context>
chip_gen: v7x
topology: tpu7x:2x2x1
jax: 0.10.0
libtpu: 0.0.40
codegen_flags: <defaults>
</compile_context>

<pallas_src>
import jax
import jax.numpy as jnp
from jax.experimental import pallas as pl
from jax.experimental.pallas import tpu as pltpu


def _round_up(x, m):
    return (x + m - 1) // m * m


# ----------------------------------------------------------------------------
# Pallas kernel
# ----------------------------------------------------------------------------
def _mlp_phi_kernel(w_ref, cnt_ref, *rest):
    """rest = ([W, b, gamma, beta] * n_layers, out_ref)."""
    out_ref = rest[-1]
    param_refs = rest[:-1]
    n_layers = len(param_refs) // 4

    T, n_max_p, M = w_ref.shape
    # bf16 HBM storage -> f32 compute.  Leading-dim merge is layout-preserving
    # because n_max_p % 8 == 0, so this reshape is free.
    x = w_ref[...].astype(jnp.float32).reshape(T * n_max_p, M)

    for l in range(n_layers):
        W = param_refs[4 * l + 0][...]          # (d_in, d_out) f32
        b = param_refs[4 * l + 1][...]          # (1, d_out)
        g = param_refs[4 * l + 2][...]          # (1, d_out)
        be = param_refs[4 * l + 3][...]         # (1, d_out)
        x = jnp.dot(x, W, preferred_element_type=jnp.float32) + b
        # LayerNorm over last dim, single-pass stats, f32, eps = 1e-5.
        mean = jnp.mean(x, axis=-1, keepdims=True)
        ex2 = jnp.mean(x * x, axis=-1, keepdims=True)
        var = jnp.maximum(ex2 - mean * mean, 0.0)
        x = (x - mean) * jax.lax.rsqrt(var + 1e-5) * g + be
        x = jnp.maximum(x, 0.0)                 # ReLU; eval-mode dropout = id

    d_out = x.shape[-1]
    x3 = x.reshape(T, n_max_p, d_out)           # layout-preserving split back
    counts = cnt_ref[...]                       # (T, 1) int32 valid-node count
    col = jax.lax.broadcasted_iota(jnp.int32, (T, n_max_p), 1)
    mask = (col < counts).astype(jnp.float32)   # (T, n_max_p)
    out_ref[...] = jnp.sum(x3 * mask[:, :, None], axis=1)


# ----------------------------------------------------------------------------
# Wrapper
# ----------------------------------------------------------------------------
def mlp_phi_forward(W_list, edge_index, params, tile_rows=256,
                    input_dtype=jnp.bfloat16):
    """params: list of (W, b, gamma, beta) per layer, all 2-D f32 arrays."""
    del edge_index  # unused by the reference forward
    n_max = max(int(W.shape[0]) for W in W_list)
    n_max_p = _round_up(max(n_max, 8), 8)       # multiple of 8 -> free reshapes
    M = int(W_list[0].shape[2])

    W_pad_list, cnt_list = [], []
    for W in W_list:
        n = int(W.shape[0])
        W_pad_list.append(jnp.pad(W, ((0, 0), (0, n_max_p - n), (0, 0))))
        cnt_list.append(jnp.full((n,), n, dtype=jnp.int32))
    W_cat = jnp.concatenate(W_pad_list, axis=0).astype(input_dtype)  # [N_sum, n_max_p, M]
    counts = jnp.concatenate(cnt_list, axis=0)[:, None]              # [N_sum, 1]

    n_sum = W_cat.shape[0]
    # Big row tiles amortize per-grid-step overhead; clamp for tiny inputs.
    # (For very large n_max, re-budget the tile against VMEM / vmem_limit_bytes;
    #  on v7x also keep the grid >= 2-4 steps so both TensorCores get work.)
    tile_rows = _round_up(max(8, min(int(tile_rows), _round_up(n_sum, 8))), 8)
    n_rows = _round_up(n_sum, tile_rows)
    if n_rows != n_sum:
        W_cat = jnp.pad(W_cat, ((0, n_rows - n_sum), (0, 0), (0, 0)))
        counts = jnp.pad(counts, ((0, n_rows - n_sum), (0, 0)))  # count 0 => masked out

    flat_params = [jnp.asarray(p, jnp.float32) for layer in params for p in layer]
    d_pe = int(params[-1][0].shape[1])

    grid = (n_rows // tile_rows,)
    in_specs = [
        pl.BlockSpec((tile_rows, n_max_p, M), lambda i: (i, 0, 0)),
        pl.BlockSpec((tile_rows, 1), lambda i: (i, 0)),
    ]
    for p in flat_params:
        in_specs.append(pl.BlockSpec(p.shape, lambda i: (0, 0)))

    out = pl.pallas_call(
        _mlp_phi_kernel,
        out_shape=jax.ShapeDtypeStruct((n_rows, d_pe), jnp.float32),
        grid_spec=pltpu.PrefetchScalarGridSpec(
            num_scalar_prefetch=0,
            grid=grid,
            in_specs=in_specs,
            out_specs=pl.BlockSpec((tile_rows, d_pe), lambda i: (i, 0)),
        ),
        compiler_params=pltpu.CompilerParams(
            dimension_semantics=("parallel",)),
    )(W_cat, counts, *flat_params)

    return out[:n_sum]


# ----------------------------------------------------------------------------
# Pure-JAX reference (same bf16 input quantization, f32 math) for checking
# ----------------------------------------------------------------------------
def mlp_phi_reference(W_list, params, input_dtype=jnp.bfloat16):
    n_max = max(int(W.shape[0]) for W in W_list)
    outs = []
    for W in W_list:
        n = int(W.shape[0])
        Wp = jnp.pad(W, ((0, 0), (0, n_max - n), (0, 0)))
        x = Wp.astype(input_dtype).astype(jnp.float32)
        for (Wl, b, g, be) in params:
            x = jnp.dot(x, Wl) + b
            mean = jnp.mean(x, axis=-1, keepdims=True)
            var = jnp.mean((x - mean) ** 2, axis=-1, keepdims=True)
            x = (x - mean) * jax.lax.rsqrt(var + 1e-5) * g + be
            x = jnp.maximum(x, 0.0)
        mask = (jnp.arange(n_max) < n).astype(jnp.float32)
        outs.append(jnp.sum(x * mask[None, :, None], axis=1))
    return jnp.concatenate(outs, axis=0)


# ----------------------------------------------------------------------------
# Deterministic parameter init (mirrors MLP(n_layers, in, hidden, out,
# norm_type='layer', activation='relu'); LayerNorm params at PyTorch defaults)
# ----------------------------------------------------------------------------
def init_mlp_params(key, n_layers, in_dims, hidden_dims, out_dims):
    params = []
    d_in = in_dims
    for l in range(n_layers):
        d_out = out_dims if l == n_layers - 1 else hidden_dims
        key, kw, kb = jax.random.split(key, 3)
        bound = 1.0 / jnp.sqrt(jnp.float32(d_in))
        W = jax.random.uniform(kw, (d_in, d_out), jnp.float32, -bound, bound)
        b = jax.random.uniform(kb, (1, d_out), jnp.float32, -bound, bound)
        gamma = jnp.ones((1, d_out), jnp.float32)
        beta = jnp.zeros((1, d_out), jnp.float32)
        params.append((W, b, gamma, beta))
        d_in = d_out
    return params


if __name__ == "__main__":
    key = jax.random.PRNGKey(0)
    k1, k2, kp = jax.random.split(key, 3)

    # Two graphs: N_1 = 6, N_2 = 10 nodes, M = 8 spectral filters.
    M, hidden, d_pe, n_layers = 8, 32, 16, 3
    W_list = [
        jax.random.normal(k1, (6, 6, M), jnp.float32),
        jax.random.normal(k2, (10, 10, M), jnp.float32),
    ]
    edge_index = jnp.zeros((2, 4), dtype=jnp.int32)  # unused by forward

    params = init_mlp_params(kp, n_layers, M, hidden, d_pe)

    out = mlp_phi_forward(W_list, edge_index, params)
    out = jax.block_until_ready(out)
    assert out.shape == (16, d_pe), out.shape
    assert bool(jnp.all(jnp.isfinite(out)))

    ref = mlp_phi_reference(W_list, params)
    err = float(jnp.max(jnp.abs(out - ref)))
    scale = max(1.0, float(jnp.max(jnp.abs(ref))))
    assert err <= 1e-2 * scale, (err, scale)

    print("KERNEL_OK")
</pallas_src>

<mosaic_0001>
module attributes {stable_mosaic.version = 11 : i64} {
  func.func @_mlp_phi_kernel(%arg0: i32, %arg1: memref<16x16x8xbf16, #tpu.memory_space<vmem>>, %arg2: memref<16x1xi32, #tpu.memory_space<vmem>>, %arg3: memref<8x32xf32, #tpu.memory_space<vmem>>, %arg4: memref<1x32xf32, #tpu.memory_space<vmem>>, %arg5: memref<1x32xf32, #tpu.memory_space<vmem>>, %arg6: memref<1x32xf32, #tpu.memory_space<vmem>>, %arg7: memref<32x32xf32, #tpu.memory_space<vmem>>, %arg8: memref<1x32xf32, #tpu.memory_space<vmem>>, %arg9: memref<1x32xf32, #tpu.memory_space<vmem>>, %arg10: memref<1x32xf32, #tpu.memory_space<vmem>>, %arg11: memref<32x16xf32, #tpu.memory_space<vmem>>, %arg12: memref<1x16xf32, #tpu.memory_space<vmem>>, %arg13: memref<1x16xf32, #tpu.memory_space<vmem>>, %arg14: memref<1x16xf32, #tpu.memory_space<vmem>>, %arg15: memref<16x16xf32, #tpu.memory_space<vmem>>) attributes {dimension_semantics = [#tpu.dimension_semantics<parallel>], iteration_bounds = array<i64: 1>, scalar_prefetch = 0 : i64, scratch_operands = 0 : i64, tpu.core_type = #tpu.core_type<tc>, window_params = [{transform_indices = @transform_0, window_bounds = array<i64: 16, 16, 8>}, {transform_indices = @transform_1, window_bounds = array<i64: 16, 1>}, {pipeline_mode = #tpu.pipeline_mode<synchronous>, transform_indices = @transform_2, window_bounds = array<i64: 8, 32>}, {pipeline_mode = #tpu.pipeline_mode<synchronous>, transform_indices = @transform_3, window_bounds = array<i64: 1, 32>}, {pipeline_mode = #tpu.pipeline_mode<synchronous>, transform_indices = @transform_4, window_bounds = array<i64: 1, 32>}, {pipeline_mode = #tpu.pipeline_mode<synchronous>, transform_indices = @transform_5, window_bounds = array<i64: 1, 32>}, {pipeline_mode = #tpu.pipeline_mode<synchronous>, transform_indices = @transform_6, window_bounds = array<i64: 32, 32>}, {pipeline_mode = #tpu.pipeline_mode<synchronous>, transform_indices = @transform_7, window_bounds = array<i64: 1, 32>}, {pipeline_mode = #tpu.pipeline_mode<synchronous>, transform_indices = @transform_8, window_bounds = array<i64: 1, 32>}, {pipeline_mode = #tpu.pipeline_mode<synchronous>, transform_indices = @transform_9, window_bounds = array<i64: 1, 32>}, {pipeline_mode = #tpu.pipeline_mode<synchronous>, transform_indices = @transform_10, window_bounds = array<i64: 32, 16>}, {pipeline_mode = #tpu.pipeline_mode<synchronous>, transform_indices = @transform_11, window_bounds = array<i64: 1, 16>}, {pipeline_mode = #tpu.pipeline_mode<synchronous>, transform_indices = @transform_12, window_bounds = array<i64: 1, 16>}, {pipeline_mode = #tpu.pipeline_mode<synchronous>, transform_indices = @transform_13, window_bounds = array<i64: 1, 16>}, {transform_indices = @transform_14, window_bounds = array<i64: 16, 16>}]} {
    %c0 = arith.constant 0 : index
    %c0_0 = arith.constant 0 : index
    %c0_1 = arith.constant 0 : index
    %0 = vector.load %arg1[%c0, %c0_0, %c0_1] : memref<16x16x8xbf16, #tpu.memory_space<vmem>>, vector<16x16x8xbf16>
    %1 = arith.extf %0 : vector<16x16x8xbf16> to vector<16x16x8xf32>
    %2 = vector.shape_cast %1 : vector<16x16x8xf32> to vector<256x8xf32>
    %c0_2 = arith.constant 0 : index
    %c0_3 = arith.constant 0 : index
    %3 = vector.load %arg3[%c0_2, %c0_3] : memref<8x32xf32, #tpu.memory_space<vmem>>, vector<8x32xf32>
    %c0_4 = arith.constant 0 : index
    %c0_5 = arith.constant 0 : index
    %4 = vector.load %arg4[%c0_4, %c0_5] : memref<1x32xf32, #tpu.memory_space<vmem>>, vector<1x32xf32>
    %c0_6 = arith.constant 0 : index
    %c0_7 = arith.constant 0 : index
    %5 = vector.load %arg5[%c0_6, %c0_7] : memref<1x32xf32, #tpu.memory_space<vmem>>, vector<1x32xf32>
    %c0_8 = arith.constant 0 : index
    %c0_9 = arith.constant 0 : index
    %6 = vector.load %arg6[%c0_8, %c0_9] : memref<1x32xf32, #tpu.memory_space<vmem>>, vector<1x32xf32>
    %cst = arith.constant dense<0.000000e+00> : vector<256x32xf32>
    %7 = tpu.matmul %2, %3, %cst {dimension_numbers = #tpu.dot_dimension_numbers<[1], [0], [0], [1], [0, 0, 1, 1], [], []>} : vector<256x8xf32>, vector<8x32xf32>, vector<256x32xf32> -> vector<256x32xf32>
    %8 = vector.broadcast %4 : vector<1x32xf32> to vector<256x32xf32>
    %9 = arith.addf %7, %8 : vector<256x32xf32>
    %cst_10 = arith.constant dense<0.000000e+00> : vector<256xf32>
    %10 = vector.multi_reduction <add>, %9, %cst_10 [1] : vector<256x32xf32> to vector<256xf32>
    %11 = vector.shape_cast %10 : vector<256xf32> to vector<256x1xf32>
    %cst_11 = arith.constant 3.200000e+01 : f32
    %12 = vector.broadcast %cst_11 : f32 to vector<256x1xf32>
    %13 = arith.divf %11, %12 : vector<256x1xf32>
    %14 = arith.mulf %9, %9 : vector<256x32xf32>
    %cst_12 = arith.constant dense<0.000000e+00> : vector<256xf32>
    %15 = vector.multi_reduction <add>, %14, %cst_12 [1] : vector<256x32xf32> to vector<256xf32>
    %16 = vector.shape_cast %15 : vector<256xf32> to vector<256x1xf32>
    %cst_13 = arith.constant 3.200000e+01 : f32
    %17 = vector.broadcast %cst_13 : f32 to vector<256x1xf32>
    %18 = arith.divf %16, %17 : vector<256x1xf32>
    %19 = arith.mulf %13, %13 : vector<256x1xf32>
    %20 = arith.subf %18, %19 : vector<256x1xf32>
    %cst_14 = arith.constant 0.000000e+00 : f32
    %21 = vector.broadcast %cst_14 : f32 to vector<256x1xf32>
    %22 = arith.maximumf %20, %21 : vector<256x1xf32>
    %23 = vector.broadcast %13 : vector<256x1xf32> to vector<256x32xf32>
    %24 = arith.subf %9, %23 : vector<256x32xf32>
    %cst_15 = arith.constant 9.99999974E-6 : f32
    %25 = vector.broadcast %cst_15 : f32 to vector<256x1xf32>
    %26 = arith.addf %22, %25 : vector<256x1xf32>
    %27 = math.rsqrt %26 : vector<256x1xf32>
    %28 = vector.broadcast %27 : vector<256x1xf32> to vector<256x32xf32>
    %29 = arith.mulf %24, %28 : vector<256x32xf32>
    %30 = vector.broadcast %5 : vector<1x32xf32> to vector<256x32xf32>
    %31 = arith.mulf %29, %30 : vector<256x32xf32>
    %32 = vector.broadcast %6 : vector<1x32xf32> to vector<256x32xf32>
    %33 = arith.addf %31, %32 : vector<256x32xf32>
    %cst_16 = arith.constant 0.000000e+00 : f32
    %34 = vector.broadcast %cst_16 : f32 to vector<256x32xf32>
    %35 = arith.maximumf %33, %34 : vector<256x32xf32>
    %c0_17 = arith.constant 0 : index
    %c0_18 = arith.constant 0 : index
    %36 = vector.load %arg7[%c0_17, %c0_18] : memref<32x32xf32, #tpu.memory_space<vmem>>, vector<32x32xf32>
    %c0_19 = arith.constant 0 : index
    %c0_20 = arith.constant 0 : index
    %37 = vector.load %arg8[%c0_19, %c0_20] : memref<1x32xf32, #tpu.memory_space<vmem>>, vector<1x32xf32>
    %c0_21 = arith.constant 0 : index
    %c0_22 = arith.constant 0 : index
    %38 = vector.load %arg9[%c0_21, %c0_22] : memref<1x32xf32, #tpu.memory_space<vmem>>, vector<1x32xf32>
    %c0_23 = arith.constant 0 : index
    %c0_24 = arith.constant 0 : index
    %39 = vector.load %arg10[%c0_23, %c0_24] : memref<1x32xf32, #tpu.memory_space<vmem>>, vector<1x32xf32>
    %cst_25 = arith.constant dense<0.000000e+00> : vector<256x32xf32>
    %40 = tpu.matmul %35, %36, %cst_25 {dimension_numbers = #tpu.dot_dimension_numbers<[1], [0], [0], [1], [0, 0, 1, 1], [], []>} : vector<256x32xf32>, vector<32x32xf32>, vector<256x32xf32> -> vector<256x32xf32>
    %41 = vector.broadcast %37 : vector<1x32xf32> to vector<256x32xf32>
    %42 = arith.addf %40, %41 : vector<256x32xf32>
    %cst_26 = arith.constant dense<0.000000e+00> : vector<256xf32>
    %43 = vector.multi_reduction <add>, %42, %cst_26 [1] : vector<256x32xf32> to vector<256xf32>
    %44 = vector.shape_cast %43 : vector<256xf32> to vector<256x1xf32>
    %cst_27 = arith.constant 3.200000e+01 : f32
    %45 = vector.broadcast %cst_27 : f32 to vector<256x1xf32>
    %46 = arith.divf %44, %45 : vector<256x1xf32>
    %47 = arith.mulf %42, %42 : vector<256x32xf32>
    %cst_28 = arith.constant dense<0.000000e+00> : vector<256xf32>
    %48 = vector.multi_reduction <add>, %47, %cst_28 [1] : vector<256x32xf32> to vector<256xf32>
    %49 = vector.shape_cast %48 : vector<256xf32> to vector<256x1xf32>
    %cst_29 = arith.constant 3.200000e+01 : f32
    %50 = vector.broadcast %cst_29 : f32 to vector<256x1xf32>
    %51 = arith.divf %49, %50 : vector<256x1xf32>
    %52 = arith.mulf %46, %46 : vector<256x1xf32>
    %53 = arith.subf %51, %52 : vector<256x1xf32>
    %cst_30 = arith.constant 0.000000e+00 : f32
    %54 = vector.broadcast %cst_30 : f32 to vector<256x1xf32>
    %55 = arith.maximumf %53, %54 : vector<256x1xf32>
    %56 = vector.broadcast %46 : vector<256x1xf32> to vector<256x32xf32>
    %57 = arith.subf %42, %56 : vector<256x32xf32>
    %cst_31 = arith.constant 9.99999974E-6 : f32
    %58 = vector.broadcast %cst_31 : f32 to vector<256x1xf32>
    %59 = arith.addf %55, %58 : vector<256x1xf32>
    %60 = math.rsqrt %59 : vector<256x1xf32>
    %61 = vector.broadcast %60 : vector<256x1xf32> to vector<256x32xf32>
    %62 = arith.mulf %57, %61 : vector<256x32xf32>
    %63 = vector.broadcast %38 : vector<1x32xf32> to vector<256x32xf32>
    %64 = arith.mulf %62, %63 : vector<256x32xf32>
    %65 = vector.broadcast %39 : vector<1x32xf32> to vector<256x32xf32>
    %66 = arith.addf %64, %65 : vector<256x32xf32>
    %cst_32 = arith.constant 0.000000e+00 : f32
    %67 = vector.broadcast %cst_32 : f32 to vector<256x32xf32>
    %68 = arith.maximumf %66, %67 : vector<256x32xf32>
    %c0_33 = arith.constant 0 : index
    %c0_34 = arith.constant 0 : index
    %69 = vector.load %arg11[%c0_33, %c0_34] : memref<32x16xf32, #tpu.memory_space<vmem>>, vector<32x16xf32>
    %c0_35 = arith.constant 0 : index
    %c0_36 = arith.constant 0 : index
    %70 = vector.load %arg12[%c0_35, %c0_36] : memref<1x16xf32, #tpu.memory_space<vmem>>, vector<1x16xf32>
    %c0_37 = arith.constant 0 : index
    %c0_38 = arith.constant 0 : index
    %71 = vector.load %arg13[%c0_37, %c0_38] : memref<1x16xf32, #tpu.memory_space<vmem>>, vector<1x16xf32>
    %c0_39 = arith.constant 0 : index
    %c0_40 = arith.constant 0 : index
    %72 = vector.load %arg14[%c0_39, %c0_40] : memref<1x16xf32, #tpu.memory_space<vmem>>, vector<1x16xf32>
    %cst_41 = arith.constant dense<0.000000e+00> : vector<256x16xf32>
    %73 = tpu.matmul %68, %69, %cst_41 {dimension_numbers = #tpu.dot_dimension_numbers<[1], [0], [0], [1], [0, 0, 1, 1], [], []>} : vector<256x32xf32>, vector<32x16xf32>, vector<256x16xf32> -> vector<256x16xf32>
    %74 = vector.broadcast %70 : vector<1x16xf32> to vector<256x16xf32>
    %75 = arith.addf %73, %74 : vector<256x16xf32>
    %cst_42 = arith.constant dense<0.000000e+00> : vector<256xf32>
    %76 = vector.multi_reduction <add>, %75, %cst_42 [1] : vector<256x16xf32> to vector<256xf32>
    %77 = vector.shape_cast %76 : vector<256xf32> to vector<256x1xf32>
    %cst_43 = arith.constant 1.600000e+01 : f32
    %78 = vector.broadcast %cst_43 : f32 to vector<256x1xf32>
    %79 = arith.divf %77, %78 : vector<256x1xf32>
    %80 = arith.mulf %75, %75 : vector<256x16xf32>
    %cst_44 = arith.constant dense<0.000000e+00> : vector<256xf32>
    %81 = vector.multi_reduction <add>, %80, %cst_44 [1] : vector<256x16xf32> to vector<256xf32>
    %82 = vector.shape_cast %81 : vector<256xf32> to vector<256x1xf32>
    %cst_45 = arith.constant 1.600000e+01 : f32
    %83 = vector.broadcast %cst_45 : f32 to vector<256x1xf32>
    %84 = arith.divf %82, %83 : vector<256x1xf32>
    %85 = arith.mulf %79, %79 : vector<256x1xf32>
    %86 = arith.subf %84, %85 : vector<256x1xf32>
    %cst_46 = arith.constant 0.000000e+00 : f32
    %87 = vector.broadcast %cst_46 : f32 to vector<256x1xf32>
    %88 = arith.maximumf %86, %87 : vector<256x1xf32>
    %89 = vector.broadcast %79 : vector<256x1xf32> to vector<256x16xf32>
    %90 = arith.subf %75, %89 : vector<256x16xf32>
    %cst_47 = arith.constant 9.99999974E-6 : f32
    %91 = vector.broadcast %cst_47 : f32 to vector<256x1xf32>
    %92 = arith.addf %88, %91 : vector<256x1xf32>
    %93 = math.rsqrt %92 : vector<256x1xf32>
    %94 = vector.broadcast %93 : vector<256x1xf32> to vector<256x16xf32>
    %95 = arith.mulf %90, %94 : vector<256x16xf32>
    %96 = vector.broadcast %71 : vector<1x16xf32> to vector<256x16xf32>
    %97 = arith.mulf %95, %96 : vector<256x16xf32>
    %98 = vector.broadcast %72 : vector<1x16xf32> to vector<256x16xf32>
    %99 = arith.addf %97, %98 : vector<256x16xf32>
    %cst_48 = arith.constant 0.000000e+00 : f32
    %100 = vector.broadcast %cst_48 : f32 to vector<256x16xf32>
    %101 = arith.maximumf %99, %100 : vector<256x16xf32>
    %102 = vector.shape_cast %101 : vector<256x16xf32> to vector<16x16x16xf32>
    %c0_49 = arith.constant 0 : index
    %c0_50 = arith.constant 0 : index
    %103 = vector.load %arg2[%c0_49, %c0_50] : memref<16x1xi32, #tpu.memory_space<vmem>>, vector<16x1xi32>
    %104 = tpu.iota {dimensions = array<i32: 1>} : vector<16x16xi32>
    %105 = vector.broadcast %103 : vector<16x1xi32> to vector<16x16xi32>
    %106 = arith.cmpi slt, %104, %105 : vector<16x16xi32>
    %107 = arith.extui %106 : vector<16x16xi1> to vector<16x16xi32>
    %108 = arith.sitofp %107 : vector<16x16xi32> to vector<16x16xf32>
    %109 = vector.shape_cast %108 : vector<16x16xf32> to vector<16x16x1xf32>
    %110 = vector.broadcast %109 : vector<16x16x1xf32> to vector<16x16x16xf32>
    %111 = arith.mulf %102, %110 : vector<16x16x16xf32>
    %cst_51 = arith.constant dense<0.000000e+00> : vector<16x16xf32>
    %112 = vector.multi_reduction <add>, %111, %cst_51 [1] : vector<16x16x16xf32> to vector<16x16xf32>
    %c0_52 = arith.constant 0 : index
    %c0_53 = arith.constant 0 : index
    %113 = vector.load %arg15[%c0_52, %c0_53] : memref<16x16xf32, #tpu.memory_space<vmem>>, vector<16x16xf32>
    tpu.vector_store %arg15[%c0_52, %c0_53], %112 {strides = array<i32>} : memref<16x16xf32, #tpu.memory_space<vmem>>, vector<16x16xf32>,
    return
  }
  func.func @transform_0(%arg0: i32) -> (i32, i32, i32) {
    %c0_i32 = arith.constant 0 : i32
    %c0_i32_0 = arith.constant 0 : i32
    %c0_i32_1 = arith.constant 0 : i32
    return %arg0, %c0_i32, %c0_i32_0 : i32, i32, i32
  }
  func.func @transform_1(%arg0: i32) -> (i32, i32) {
    %c0_i32 = arith.constant 0 : i32
    %c0_i32_0 = arith.constant 0 : i32
    return %arg0, %c0_i32 : i32, i32
  }
  func.func @transform_2(%arg0: i32) -> (i32, i32) {
    %c0_i32 = arith.constant 0 : i32
    %c0_i32_0 = arith.constant 0 : i32
    %c0_i32_1 = arith.constant 0 : i32
    return %c0_i32, %c0_i32_0 : i32, i32
  }
  func.func @transform_3(%arg0: i32) -> (i32, i32) {
    %c0_i32 = arith.constant 0 : i32
    %c0_i32_0 = arith.constant 0 : i32
    %c0_i32_1 = arith.constant 0 : i32
    return %c0_i32, %c0_i32_0 : i32, i32
  }
  func.func @transform_4(%arg0: i32) -> (i32, i32) {
    %c0_i32 = arith.constant 0 : i32
    %c0_i32_0 = arith.constant 0 : i32
    %c0_i32_1 = arith.constant 0 : i32
    return %c0_i32, %c0_i32_0 : i32, i32
  }
  func.func @transform_5(%arg0: i32) -> (i32, i32) {
    %c0_i32 = arith.constant 0 : i32
    %c0_i32_0 = arith.constant 0 : i32
    %c0_i32_1 = arith.constant 0 : i32
    return %c0_i32, %c0_i32_0 : i32, i32
  }
  func.func @transform_6(%arg0: i32) -> (i32, i32) {
    %c0_i32 = arith.constant 0 : i32
    %c0_i32_0 = arith.constant 0 : i32
    %c0_i32_1 = arith.constant 0 : i32
    return %c0_i32, %c0_i32_0 : i32, i32
  }
  func.func @transform_7(%arg0: i32) -> (i32, i32) {
    %c0_i32 = arith.constant 0 : i32
    %c0_i32_0 = arith.constant 0 : i32
    %c0_i32_1 = arith.constant 0 : i32
    return %c0_i32, %c0_i32_0 : i32, i32
  }
  func.func @transform_8(%arg0: i32) -> (i32, i32) {
    %c0_i32 = arith.constant 0 : i32
    %c0_i32_0 = arith.constant 0 : i32
    %c0_i32_1 = arith.constant 0 : i32
    return %c0_i32, %c0_i32_0 : i32, i32
  }
  func.func @transform_9(%arg0: i32) -> (i32, i32) {
    %c0_i32 = arith.constant 0 : i32
    %c0_i32_0 = arith.constant 0 : i32
    %c0_i32_1 = arith.constant 0 : i32
    return %c0_i32, %c0_i32_0 : i32, i32
  }
  func.func @transform_10(%arg0: i32) -> (i32, i32) {
    %c0_i32 = arith.constant 0 : i32
    %c0_i32_0 = arith.constant 0 : i32
    %c0_i32_1 = arith.constant 0 : i32
    return %c0_i32, %c0_i32_0 : i32, i32
  }
  func.func @transform_11(%arg0: i32) -> (i32, i32) {
    %c0_i32 = arith.constant 0 : i32
    %c0_i32_0 = arith.constant 0 : i32
    %c0_i32_1 = arith.constant 0 : i32
    return %c0_i32, %c0_i32_0 : i32, i32
  }
  func.func @transform_12(%arg0: i32) -> (i32, i32) {
    %c0_i32 = arith.constant 0 : i32
    %c0_i32_0 = arith.constant 0 : i32
    %c0_i32_1 = arith.constant 0 : i32
    return %c0_i32, %c0_i32_0 : i32, i32
  }
  func.func @transform_13(%arg0: i32) -> (i32, i32) {
    %c0_i32 = arith.constant 0 : i32
    %c0_i32_0 = arith.constant 0 : i32
    %c0_i32_1 = arith.constant 0 : i32
    return %c0_i32, %c0_i32_0 : i32, i32
  }
  func.func @transform_14(%arg0: i32) -> (i32, i32) {
    %c0_i32 = arith.constant 0 : i32
    %c0_i32_0 = arith.constant 0 : i32
    return %arg0, %c0_i32 : i32, i32
  }
}

</mosaic_0001>

<llo_original>
// kernel: tpu_custom_call.1
$region0: #{tpu_custom_call.1}
  #allocation0 [shape = 'u32[]', space=smem, size = 0x4, offset = 0x4, fixed_abs, tag = 'smem constant byte address 0x4 - core index']
  #allocation1 [shape = 'u32[144,128]{1,0:T(1,128)}', space=vmem, size = 0x12000, scoped, tag = 'internal scratch']
  %s0 = inlined_call_operand.vmem [shape: bf16[16,16,8], index: 0, kind: input, shape index: {}]
  %s1 = inlined_call_operand.vmem [shape: s32[16,1], index: 1, kind: input, shape index: {}]
  %s2 = inlined_call_operand.vmem [shape: f32[8,32], index: 2, kind: input, shape index: {}]
  %s3 = inlined_call_operand.vmem [shape: f32[1,32], index: 3, kind: input, shape index: {}]
  %s4 = inlined_call_operand.vmem [shape: f32[1,32], index: 4, kind: input, shape index: {}]
  %s5 = inlined_call_operand.vmem [shape: f32[1,32], index: 5, kind: input, shape index: {}]
  %s6 = inlined_call_operand.vmem [shape: f32[32,32], index: 6, kind: input, shape index: {}]
  %s7 = inlined_call_operand.vmem [shape: f32[1,32], index: 7, kind: input, shape index: {}]
  %s8 = inlined_call_operand.vmem [shape: f32[1,32], index: 8, kind: input, shape index: {}]
  %s9 = inlined_call_operand.vmem [shape: f32[1,32], index: 9, kind: input, shape index: {}]
  %s10 = inlined_call_operand.vmem [shape: f32[32,16], index: 10, kind: input, shape index: {}]
  %s11 = inlined_call_operand.vmem [shape: f32[1,16], index: 11, kind: input, shape index: {}]
  %s12 = inlined_call_operand.vmem [shape: f32[1,16], index: 12, kind: input, shape index: {}]
  %s13 = inlined_call_operand.vmem [shape: f32[1,16], index: 13, kind: input, shape index: {}]
  %s14 = inlined_call_operand.hbm [shape: f32[16,16], index: 14, kind: output, shape index: {}]
  %s15 = sld [smem:[#allocation0]]
  $region66: #{tpu_custom_call.1} parent=0
    _
  %s17 = ssub.s32 1, %s15
  %s18 = scalar_select 0, %s17, %s15
  $region1: #{tpu_custom_call.1} parent=0
    #allocation2 [shape = 'u8[8192]{0}', space=vmem, size = 0x2000, scoped, tag = 'output window, operand 0, single buffered']
    #allocation3 [shape = 's32[1]{0}', space=sflag, size = 0x4, scoped, tag = 'scoped memory for tpu_custom_call.1']
    %19 = vsyncpa [#allocation3], 0
    // Predicated region
    $region2: #{tpu_custom_call.1} parent=1 // pred_check
      _
    $region3: #{tpu_custom_call.1} parent=1 // pred_check_branch
      %21 = sbr.rel (0) target = $region5
    $region4: #{tpu_custom_call.1} parent=1 // pred_region
      _
    $region5: #{tpu_custom_call.1} parent=1 // pred_fallthru
      _
    // Predicated region
    $region6: #{tpu_custom_call.1} parent=1 // pred_check
      _
    $region7: #{tpu_custom_call.1} parent=1 // pred_check_branch
      %23 = sbr.rel (0) target = $region9
    $region8: #{tpu_custom_call.1} parent=1 // pred_region
      _
    $region9: #{tpu_custom_call.1} parent=1 // pred_fallthru
      _
    // Predicated region
    $region10: #{tpu_custom_call.1} parent=1 // pred_check
      _
    $region11: #{tpu_custom_call.1} parent=1 // pred_check_branch
      %25 = sbr.rel (0) target = $region13
    $region12: #{tpu_custom_call.1} parent=1 // pred_region
      _
    $region13: #{tpu_custom_call.1} parent=1 // pred_fallthru
      _
    // Predicated region
    $region14: #{tpu_custom_call.1} parent=1 // pred_check
      _
    $region15: #{tpu_custom_call.1} parent=1 // pred_check_branch
      %27 = sbr.rel (0) target = $region17
    $region16: #{tpu_custom_call.1} parent=1 // pred_region
      _
    $region17: #{tpu_custom_call.1} parent=1 // pred_fallthru
      _
    // Predicated region
    $region18: #{tpu_custom_call.1} parent=1 // pred_check
      _
    $region19: #{tpu_custom_call.1} parent=1 // pred_check_branch
      %29 = sbr.rel (0) target = $region21
    $region20: #{tpu_custom_call.1} parent=1 // pred_region
      _
    $region21: #{tpu_custom_call.1} parent=1 // pred_fallthru
      _
    // Predicated region
    $region22: #{tpu_custom_call.1} parent=1 // pred_check
      _
    $region23: #{tpu_custom_call.1} parent=1 // pred_check_branch
      %31 = sbr.rel (0) target = $region25
    $region24: #{tpu_custom_call.1} parent=1 // pred_region
      _
    $region25: #{tpu_custom_call.1} parent=1 // pred_fallthru
      _
    // Predicated region
    $region26: #{tpu_custom_call.1} parent=1 // pred_check
      _
    $region27: #{tpu_custom_call.1} parent=1 // pred_check_branch
      %33 = sbr.rel (0) target = $region29
    $region28: #{tpu_custom_call.1} parent=1 // pred_region
      _
    $region29: #{tpu_custom_call.1} parent=1 // pred_fallthru
      _
    // Predicated region
    $region30: #{tpu_custom_call.1} parent=1 // pred_check
      _
    $region31: #{tpu_custom_call.1} parent=1 // pred_check_branch
      %35 = sbr.rel (0) target = $region33
    $region32: #{tpu_custom_call.1} parent=1 // pred_region
      _
    $region33: #{tpu_custom_call.1} parent=1 // pred_fallthru
      _
    // Predicated region
    $region34: #{tpu_custom_call.1} parent=1 // pred_check
      _
    $region35: #{tpu_custom_call.1} parent=1 // pred_check_branch
      %37 = sbr.rel (0) target = $region37
    $region36: #{tpu_custom_call.1} parent=1 // pred_region
      _
    $region37: #{tpu_custom_call.1} parent=1 // pred_fallthru
      _
    // Predicated region
    $region38: #{tpu_custom_call.1} parent=1 // pred_check
      _
    $region39: #{tpu_custom_call.1} parent=1 // pred_check_branch
      %39 = sbr.rel (0) target = $region41
    $region40: #{tpu_custom_call.1} parent=1 // pred_region
      _
    $region41: #{tpu_custom_call.1} parent=1 // pred_fallthru
      _
    // Predicated region
    $region42: #{tpu_custom_call.1} parent=1 // pred_check
      _
    $region43: #{tpu_custom_call.1} parent=1 // pred_check_branch
      %41 = sbr.rel (0) target = $region45
    $region44: #{tpu_custom_call.1} parent=1 // pred_region
      _
    $region45: #{tpu_custom_call.1} parent=1 // pred_fallthru
      _
    // Predicated region
    $region46: #{tpu_custom_call.1} parent=1 // pred_check
      _
    $region47: #{tpu_custom_call.1} parent=1 // pred_check_branch
      %43 = sbr.rel (0) target = $region49
    $region48: #{tpu_custom_call.1} parent=1 // pred_region
      _
    $region49: #{tpu_custom_call.1} parent=1 // pred_fallthru
      _
    // Predicated region
    $region50: #{tpu_custom_call.1} parent=1 // pred_check
      _
    $region51: #{tpu_custom_call.1} parent=1 // pred_check_branch
      %45 = sbr.rel (0) target = $region53
    $region52: #{tpu_custom_call.1} parent=1 // pred_region
      _
    $region53: #{tpu_custom_call.1} parent=1 // pred_fallthru
      _
    // Predicated region
    $region54: #{tpu_custom_call.1} parent=1 // pred_check
      _
    $region55: #{tpu_custom_call.1} parent=1 // pred_check_branch
      %47 = sbr.rel (0) target = $region57
    $region56: #{tpu_custom_call.1} parent=1 // pred_region
      _
    $region57: #{tpu_custom_call.1} parent=1 // pred_fallthru
      _
    %v48 = vld [vmem:[%s0] sm:$0xf]
    %v49 = vld [vmem:[%s0 + $0x4] sm:$0xf]
    %v50 = vld [vmem:[%s0 + $0x8] sm:$0xf]
    %v51 = vld [vmem:[%s0 + $0xc] sm:$0xf]
    %v52 = vld [vmem:[%s0 + $0x10] sm:$0xf]
    %v53 = vld [vmem:[%s0 + $0x14] sm:$0xf]
    %v54 = vld [vmem:[%s0 + $0x18] sm:$0xf]
    %v55 = vld [vmem:[%s0 + $0x1c] sm:$0xf]
    %v56 = vld [vmem:[%s0 + $0x20] sm:$0xf]
    %v57 = vld [vmem:[%s0 + $0x24] sm:$0xf]
    %v58 = vld [vmem:[%s0 + $0x28] sm:$0xf]
    %v59 = vld [vmem:[%s0 + $0x2c] sm:$0xf]
    %v60 = vld [vmem:[%s0 + $0x30] sm:$0xf]
    %v61 = vld [vmem:[%s0 + $0x34] sm:$0xf]
    %v62 = vld [vmem:[%s0 + $0x38] sm:$0xf]
    %v63 = vld [vmem:[%s0 + $0x3c] sm:$0xf]
    %v64 = vld [vmem:[%s0 + $0x40] sm:$0xf]
    %v65 = vld [vmem:[%s0 + $0x44] sm:$0xf]
    %v66 = vld [vmem:[%s0 + $0x48] sm:$0xf]
    %v67 = vld [vmem:[%s0 + $0x4c] sm:$0xf]
    %v68 = vld [vmem:[%s0 + $0x50] sm:$0xf]
    %v69 = vld [vmem:[%s0 + $0x54] sm:$0xf]
    %v70 = vld [vmem:[%s0 + $0x58] sm:$0xf]
    %v71 = vld [vmem:[%s0 + $0x5c] sm:$0xf]
    %v72 = vld [vmem:[%s0 + $0x60] sm:$0xf]
    %v73 = vld [vmem:[%s0 + $0x64] sm:$0xf]
    %v74 = vld [vmem:[%s0 + $0x68] sm:$0xf]
    %v75 = vld [vmem:[%s0 + $0x6c] sm:$0xf]
    %v76 = vld [vmem:[%s0 + $0x70] sm:$0xf]
    %v77 = vld [vmem:[%s0 + $0x74] sm:$0xf]
    %v78 = vld [vmem:[%s0 + $0x78] sm:$0xf]
    %v79 = vld [vmem:[%s0 + $0x7c] sm:$0xf]
    %v80 = vunpack.c.l.bf16 %v48
    %v81 = vunpack.c.l.bf16 %v49
    %v82 = vunpack.c.l.bf16 %v50
    %v83 = vunpack.c.l.bf16 %v51
    %v84 = vunpack.c.l.bf16 %v52
    %v85 = vunpack.c.l.bf16 %v53
    %v86 = vunpack.c.l.bf16 %v54
    %v87 = vunpack.c.l.bf16 %v55
    %v88 = vunpack.c.l.bf16 %v56
    %v89 = vunpack.c.l.bf16 %v57
    %v90 = vunpack.c.l.bf16 %v58
    %v91 = vunpack.c.l.bf16 %v59
    %v92 = vunpack.c.l.bf16 %v60
    %v93 = vunpack.c.l.bf16 %v61
    %v94 = vunpack.c.l.bf16 %v62
    %v95 = vunpack.c.l.bf16 %v63
    %v96 = vunpack.c.l.bf16 %v64
    %v97 = vunpack.c.l.bf16 %v65
    %v98 = vunpack.c.l.bf16 %v66
    %v99 = vunpack.c.l.bf16 %v67
    %v100 = vunpack.c.l.bf16 %v68
    %v101 = vunpack.c.l.bf16 %v69
    %v102 = vunpack.c.l.bf16 %v70
    %v103 = vunpack.c.l.bf16 %v71
    %v104 = vunpack.c.l.bf16 %v72
    %v105 = vunpack.c.l.bf16 %v73
    %v106 = vunpack.c.l.bf16 %v74
    %v107 = vunpack.c.l.bf16 %v75
    %v108 = vunpack.c.l.bf16 %v76
    %v109 = vunpack.c.l.bf16 %v77
    %v110 = vunpack.c.l.bf16 %v78
    %v111 = vunpack.c.l.bf16 %v79
    %v112 = vld [vmem:[%s2] sm:$0xff]
    %v113 = vld [vmem:[%s3] sm:$0x1]
    %v114 = vld [vmem:[%s4] sm:$0x1]
    %v115 = vld [vmem:[%s5] sm:$0x1]
    %v117 = vlaneseq
    %v118 = vshrl.u32 %v117, 7
    %v119 = vsub.s32 0, %v118
    %v120 = vrot.slane %v113, %v119
    %vm122 = vcmask 64512
    %v124 = vsel %vm122, %v80, 0
    %v127 = vsel %vm122, %v81, 0
    %v130 = vsel %vm122, %v82, 0
    %v133 = vsel %vm122, %v83, 0
    %v136 = vsel %vm122, %v84, 0
    %v139 = vsel %vm122, %v85, 0
    %v142 = vsel %vm122, %v86, 0
    %v145 = vsel %vm122, %v87, 0
    %v148 = vsel %vm122, %v88, 0
    %v151 = vsel %vm122, %v89, 0
    %v154 = vsel %vm122, %v90, 0
    %v157 = vsel %vm122, %v91, 0
    %v160 = vsel %vm122, %v92, 0
    %v163 = vsel %vm122, %v93, 0
    %v166 = vsel %vm122, %v94, 0
    %v169 = vsel %vm122, %v95, 0
    %v172 = vsel %vm122, %v96, 0
    %v175 = vsel %vm122, %v97, 0
    %v178 = vsel %vm122, %v98, 0
    %v181 = vsel %vm122, %v99, 0
    %v184 = vsel %vm122, %v100, 0
    %v187 = vsel %vm122, %v101, 0
    %v190 = vsel %vm122, %v102, 0
    %v193 = vsel %vm122, %v103, 0
    %v196 = vsel %vm122, %v104, 0
    %v199 = vsel %vm122, %v105, 0
    %v202 = vsel %vm122, %v106, 0
    %v205 = vsel %vm122, %v107, 0
    %v208 = vsel %vm122, %v108, 0
    %v211 = vsel %vm122, %v109, 0
    %v214 = vsel %vm122, %v110, 0
    %v217 = vsel %vm122, %v111, 0
    %219 = vmatprep.subr.mxu0 0.0
    %220 = vmatpush1.msra.mxu0 %v112
    %221 = vmatprep.subr.mxu0 0.0
    %222 = vmatpush1.msra.mxu0 0.0
    %223 = vmatprep.subr.mxu0 0.0
    %224 = vmatpush1.msra.mxu0 0.0
    %225 = vmatprep.subr.mxu0 0.0
    %226 = vmatpush1.msra.mxu0 0.0
    %227 = vmatprep.subr.mxu0 0.0
    %228 = vmatpush1.msra.mxu0 0.0
    %229 = vmatprep.subr.mxu0 0.0
    %230 = vmatpush1.msra.mxu0 0.0
    %231 = vmatprep.subr.mxu0 0.0
    %232 = vmatpush1.msra.mxu0 0.0
    %233 = vmatprep.subr.mxu0 0.0
    %234 = vmatpush1.msra.mxu0 0.0
    %235 = vmatprep.subr.mxu0 0.0
    %236 = vmatpush1.msra.mxu0 0.0
    %237 = vmatprep.subr.mxu0 0.0
    %238 = vmatpush1.msra.mxu0 0.0
    %239 = vmatprep.subr.mxu0 0.0
    %240 = vmatpush1.msra.mxu0 0.0
    %241 = vmatprep.subr.mxu0 0.0
    %242 = vmatpush1.msra.mxu0 0.0
    %243 = vmatprep.subr.mxu0 0.0
    %244 = vmatpush1.msra.mxu0 0.0
    %245 = vmatprep.subr.mxu0 0.0
    %246 = vmatpush1.msra.mxu0 0.0
    %247 = vmatprep.subr.mxu0 0.0
    %248 = vmatpush1.msra.mxu0 0.0
    %249 = vmatprep.subr.mxu0 0.0
    %250 = vmatpush1.msra.mxu0 0.0
    %251 = vmatprep.subr.mxu0 0.0
    %252 = vmatpush1.msra.mxu0 0.0
    %253 = vmatprep.subr.mxu0 0.0
    %254 = vmatpush1.msra.mxu0 0.0
    %255 = vmatprep.subr.mxu0 0.0
    %256 = vmatpush1.msra.mxu0 0.0
    %257 = vmatprep.subr.mxu0 0.0
    %258 = vmatpush1.msra.mxu0 0.0
    %259 = vmatprep.subr.mxu0 0.0
    %260 = vmatpush1.msra.mxu0 0.0
    %261 = vmatprep.subr.mxu0 0.0
    %262 = vmatpush1.msra.mxu0 0.0
    %263 = vmatprep.subr.mxu0 0.0
    %264 = vmatpush1.msra.mxu0 0.0
    %265 = vmatprep.subr.mxu0 0.0
    %266 = vmatpush1.msra.mxu0 0.0
    %267 = vmatprep.subr.mxu0 0.0
    %268 = vmatpush1.msra.mxu0 0.0
    %269 = vmatprep.subr.mxu0 0.0
    %270 = vmatpush1.msra.mxu0 0.0
    %271 = vmatprep.subr.mxu0 0.0
    %272 = vmatpush1.msra.mxu0 0.0
    %273 = vmatprep.subr.mxu0 0.0
    %274 = vmatpush1.msra.mxu0 0.0
    %275 = vmatprep.subr.mxu0 0.0
    %276 = vmatpush1.msra.mxu0 0.0
    %277 = vmatprep.subr.mxu0 0.0
    %278 = vmatpush1.msra.mxu0 0.0
    %279 = vmatprep.subr.mxu0 0.0
    %280 = vmatpush1.msra.mxu0 0.0
    %281 = vmatprep.subr.mxu0 0.0
    %282 = vmatpush1.msra.mxu0 0.0
    %283 = vmatprep.mubr.f32.mxu0 0.0
    %284 = vmatmul.mubr.f32.gmra.mrb[0].mxu0 %v124
    %v285 = vpop.f32.mrb[0].mxu0
    %v286 = vadd.f32 %v120, %v285
    %v287 = vpop.f32.mrb[0].mxu0
    %288 = vmatprep.mubr.f32.mxu0 0.0
    %289 = vmatmul.mubr.f32.gmra.mrb[0].mxu0 %v127
    %v290 = vpop.f32.mrb[0].mxu0
    %v291 = vadd.f32 %v120, %v290
    %v292 = vpop.f32.mrb[0].mxu0
    %293 = vmatprep.mubr.f32.mxu0 0.0
    %294 = vmatmul.mubr.f32.gmra.mrb[0].mxu0 %v130
    %v295 = vpop.f32.mrb[0].mxu0
    %v296 = vadd.f32 %v120, %v295
    %v297 = vpop.f32.mrb[0].mxu0
    %298 = vmatprep.mubr.f32.mxu0 0.0
    %299 = vmatmul.mubr.f32.gmra.mrb[0].mxu0 %v133
    %v300 = vpop.f32.mrb[0].mxu0
    %v301 = vadd.f32 %v120, %v300
    %v302 = vpop.f32.mrb[0].mxu0
    %303 = vmatprep.mubr.f32.mxu0 0.0
    %304 = vmatmul.mubr.f32.gmra.mrb[0].mxu0 %v136
    %v305 = vpop.f32.mrb[0].mxu0
    %v306 = vadd.f32 %v120, %v305
    %v307 = vpop.f32.mrb[0].mxu0
    %308 = vmatprep.mubr.f32.mxu0 0.0
    %309 = vmatmul.mubr.f32.gmra.mrb[0].mxu0 %v139
    %v310 = vpop.f32.mrb[0].mxu0
    %v311 = vadd.f32 %v120, %v310
    %v312 = vpop.f32.mrb[0].mxu0
    %313 = vmatprep.mubr.f32.mxu0 0.0
    %314 = vmatmul.mubr.f32.gmra.mrb[0].mxu0 %v142
    %v315 = vpop.f32.mrb[0].mxu0
    %v316 = vadd.f32 %v120, %v315
    %v317 = vpop.f32.mrb[0].mxu0
    %318 = vmatprep.mubr.f32.mxu0 0.0
    %319 = vmatmul.mubr.f32.gmra.mrb[0].mxu0 %v145
    %v320 = vpop.f32.mrb[0].mxu0
    %v321 = vadd.f32 %v120, %v320
    %v322 = vpop.f32.mrb[0].mxu0
    %323 = vmatprep.mubr.f32.mxu0 0.0
    %324 = vmatmul.mubr.f32.gmra.mrb[0].mxu0 %v148
    %v325 = vpop.f32.mrb[0].mxu0
    %v326 = vadd.f32 %v120, %v325
    %v327 = vpop.f32.mrb[0].mxu0
    %328 = vmatprep.mubr.f32.mxu0 0.0
    %329 = vmatmul.mubr.f32.gmra.mrb[0].mxu0 %v151
    %v330 = vpop.f32.mrb[0].mxu0
    %v331 = vadd.f32 %v120, %v330
    %v332 = vpop.f32.mrb[0].mxu0
    %333 = vmatprep.mubr.f32.mxu0 0.0
    %334 = vmatmul.mubr.f32.gmra.mrb[0].mxu0 %v154
    %v335 = vpop.f32.mrb[0].mxu0
    %v336 = vadd.f32 %v120, %v335
    %v337 = vpop.f32.mrb[0].mxu0
    %338 = vmatprep.mubr.f32.mxu0 0.0
    %339 = vmatmul.mubr.f32.gmra.mrb[0].mxu0 %v157
    %v340 = vpop.f32.mrb[0].mxu0
    %v341 = vadd.f32 %v120, %v340
    %v342 = vpop.f32.mrb[0].mxu0
    %343 = vmatprep.mubr.f32.mxu0 0.0
    %344 = vmatmul.mubr.f32.gmra.mrb[0].mxu0 %v160
    %v345 = vpop.f32.mrb[0].mxu0
    %v346 = vadd.f32 %v120, %v345
    %v347 = vpop.f32.mrb[0].mxu0
    %348 = vmatprep.mubr.f32.mxu0 0.0
    %349 = vmatmul.mubr.f32.gmra.mrb[0].mxu0 %v163
    %v350 = vpop.f32.mrb[0].mxu0
    %v351 = vadd.f32 %v120, %v350
    %v352 = vpop.f32.mrb[0].mxu0
    %353 = vmatprep.mubr.f32.mxu0 0.0
    %354 = vmatmul.mubr.f32.gmra.mrb[0].mxu0 %v166
    %v355 = vpop.f32.mrb[0].mxu0
    %v356 = vadd.f32 %v120, %v355
    %v357 = vpop.f32.mrb[0].mxu0
    %358 = vmatprep.mubr.f32.mxu0 0.0
    %359 = vmatmul.mubr.f32.gmra.mrb[0].mxu0 %v169
    %v360 = vpop.f32.mrb[0].mxu0
    %v361 = vadd.f32 %v120, %v360
    %v362 = vpop.f32.mrb[0].mxu0
    %363 = vmatprep.mubr.f32.mxu0 0.0
    %364 = vmatmul.mubr.f32.gmra.mrb[0].mxu0 %v172
    %v365 = vpop.f32.mrb[0].mxu0
    %v366 = vadd.f32 %v120, %v365
    %v367 = vpop.f32.mrb[0].mxu0
    %368 = vmatprep.mubr.f32.mxu0 0.0
    %369 = vmatmul.mubr.f32.gmra.mrb[0].mxu0 %v175
    %v370 = vpop.f32.mrb[0].mxu0
    %v371 = vadd.f32 %v120, %v370
    %v372 = vpop.f32.mrb[0].mxu0
    %373 = vmatprep.mubr.f32.mxu0 0.0
    %374 = vmatmul.mubr.f32.gmra.mrb[0].mxu0 %v178
    %v375 = vpop.f32.mrb[0].mxu0
    %v376 = vadd.f32 %v120, %v375
    %v377 = vpop.f32.mrb[0].mxu0
    %378 = vmatprep.mubr.f32.mxu0 0.0
    %379 = vmatmul.mubr.f32.gmra.mrb[0].mxu0 %v181
    %v380 = vpop.f32.mrb[0].mxu0
    %v381 = vadd.f32 %v120, %v380
    %v382 = vpop.f32.mrb[0].mxu0
    %383 = vmatprep.mubr.f32.mxu0 0.0
    %384 = vmatmul.mubr.f32.gmra.mrb[0].mxu0 %v184
    %v385 = vpop.f32.mrb[0].mxu0
    %v386 = vadd.f32 %v120, %v385
    %v387 = vpop.f32.mrb[0].mxu0
    %388 = vmatprep.mubr.f32.mxu0 0.0
    %389 = vmatmul.mubr.f32.gmra.mrb[0].mxu0 %v187
    %v390 = vpop.f32.mrb[0].mxu0
    %v391 = vadd.f32 %v120, %v390
    %v392 = vpop.f32.mrb[0].mxu0
    %393 = vmatprep.mubr.f32.mxu0 0.0
    %394 = vmatmul.mubr.f32.gmra.mrb[0].mxu0 %v190
    %v395 = vpop.f32.mrb[0].mxu0
    %v396 = vadd.f32 %v120, %v395
    %v397 = vpop.f32.mrb[0].mxu0
    %398 = vmatprep.mubr.f32.mxu0 0.0
    %399 = vmatmul.mubr.f32.gmra.mrb[0].mxu0 %v193
    %v400 = vpop.f32.mrb[0].mxu0
    %v401 = vadd.f32 %v120, %v400
    %v402 = vpop.f32.mrb[0].mxu0
    %403 = vmatprep.mubr.f32.mxu0 0.0
    %404 = vmatmul.mubr.f32.gmra.mrb[0].mxu0 %v196
    %v405 = vpop.f32.mrb[0].mxu0
    %v406 = vadd.f32 %v120, %v405
    %v407 = vpop.f32.mrb[0].mxu0
    %408 = vmatprep.mubr.f32.mxu0 0.0
    %409 = vmatmul.mubr.f32.gmra.mrb[0].mxu0 %v199
    %v410 = vpop.f32.mrb[0].mxu0
    %v411 = vadd.f32 %v120, %v410
    %v412 = vpop.f32.mrb[0].mxu0
    %413 = vmatprep.mubr.f32.mxu0 0.0
    %414 = vmatmul.mubr.f32.gmra.mrb[0].mxu0 %v202
    %v415 = vpop.f32.mrb[0].mxu0
    %v416 = vadd.f32 %v120, %v415
    %v417 = vpop.f32.mrb[0].mxu0
    %418 = vmatprep.mubr.f32.mxu0 0.0
    %419 = vmatmul.mubr.f32.gmra.mrb[0].mxu0 %v205
    %v420 = vpop.f32.mrb[0].mxu0
    %v421 = vadd.f32 %v120, %v420
    %v422 = vpop.f32.mrb[0].mxu0
    %423 = vmatprep.mubr.f32.mxu0 0.0
    %424 = vmatmul.mubr.f32.gmra.mrb[0].mxu0 %v208
    %v425 = vpop.f32.mrb[0].mxu0
    %v426 = vadd.f32 %v120, %v425
    %v427 = vpop.f32.mrb[0].mxu0
    %428 = vmatprep.mubr.f32.mxu0 0.0
    %429 = vmatmul.mubr.f32.gmra.mrb[0].mxu0 %v211
    %v430 = vpop.f32.mrb[0].mxu0
    %v431 = vadd.f32 %v120, %v430
    %v432 = vpop.f32.mrb[0].mxu0
    %433 = vmatprep.mubr.f32.mxu0 0.0
    %434 = vmatmul.mubr.f32.gmra.mrb[0].mxu0 %v214
    %v435 = vpop.f32.mrb[0].mxu0
    %v436 = vadd.f32 %v120, %v435
    %v437 = vpop.f32.mrb[0].mxu0
    %438 = vmatprep.mubr.f32.mxu0 0.0
    %439 = vmatmul.mubr.f32.gmra.mrb[0].mxu0 %v217
    %v440 = vpop.f32.mrb[0].mxu0
    %v441 = vadd.f32 %v120, %v440
    %v442 = vpop.f32.mrb[0].mxu0
    %443 = vdwg.mxu0
    %vm444 = vcmask 261120
    %v445 = vsel %vm444, %v286, 0.0
    %446 = vadd.xlane.f32.xlu0 %v445
    %v447 = vpop.xlane.xlu0 %446
    %v448 = vsel %vm444, %v291, 0.0
    %449 = vadd.xlane.f32.xlu0 %v448
    %v450 = vpop.xlane.xlu0 %449
    %v451 = vsel %vm444, %v296, 0.0
    %452 = vadd.xlane.f32.xlu0 %v451
    %v453 = vpop.xlane.xlu0 %452
    %v454 = vsel %vm444, %v301, 0.0
    %455 = vadd.xlane.f32.xlu0 %v454
    %v456 = vpop.xlane.xlu0 %455
    %v457 = vsel %vm444, %v306, 0.0
    %458 = vadd.xlane.f32.xlu0 %v457
    %v459 = vpop.xlane.xlu0 %458
    %v460 = vsel %vm444, %v311, 0.0
    %461 = vadd.xlane.f32.xlu0 %v460
    %v462 = vpop.xlane.xlu0 %461
    %v463 = vsel %vm444, %v316, 0.0
    %464 = vadd.xlane.f32.xlu0 %v463
    %v465 = vpop.xlane.xlu0 %464
    %v466 = vsel %vm444, %v321, 0.0
    %467 = vadd.xlane.f32.xlu0 %v466
    %v468 = vpop.xlane.xlu0 %467
    %v469 = vsel %vm444, %v326, 0.0
    %470 = vadd.xlane.f32.xlu0 %v469
    %v471 = vpop.xlane.xlu0 %470
    %v472 = vsel %vm444, %v331, 0.0
    %473 = vadd.xlane.f32.xlu0 %v472
    %v474 = vpop.xlane.xlu0 %473
    %v475 = vsel %vm444, %v336, 0.0
    %476 = vadd.xlane.f32.xlu0 %v475
    %v477 = vpop.xlane.xlu0 %476
    %v478 = vsel %vm444, %v341, 0.0
    %479 = vadd.xlane.f32.xlu0 %v478
    %v480 = vpop.xlane.xlu0 %479
    %v481 = vsel %vm444, %v346, 0.0
    %482 = vadd.xlane.f32.xlu0 %v481
    %v483 = vpop.xlane.xlu0 %482
    %v484 = vsel %vm444, %v351, 0.0
    %485 = vadd.xlane.f32.xlu0 %v484
    %v486 = vpop.xlane.xlu0 %485
    %v487 = vsel %vm444, %v356, 0.0
    %488 = vadd.xlane.f32.xlu0 %v487
    %v489 = vpop.xlane.xlu0 %488
    %v490 = vsel %vm444, %v361, 0.0
    %491 = vadd.xlane.f32.xlu0 %v490
    %v492 = vpop.xlane.xlu0 %491
    %v493 = vsel %vm444, %v366, 0.0
    %494 = vadd.xlane.f32.xlu0 %v493
    %v495 = vpop.xlane.xlu0 %494
    %v496 = vsel %vm444, %v371, 0.0
    %497 = vadd.xlane.f32.xlu0 %v496
    %v498 = vpop.xlane.xlu0 %497
    %v499 = vsel %vm444, %v376, 0.0
    %500 = vadd.xlane.f32.xlu0 %v499
    %v501 = vpop.xlane.xlu0 %500
    %v502 = vsel %vm444, %v381, 0.0
    %503 = vadd.xlane.f32.xlu0 %v502
    %v504 = vpop.xlane.xlu0 %503
    %v505 = vsel %vm444, %v386, 0.0
    %506 = vadd.xlane.f32.xlu0 %v505
    %v507 = vpop.xlane.xlu0 %506
    %v508 = vsel %vm444, %v391, 0.0
    %509 = vadd.xlane.f32.xlu0 %v508
    %v510 = vpop.xlane.xlu0 %509
    %v511 = vsel %vm444, %v396, 0.0
    %512 = vadd.xlane.f32.xlu0 %v511
    %v513 = vpop.xlane.xlu0 %512
    %v514 = vsel %vm444, %v401, 0.0
    %515 = vadd.xlane.f32.xlu0 %v514
    %v516 = vpop.xlane.xlu0 %515
    %v517 = vsel %vm444, %v406, 0.0
    %518 = vadd.xlane.f32.xlu0 %v517
    %v519 = vpop.xlane.xlu0 %518
    %v520 = vsel %vm444, %v411, 0.0
    %521 = vadd.xlane.f32.xlu0 %v520
    %v522 = vpop.xlane.xlu0 %521
    %v523 = vsel %vm444, %v416, 0.0
    %524 = vadd.xlane.f32.xlu0 %v523
    %v525 = vpop.xlane.xlu0 %524
    %v526 = vsel %vm444, %v421, 0.0
    %527 = vadd.xlane.f32.xlu0 %v526
    %v528 = vpop.xlane.xlu0 %527
    %v529 = vsel %vm444, %v426, 0.0
    %530 = vadd.xlane.f32.xlu0 %v529
    %v531 = vpop.xlane.xlu0 %530
    %v532 = vsel %vm444, %v431, 0.0
    %533 = vadd.xlane.f32.xlu0 %v532
    %v534 = vpop.xlane.xlu0 %533
    %v535 = vsel %vm444, %v436, 0.0
    %536 = vadd.xlane.f32.xlu0 %v535
    %v537 = vpop.xlane.xlu0 %536
    %v538 = vsel %vm444, %v441, 0.0
    %539 = vadd.xlane.f32.xlu0 %v538
    %v540 = vpop.xlane.xlu0 %539
    %v541 = vrcp.pop 32.0
    %v542 = vmul.f32 %v447, %v541
    %v543 = vmul.f32 %v450, %v541
    %v544 = vmul.f32 %v453, %v541
    %v545 = vmul.f32 %v456, %v541
    %v546 = vmul.f32 %v459, %v541
    %v547 = vmul.f32 %v462, %v541
    %v548 = vmul.f32 %v465, %v541
    %v549 = vmul.f32 %v468, %v541
    %v550 = vmul.f32 %v471, %v541
    %v551 = vmul.f32 %v474, %v541
    %v552 = vmul.f32 %v477, %v541
    %v553 = vmul.f32 %v480, %v541
    %v554 = vmul.f32 %v483, %v541
    %v555 = vmul.f32 %v486, %v541
    %v556 = vmul.f32 %v489, %v541
    %v557 = vmul.f32 %v492, %v541
    %v558 = vmul.f32 %v495, %v541
    %v559 = vmul.f32 %v498, %v541
    %v560 = vmul.f32 %v501, %v541
    %v561 = vmul.f32 %v504, %v541
    %v562 = vmul.f32 %v507, %v541
    %v563 = vmul.f32 %v510, %v541
    %v564 = vmul.f32 %v513, %v541
    %v565 = vmul.f32 %v516, %v541
    %v566 = vmul.f32 %v519, %v541
    %v567 = vmul.f32 %v522, %v541
    %v568 = vmul.f32 %v525, %v541
    %v569 = vmul.f32 %v528, %v541
    %v570 = vmul.f32 %v531, %v541
    %v571 = vmul.f32 %v534, %v541
    %v572 = vmul.f32 %v537, %v541
    %v573 = vmul.f32 %v540, %v541
    %v574 = vmul.f32 %v286, %v286
    %v575 = vmul.f32 %v291, %v291
    %v576 = vmul.f32 %v296, %v296
    %v577 = vmul.f32 %v301, %v301
    %v578 = vmul.f32 %v306, %v306
    %v579 = vmul.f32 %v311, %v311
    %v580 = vmul.f32 %v316, %v316
    %v581 = vmul.f32 %v321, %v321
    %v582 = vmul.f32 %v326, %v326
    %v583 = vmul.f32 %v331, %v331
    %v584 = vmul.f32 %v336, %v336
    %v585 = vmul.f32 %v341, %v341
    %v586 = vmul.f32 %v346, %v346
    %v587 = vmul.f32 %v351, %v351
    %v588 = vmul.f32 %v356, %v356
    %v589 = vmul.f32 %v361, %v361
    %v590 = vmul.f32 %v366, %v366
    %v591 = vmul.f32 %v371, %v371
    %v592 = vmul.f32 %v376, %v376
    %v593 = vmul.f32 %v381, %v381
    %v594 = vmul.f32 %v386, %v386
    %v595 = vmul.f32 %v391, %v391
    %v596 = vmul.f32 %v396, %v396
    %v597 = vmul.f32 %v401, %v401
    %v598 = vmul.f32 %v406, %v406
    %v599 = vmul.f32 %v411, %v411
    %v600 = vmul.f32 %v416, %v416
    %v601 = vmul.f32 %v421, %v421
    %v602 = vmul.f32 %v426, %v426
    %v603 = vmul.f32 %v431, %v431
    %v604 = vmul.f32 %v436, %v436
    %v605 = vmul.f32 %v441, %v441
    %v606 = vsel %vm444, %v574, 0.0
    %607 = vadd.xlane.f32.xlu0 %v606
    %v608 = vpop.xlane.xlu0 %607
    %v609 = vsel %vm444, %v575, 0.0
    %610 = vadd.xlane.f32.xlu0 %v609
    %v611 = vpop.xlane.xlu0 %610
    %v612 = vsel %vm444, %v576, 0.0
    %613 = vadd.xlane.f32.xlu0 %v612
    %v614 = vpop.xlane.xlu0 %613
    %v615 = vsel %vm444, %v577, 0.0
    %616 = vadd.xlane.f32.xlu0 %v615
    %v617 = vpop.xlane.xlu0 %616
    %v618 = vsel %vm444, %v578, 0.0
    %619 = vadd.xlane.f32.xlu0 %v618
    %v620 = vpop.xlane.xlu0 %619
    %v621 = vsel %vm444, %v579, 0.0
    %622 = vadd.xlane.f32.xlu0 %v621
    %v623 = vpop.xlane.xlu0 %622
    %v624 = vsel %vm444, %v580, 0.0
    %625 = vadd.xlane.f32.xlu0 %v624
    %v626 = vpop.xlane.xlu0 %625
    %v627 = vsel %vm444, %v581, 0.0
    %628 = vadd.xlane.f32.xlu0 %v627
    %v629 = vpop.xlane.xlu0 %628
    %v630 = vsel %vm444, %v582, 0.0
    %631 = vadd.xlane.f32.xlu0 %v630
    %v632 = vpop.xlane.xlu0 %631
    %v633 = vsel %vm444, %v583, 0.0
    %634 = vadd.xlane.f32.xlu0 %v633
    %v635 = vpop.xlane.xlu0 %634
    %v636 = vsel %vm444, %v584, 0.0
    %637 = vadd.xlane.f32.xlu0 %v636
    %v638 = vpop.xlane.xlu0 %637
    %v639 = vsel %vm444, %v585, 0.0
    %640 = vadd.xlane.f32.xlu0 %v639
    %v641 = vpop.xlane.xlu0 %640
    %v642 = vsel %vm444, %v586, 0.0
    %643 = vadd.xlane.f32.xlu0 %v642
    %v644 = vpop.xlane.xlu0 %643
    %v645 = vsel %vm444, %v587, 0.0
    %646 = vadd.xlane.f32.xlu0 %v645
    %v647 = vpop.xlane.xlu0 %646
    %v648 = vsel %vm444, %v588, 0.0
    %649 = vadd.xlane.f32.xlu0 %v648
    %v650 = vpop.xlane.xlu0 %649
    %v651 = vsel %vm444, %v589, 0.0
    %652 = vadd.xlane.f32.xlu0 %v651
    %v653 = vpop.xlane.xlu0 %652
    %v654 = vsel %vm444, %v590, 0.0
    %655 = vadd.xlane.f32.xlu0 %v654
    %v656 = vpop.xlane.xlu0 %655
    %v657 = vsel %vm444, %v591, 0.0
    %658 = vadd.xlane.f32.xlu0 %v657
    %v659 = vpop.xlane.xlu0 %658
    %v660 = vsel %vm444, %v592, 0.0
    %661 = vadd.xlane.f32.xlu0 %v660
    %v662 = vpop.xlane.xlu0 %661
    %v663 = vsel %vm444, %v593, 0.0
    %664 = vadd.xlane.f32.xlu0 %v663
    %v665 = vpop.xlane.xlu0 %664
    %v666 = vsel %vm444, %v594, 0.0
    %667 = vadd.xlane.f32.xlu0 %v666
    %v668 = vpop.xlane.xlu0 %667
    %v669 = vsel %vm444, %v595, 0.0
    %670 = vadd.xlane.f32.xlu0 %v669
    %v671 = vpop.xlane.xlu0 %670
    %v672 = vsel %vm444, %v596, 0.0
    %673 = vadd.xlane.f32.xlu0 %v672
    %v674 = vpop.xlane.xlu0 %673
    %v675 = vsel %vm444, %v597, 0.0
    %676 = vadd.xlane.f32.xlu0 %v675
    %v677 = vpop.xlane.xlu0 %676
    %v678 = vsel %vm444, %v598, 0.0
    %679 = vadd.xlane.f32.xlu0 %v678
    %v680 = vpop.xlane.xlu0 %679
    %v681 = vsel %vm444, %v599, 0.0
    %682 = vadd.xlane.f32.xlu0 %v681
    %v683 = vpop.xlane.xlu0 %682
    %v684 = vsel %vm444, %v600, 0.0
    %685 = vadd.xlane.f32.xlu0 %v684
    %v686 = vpop.xlane.xlu0 %685
    %v687 = vsel %vm444, %v601, 0.0
    %688 = vadd.xlane.f32.xlu0 %v687
    %v689 = vpop.xlane.xlu0 %688
    %v690 = vsel %vm444, %v602, 0.0
    %691 = vadd.xlane.f32.xlu0 %v690
    %v692 = vpop.xlane.xlu0 %691
    %v693 = vsel %vm444, %v603, 0.0
    %694 = vadd.xlane.f32.xlu0 %v693
    %v695 = vpop.xlane.xlu0 %694
    %v696 = vsel %vm444, %v604, 0.0
    %697 = vadd.xlane.f32.xlu0 %v696
    %v698 = vpop.xlane.xlu0 %697
    %v699 = vsel %vm444, %v605, 0.0
    %700 = vadd.xlane.f32.xlu0 %v699
    %v701 = vpop.xlane.xlu0 %700
    %v702 = vmul.f32 %v608, %v541
    %v703 = vmul.f32 %v611, %v541
    %v704 = vmul.f32 %v614, %v541
    %v705 = vmul.f32 %v617, %v541
    %v706 = vmul.f32 %v620, %v541
    %v707 = vmul.f32 %v623, %v541
    %v708 = vmul.f32 %v626, %v541
    %v709 = vmul.f32 %v629, %v541
    %v710 = vmul.f32 %v632, %v541
    %v711 = vmul.f32 %v635, %v541
    %v712 = vmul.f32 %v638, %v541
    %v713 = vmul.f32 %v641, %v541
    %v714 = vmul.f32 %v644, %v541
    %v715 = vmul.f32 %v647, %v541
    %v716 = vmul.f32 %v650, %v541
    %v717 = vmul.f32 %v653, %v541
    %v718 = vmul.f32 %v656, %v541
    %v719 = vmul.f32 %v659, %v541
    %v720 = vmul.f32 %v662, %v541
    %v721 = vmul.f32 %v665, %v541
    %v722 = vmul.f32 %v668, %v541
    %v723 = vmul.f32 %v671, %v541
    %v724 = vmul.f32 %v674, %v541
    %v725 = vmul.f32 %v677, %v541
    %v726 = vmul.f32 %v680, %v541
    %v727 = vmul.f32 %v683, %v541
    %v728 = vmul.f32 %v686, %v541
    %v729 = vmul.f32 %v689, %v541
    %v730 = vmul.f32 %v692, %v541
    %v731 = vmul.f32 %v695, %v541
    %v732 = vmul.f32 %v698, %v541
    %v733 = vmul.f32 %v701, %v541
    %v734 = vmul.f32 %v542, %v542
    %v735 = vmul.f32 %v543, %v543
    %v736 = vmul.f32 %v544, %v544
    %v737 = vmul.f32 %v545, %v545
    %v738 = vmul.f32 %v546, %v546
    %v739 = vmul.f32 %v547, %v547
    %v740 = vmul.f32 %v548, %v548
    %v741 = vmul.f32 %v549, %v549
    %v742 = vmul.f32 %v550, %v550
    %v743 = vmul.f32 %v551, %v551
    %v744 = vmul.f32 %v552, %v552
    %v745 = vmul.f32 %v553, %v553
    %v746 = vmul.f32 %v554, %v554
    %v747 = vmul.f32 %v555, %v555
    %v748 = vmul.f32 %v556, %v556
    %v749 = vmul.f32 %v557, %v557
    %v750 = vmul.f32 %v558, %v558
    %v751 = vmul.f32 %v559, %v559
    %v752 = vmul.f32 %v560, %v560
    %v753 = vmul.f32 %v561, %v561
    %v754 = vmul.f32 %v562, %v562
    %v755 = vmul.f32 %v563, %v563
    %v756 = vmul.f32 %v564, %v564
    %v757 = vmul.f32 %v565, %v565
    %v758 = vmul.f32 %v566, %v566
    %v759 = vmul.f32 %v567, %v567
    %v760 = vmul.f32 %v568, %v568
    %v761 = vmul.f32 %v569, %v569
    %v762 = vmul.f32 %v570, %v570
    %v763 = vmul.f32 %v571, %v571
    %v764 = vmul.f32 %v572, %v572
    %v765 = vmul.f32 %v573, %v573
    %v766 = vsub.f32 %v702, %v734
    %v767 = vsub.f32 %v703, %v735
    %v768 = vsub.f32 %v704, %v736
    %v769 = vsub.f32 %v705, %v737
    %v770 = vsub.f32 %v706, %v738
    %v771 = vsub.f32 %v707, %v739
    %v772 = vsub.f32 %v708, %v740
    %v773 = vsub.f32 %v709, %v741
    %v774 = vsub.f32 %v710, %v742
    %v775 = vsub.f32 %v711, %v743
    %v776 = vsub.f32 %v712, %v744
    %v777 = vsub.f32 %v713, %v745
    %v778 = vsub.f32 %v714, %v746
    %v779 = vsub.f32 %v715, %v747
    %v780 = vsub.f32 %v716, %v748
    %v781 = vsub.f32 %v717, %v749
    %v782 = vsub.f32 %v718, %v750
    %v783 = vsub.f32 %v719, %v751
    %v784 = vsub.f32 %v720, %v752
    %v785 = vsub.f32 %v721, %v753
    %v786 = vsub.f32 %v722, %v754
    %v787 = vsub.f32 %v723, %v755
    %v788 = vsub.f32 %v724, %v756
    %v789 = vsub.f32 %v725, %v757
    %v790 = vsub.f32 %v726, %v758
    %v791 = vsub.f32 %v727, %v759
    %v792 = vsub.f32 %v728, %v760
    %v793 = vsub.f32 %v729, %v761
    %v794 = vsub.f32 %v730, %v762
    %v795 = vsub.f32 %v731, %v763
    %v796 = vsub.f32 %v732, %v764
    %v797 = vsub.f32 %v733, %v765
    %v798 = vmax.f32 %v766, 0.0
    %v799 = vmax.f32 %v767, 0.0
    %v800 = vmax.f32 %v768, 0.0
    %v801 = vmax.f32 %v769, 0.0
    %v802 = vmax.f32 %v770, 0.0
    %v803 = vmax.f32 %v771, 0.0
    %v804 = vmax.f32 %v772, 0.0
    %v805 = vmax.f32 %v773, 0.0
    %v806 = vmax.f32 %v774, 0.0
    %v807 = vmax.f32 %v775, 0.0
    %v808 = vmax.f32 %v776, 0.0
    %v809 = vmax.f32 %v777, 0.0
    %v810 = vmax.f32 %v778, 0.0
    %v811 = vmax.f32 %v779, 0.0
    %v812 = vmax.f32 %v780, 0.0
    %v813 = vmax.f32 %v781, 0.0
    %v814 = vmax.f32 %v782, 0.0
    %v815 = vmax.f32 %v783, 0.0
    %v816 = vmax.f32 %v784, 0.0
    %v817 = vmax.f32 %v785, 0.0
    %v818 = vmax.f32 %v786, 0.0
    %v819 = vmax.f32 %v787, 0.0
    %v820 = vmax.f32 %v788, 0.0
    %v821 = vmax.f32 %v789, 0.0
    %v822 = vmax.f32 %v790, 0.0
    %v823 = vmax.f32 %v791, 0.0
    %v824 = vmax.f32 %v792, 0.0
    %v825 = vmax.f32 %v793, 0.0
    %v826 = vmax.f32 %v794, 0.0
    %v827 = vmax.f32 %v795, 0.0
    %v828 = vmax.f32 %v796, 0.0
    %v829 = vmax.f32 %v797, 0.0
    %v830 = vsub.f32 %v286, %v542
    %v831 = vsub.f32 %v291, %v543
    %v832 = vsub.f32 %v296, %v544
    %v833 = vsub.f32 %v301, %v545
    %v834 = vsub.f32 %v306, %v546
    %v835 = vsub.f32 %v311, %v547
    %v836 = vsub.f32 %v316, %v548
    %v837 = vsub.f32 %v321, %v549
    %v838 = vsub.f32 %v326, %v550
    %v839 = vsub.f32 %v331, %v551
    %v840 = vsub.f32 %v336, %v552
    %v841 = vsub.f32 %v341, %v553
    %v842 = vsub.f32 %v346, %v554
    %v843 = vsub.f32 %v351, %v555
    %v844 = vsub.f32 %v356, %v556
    %v845 = vsub.f32 %v361, %v557
    %v846 = vsub.f32 %v366, %v558
    %v847 = vsub.f32 %v371, %v559
    %v848 = vsub.f32 %v376, %v560
    %v849 = vsub.f32 %v381, %v561
    %v850 = vsub.f32 %v386, %v562
    %v851 = vsub.f32 %v391, %v563
    %v852 = vsub.f32 %v396, %v564
    %v853 = vsub.f32 %v401, %v565
    %v854 = vsub.f32 %v406, %v566
    %v855 = vsub.f32 %v411, %v567
    %v856 = vsub.f32 %v416, %v568
    %v857 = vsub.f32 %v421, %v569
    %v858 = vsub.f32 %v426, %v570
    %v859 = vsub.f32 %v431, %v571
    %v860 = vsub.f32 %v436, %v572
    %v861 = vsub.f32 %v441, %v573
    %v862 = vadd.f32 %v798, 1e-05
    %v863 = vadd.f32 %v799, 1e-05
    %v864 = vadd.f32 %v800, 1e-05
    %v865 = vadd.f32 %v801, 1e-05
    %v866 = vadd.f32 %v802, 1e-05
    %v867 = vadd.f32 %v803, 1e-05
    %v868 = vadd.f32 %v804, 1e-05
    %v869 = vadd.f32 %v805, 1e-05
    %v870 = vadd.f32 %v806, 1e-05
    %v871 = vadd.f32 %v807, 1e-05
    %v872 = vadd.f32 %v808, 1e-05
    %v873 = vadd.f32 %v809, 1e-05
    %v874 = vadd.f32 %v810, 1e-05
    %v875 = vadd.f32 %v811, 1e-05
    %v876 = vadd.f32 %v812, 1e-05
    %v877 = vadd.f32 %v813, 1e-05
    %v878 = vadd.f32 %v814, 1e-05
    %v879 = vadd.f32 %v815, 1e-05
    %v880 = vadd.f32 %v816, 1e-05
    %v881 = vadd.f32 %v817, 1e-05
    %v882 = vadd.f32 %v818, 1e-05
    %v883 = vadd.f32 %v819, 1e-05
    %v884 = vadd.f32 %v820, 1e-05
    %v885 = vadd.f32 %v821, 1e-05
    %v886 = vadd.f32 %v822, 1e-05
    %v887 = vadd.f32 %v823, 1e-05
    %v888 = vadd.f32 %v824, 1e-05
    %v889 = vadd.f32 %v825, 1e-05
    %v890 = vadd.f32 %v826, 1e-05
    %v891 = vadd.f32 %v827, 1e-05
    %v892 = vadd.f32 %v828, 1e-05
    %v893 = vadd.f32 %v829, 1e-05
    %v894 = vrsqrt.pop %v862
    %v895 = vrsqrt.pop %v863
    %v896 = vrsqrt.pop %v864
    %v897 = vrsqrt.pop %v865
    %v898 = vrsqrt.pop %v866
    %v899 = vrsqrt.pop %v867
    %v900 = vrsqrt.pop %v868
    %v901 = vrsqrt.pop %v869
    %v902 = vrsqrt.pop %v870
    %v903 = vrsqrt.pop %v871
    %v904 = vrsqrt.pop %v872
    %v905 = vrsqrt.pop %v873
    %v906 = vrsqrt.pop %v874
    %v907 = vrsqrt.pop %v875
    %v908 = vrsqrt.pop %v876
    %v909 = vrsqrt.pop %v877
    %v910 = vrsqrt.pop %v878
    %v911 = vrsqrt.pop %v879
    %v912 = vrsqrt.pop %v880
    %v913 = vrsqrt.pop %v881
    %v914 = vrsqrt.pop %v882
    %v915 = vrsqrt.pop %v883
    %v916 = vrsqrt.pop %v884
    %v917 = vrsqrt.pop %v885
    %v918 = vrsqrt.pop %v886
    %v919 = vrsqrt.pop %v887
    %v920 = vrsqrt.pop %v888
    %v921 = vrsqrt.pop %v889
    %v922 = vrsqrt.pop %v890
    %v923 = vrsqrt.pop %v891
    %v924 = vrsqrt.pop %v892
    %v925 = vrsqrt.pop %v893
    %v926 = vmul.f32 %v830, %v894
    %v927 = vmul.f32 %v831, %v895
    %v928 = vmul.f32 %v832, %v896
    %v929 = vmul.f32 %v833, %v897
    %v930 = vmul.f32 %v834, %v898
    %v931 = vmul.f32 %v835, %v899
    %v932 = vmul.f32 %v836, %v900
    %v933 = vmul.f32 %v837, %v901
    %v934 = vmul.f32 %v838, %v902
    %v935 = vmul.f32 %v839, %v903
    %v936 = vmul.f32 %v840, %v904
    %v937 = vmul.f32 %v841, %v905
    %v938 = vmul.f32 %v842, %v906
    %v939 = vmul.f32 %v843, %v907
    %v940 = vmul.f32 %v844, %v908
    %v941 = vmul.f32 %v845, %v909
    %v942 = vmul.f32 %v846, %v910
    %v943 = vmul.f32 %v847, %v911
    %v944 = vmul.f32 %v848, %v912
    %v945 = vmul.f32 %v849, %v913
    %v946 = vmul.f32 %v850, %v914
    %v947 = vmul.f32 %v851, %v915
    %v948 = vmul.f32 %v852, %v916
    %v949 = vmul.f32 %v853, %v917
    %v950 = vmul.f32 %v854, %v918
    %v951 = vmul.f32 %v855, %v919
    %v952 = vmul.f32 %v856, %v920
    %v953 = vmul.f32 %v857, %v921
    %v954 = vmul.f32 %v858, %v922
    %v955 = vmul.f32 %v859, %v923
    %v956 = vmul.f32 %v860, %v924
    %v957 = vmul.f32 %v861, %v925
    %v959 = vlaneseq
    %v960 = vshrl.u32 %v959, 7
    %v961 = vsub.s32 0, %v960
    %v962 = vrot.slane %v114, %v961
    %v964 = vmul.f32 %v926, %v962
    %v965 = vmul.f32 %v927, %v962
    %v966 = vmul.f32 %v928, %v962
    %v967 = vmul.f32 %v929, %v962
    %v968 = vmul.f32 %v930, %v962
    %v969 = vmul.f32 %v931, %v962
    %v970 = vmul.f32 %v932, %v962
    %v971 = vmul.f32 %v933, %v962
    %v972 = vmul.f32 %v934, %v962
    %v973 = vmul.f32 %v935, %v962
    %v974 = vmul.f32 %v936, %v962
    %v975 = vmul.f32 %v937, %v962
    %v976 = vmul.f32 %v938, %v962
    %v977 = vmul.f32 %v939, %v962
    %v978 = vmul.f32 %v940, %v962
    %v979 = vmul.f32 %v941, %v962
    %v980 = vmul.f32 %v942, %v962
    %v981 = vmul.f32 %v943, %v962
    %v982 = vmul.f32 %v944, %v962
    %v983 = vmul.f32 %v945, %v962
    %v984 = vmul.f32 %v946, %v962
    %v985 = vmul.f32 %v947, %v962
    %v986 = vmul.f32 %v948, %v962
    %v987 = vmul.f32 %v949, %v962
    %v988 = vmul.f32 %v950, %v962
    %v989 = vmul.f32 %v951, %v962
    %v990 = vmul.f32 %v952, %v962
    %v991 = vmul.f32 %v953, %v962
    %v992 = vmul.f32 %v954, %v962
    %v993 = vmul.f32 %v955, %v962
    %v994 = vmul.f32 %v956, %v962
    %v995 = vmul.f32 %v957, %v962
    %v997 = vlaneseq
    %v998 = vshrl.u32 %v997, 7
    %v999 = vsub.s32 0, %v998
    %v1000 = vrot.slane %v115, %v999
    %v1002 = vadd.f32 %v964, %v1000
    %v1003 = vadd.f32 %v965, %v1000
    %v1004 = vadd.f32 %v966, %v1000
    %v1005 = vadd.f32 %v967, %v1000
    %v1006 = vadd.f32 %v968, %v1000
    %v1007 = vadd.f32 %v969, %v1000
    %v1008 = vadd.f32 %v970, %v1000
    %v1009 = vadd.f32 %v971, %v1000
    %v1010 = vadd.f32 %v972, %v1000
    %v1011 = vadd.f32 %v973, %v1000
    %v1012 = vadd.f32 %v974, %v1000
    %v1013 = vadd.f32 %v975, %v1000
    %v1014 = vadd.f32 %v976, %v1000
    %v1015 = vadd.f32 %v977, %v1000
    %v1016 = vadd.f32 %v978, %v1000
    %v1017 = vadd.f32 %v979, %v1000
    %v1018 = vadd.f32 %v980, %v1000
    %v1019 = vadd.f32 %v981, %v1000
    %v1020 = vadd.f32 %v982, %v1000
    %v1021 = vadd.f32 %v983, %v1000
    %v1022 = vadd.f32 %v984, %v1000
    %v1023 = vadd.f32 %v985, %v1000
    %v1024 = vadd.f32 %v986, %v1000
    %v1025 = vadd.f32 %v987, %v1000
    %v1026 = vadd.f32 %v988, %v1000
    %v1027 = vadd.f32 %v989, %v1000
    %v1028 = vadd.f32 %v990, %v1000
    %v1029 = vadd.f32 %v991, %v1000
    %v1030 = vadd.f32 %v992, %v1000
    %v1031 = vadd.f32 %v993, %v1000
    %v1032 = vadd.f32 %v994, %v1000
    %v1033 = vadd.f32 %v995, %v1000
    %v1034 = vmax.f32 %v1002, 0.0
    %v1035 = vmax.f32 %v1003, 0.0
    %v1036 = vmax.f32 %v1004, 0.0
    %v1037 = vmax.f32 %v1005, 0.0
    %v1038 = vmax.f32 %v1006, 0.0
    %v1039 = vmax.f32 %v1007, 0.0
    %v1040 = vmax.f32 %v1008, 0.0
    %v1041 = vmax.f32 %v1009, 0.0
    %v1042 = vmax.f32 %v1010, 0.0
    %v1043 = vmax.f32 %v1011, 0.0
    %v1044 = vmax.f32 %v1012, 0.0
    %v1045 = vmax.f32 %v1013, 0.0
    %v1046 = vmax.f32 %v1014, 0.0
    %v1047 = vmax.f32 %v1015, 0.0
    %v1048 = vmax.f32 %v1016, 0.0
    %v1049 = vmax.f32 %v1017, 0.0
    %v1050 = vmax.f32 %v1018, 0.0
    %v1051 = vmax.f32 %v1019, 0.0
    %v1052 = vmax.f32 %v1020, 0.0
    %v1053 = vmax.f32 %v1021, 0.0
    %v1054 = vmax.f32 %v1022, 0.0
    %v1055 = vmax.f32 %v1023, 0.0
    %v1056 = vmax.f32 %v1024, 0.0
    %v1057 = vmax.f32 %v1025, 0.0
    %v1058 = vmax.f32 %v1026, 0.0
    %v1059 = vmax.f32 %v1027, 0.0
    %v1060 = vmax.f32 %v1028, 0.0
    %v1061 = vmax.f32 %v1029, 0.0
    %v1062 = vmax.f32 %v1030, 0.0
    %v1063 = vmax.f32 %v1031, 0.0
    %v1064 = vmax.f32 %v1032, 0.0
    %v1065 = vmax.f32 %v1033, 0.0
    %v1066 = vld [vmem:[%s6] sm:$0xff]
    %v1067 = vld [vmem:[%s6 + $0x8] sm:$0xff]
    %v1068 = vld [vmem:[%s6 + $0x10] sm:$0xff]
    %v1069 = vld [vmem:[%s6 + $0x18] sm:$0xff]
    %v1070 = vld [vmem:[%s7] sm:$0x1]
    %v1071 = vld [vmem:[%s8] sm:$0x1]
    %v1072 = vld [vmem:[%s9] sm:$0x1]
    %v1074 = vlaneseq
    %v1075 = vshrl.u32 %v1074, 7
    %v1076 = vsub.s32 0, %v1075
    %v1077 = vrot.slane %v1070, %v1076
    %v1080 = vsel %vm444, %v1034, 0
    %v1083 = vsel %vm444, %v1035, 0
    %v1086 = vsel %vm444, %v1036, 0
    %v1089 = vsel %vm444, %v1037, 0
    %v1092 = vsel %vm444, %v1038, 0
    %v1095 = vsel %vm444, %v1039, 0
    %v1098 = vsel %vm444, %v1040, 0
    %v1101 = vsel %vm444, %v1041, 0
    %v1104 = vsel %vm444, %v1042, 0
    %v1107 = vsel %vm444, %v1043, 0
    %v1110 = vsel %vm444, %v1044, 0
    %v1113 = vsel %vm444, %v1045, 0
    %v1116 = vsel %vm444, %v1046, 0
    %v1119 = vsel %vm444, %v1047, 0
    %v1122 = vsel %vm444, %v1048, 0
    %v1125 = vsel %vm444, %v1049, 0
    %v1128 = vsel %vm444, %v1050, 0
    %v1131 = vsel %vm444, %v1051, 0
    %v1134 = vsel %vm444, %v1052, 0
    %v1137 = vsel %vm444, %v1053, 0
    %v1140 = vsel %vm444, %v1054, 0
    %v1143 = vsel %vm444, %v1055, 0
    %v1146 = vsel %vm444, %v1056, 0
    %v1149 = vsel %vm444, %v1057, 0
    %v1152 = vsel %vm444, %v1058, 0
    %v1155 = vsel %vm444, %v1059, 0
    %v1158 = vsel %vm444, %v1060, 0
    %v1161 = vsel %vm444, %v1061, 0
    %v1164 = vsel %vm444, %v1062, 0
    %v1167 = vsel %vm444, %v1063, 0
    %v1170 = vsel %vm444, %v1064, 0
    %v1173 = vsel %vm444, %v1065, 0
    %1175 = vmatprep.subr.mxu0 0.0
    %1176 = vmatpush1.msra.mxu0 %v1066
    %1177 = vmatprep.subr.mxu0 0.0
    %1178 = vmatpush1.msra.mxu0 %v1067
    %1179 = vmatprep.subr.mxu0 0.0
    %1180 = vmatpush1.msra.mxu0 %v1068
    %1181 = vmatprep.subr.mxu0 0.0
    %1182 = vmatpush1.msra.mxu0 %v1069
    %1183 = vmatprep.subr.mxu0 0.0
    %1184 = vmatpush1.msra.mxu0 0.0
    %1185 = vmatprep.subr.mxu0 0.0
    %1186 = vmatpush1.msra.mxu0 0.0
    %1187 = vmatprep.subr.mxu0 0.0
    %1188 = vmatpush1.msra.mxu0 0.0
    %1189 = vmatprep.subr.mxu0 0.0
    %1190 = vmatpush1.msra.mxu0 0.0
    %1191 = vmatprep.subr.mxu0 0.0
    %1192 = vmatpush1.msra.mxu0 0.0
    %1193 = vmatprep.subr.mxu0 0.0
    %1194 = vmatpush1.msra.mxu0 0.0
    %1195 = vmatprep.subr.mxu0 0.0
    %1196 = vmatpush1.msra.mxu0 0.0
    %1197 = vmatprep.subr.mxu0 0.0
    %1198 = vmatpush1.msra.mxu0 0.0
    %1199 = vmatprep.subr.mxu0 0.0
    %1200 = vmatpush1.msra.mxu0 0.0
    %1201 = vmatprep.subr.mxu0 0.0
    %1202 = vmatpush1.msra.mxu0 0.0
    %1203 = vmatprep.subr.mxu0 0.0
    %1204 = vmatpush1.msra.mxu0 0.0
    %1205 = vmatprep.subr.mxu0 0.0
    %1206 = vmatpush1.msra.mxu0 0.0
    %1207 = vmatprep.subr.mxu0 0.0
    %1208 = vmatpush1.msra.mxu0 0.0
    %1209 = vmatprep.subr.mxu0 0.0
    %1210 = vmatpush1.msra.mxu0 0.0
    %1211 = vmatprep.subr.mxu0 0.0
    %1212 = vmatpush1.msra.mxu0 0.0
    %1213 = vmatprep.subr.mxu0 0.0
    %1214 = vmatpush1.msra.mxu0 0.0
    %1215 = vmatprep.subr.mxu0 0.0
    %1216 = vmatpush1.msra.mxu0 0.0
    %1217 = vmatprep.subr.mxu0 0.0
    %1218 = vmatpush1.msra.mxu0 0.0
    %1219 = vmatprep.subr.mxu0 0.0
    %1220 = vmatpush1.msra.mxu0 0.0
    %1221 = vmatprep.subr.mxu0 0.0
    %1222 = vmatpush1.msra.mxu0 0.0
    %1223 = vmatprep.subr.mxu0 0.0
    %1224 = vmatpush1.msra.mxu0 0.0
    %1225 = vmatprep.subr.mxu0 0.0
    %1226 = vmatpush1.msra.mxu0 0.0
    %1227 = vmatprep.subr.mxu0 0.0
    %1228 = vmatpush1.msra.mxu0 0.0
    %1229 = vmatprep.subr.mxu0 0.0
    %1230 = vmatpush1.msra.mxu0 0.0
    %1231 = vmatprep.subr.mxu0 0.0
    %1232 = vmatpush1.msra.mxu0 0.0
    %1233 = vmatprep.subr.mxu0 0.0
    %1234 = vmatpush1.msra.mxu0 0.0
    %1235 = vmatprep.subr.mxu0 0.0
    %1236 = vmatpush1.msra.mxu0 0.0
    %1237 = vmatprep.subr.mxu0 0.0
    %1238 = vmatpush1.msra.mxu0 0.0
    %1239 = vmatprep.mubr.f32.mxu0 0.0
    %1240 = vmatmul.mubr.f32.gmra.mrb[0].mxu0 %v1080
    %v1241 = vpop.f32.mrb[0].mxu0
    %v1242 = vadd.f32 %v1077, %v1241
    %v1243 = vpop.f32.mrb[0].mxu0
    %1244 = vmatprep.mubr.f32.mxu0 0.0
    %1245 = vmatmul.mubr.f32.gmra.mrb[0].mxu0 %v1083
    %v1246 = vpop.f32.mrb[0].mxu0
    %v1247 = vadd.f32 %v1077, %v1246
    %v1248 = vpop.f32.mrb[0].mxu0
    %1249 = vmatprep.mubr.f32.mxu0 0.0
    %1250 = vmatmul.mubr.f32.gmra.mrb[0].mxu0 %v1086
    %v1251 = vpop.f32.mrb[0].mxu0
    %v1252 = vadd.f32 %v1077, %v1251
    %v1253 = vpop.f32.mrb[0].mxu0
    %1254 = vmatprep.mubr.f32.mxu0 0.0
    %1255 = vmatmul.mubr.f32.gmra.mrb[0].mxu0 %v1089
    %v1256 = vpop.f32.mrb[0].mxu0
    %v1257 = vadd.f32 %v1077, %v1256
    %v1258 = vpop.f32.mrb[0].mxu0
    %1259 = vmatprep.mubr.f32.mxu0 0.0
    %1260 = vmatmul.mubr.f32.gmra.mrb[0].mxu0 %v1092
    %v1261 = vpop.f32.mrb[0].mxu0
    %v1262 = vadd.f32 %v1077, %v1261
    %v1263 = vpop.f32.mrb[0].mxu0
    %1264 = vmatprep.mubr.f32.mxu0 0.0
    %1265 = vmatmul.mubr.f32.gmra.mrb[0].mxu0 %v1095
    %v1266 = vpop.f32.mrb[0].mxu0
    %v1267 = vadd.f32 %v1077, %v1266
    %v1268 = vpop.f32.mrb[0].mxu0
    %1269 = vmatprep.mubr.f32.mxu0 0.0
    %1270 = vmatmul.mubr.f32.gmra.mrb[0].mxu0 %v1098
    %v1271 = vpop.f32.mrb[0].mxu0
    %v1272 = vadd.f32 %v1077, %v1271
    %v1273 = vpop.f32.mrb[0].mxu0
    %1274 = vmatprep.mubr.f32.mxu0 0.0
    %1275 = vmatmul.mubr.f32.gmra.mrb[0].mxu0 %v1101
    %v1276 = vpop.f32.mrb[0].mxu0
    %v1277 = vadd.f32 %v1077, %v1276
    %v1278 = vpop.f32.mrb[0].mxu0
    %1279 = vmatprep.mubr.f32.mxu0 0.0
    %1280 = vmatmul.mubr.f32.gmra.mrb[0].mxu0 %v1104
    %v1281 = vpop.f32.mrb[0].mxu0
    %v1282 = vadd.f32 %v1077, %v1281
    %v1283 = vpop.f32.mrb[0].mxu0
    %1284 = vmatprep.mubr.f32.mxu0 0.0
    %1285 = vmatmul.mubr.f32.gmra.mrb[0].mxu0 %v1107
    %v1286 = vpop.f32.mrb[0].mxu0
    %v1287 = vadd.f32 %v1077, %v1286
    %v1288 = vpop.f32.mrb[0].mxu0
    %1289 = vmatprep.mubr.f32.mxu0 0.0
    %1290 = vmatmul.mubr.f32.gmra.mrb[0].mxu0 %v1110
    %v1291 = vpop.f32.mrb[0].mxu0
    %v1292 = vadd.f32 %v1077, %v1291
    %v1293 = vpop.f32.mrb[0].mxu0
    %1294 = vmatprep.mubr.f32.mxu0 0.0
    %1295 = vmatmul.mubr.f32.gmra.mrb[0].mxu0 %v1113
    %v1296 = vpop.f32.mrb[0].mxu0
    %v1297 = vadd.f32 %v1077, %v1296
    %v1298 = vpop.f32.mrb[0].mxu0
    %1299 = vmatprep.mubr.f32.mxu0 0.0
    %1300 = vmatmul.mubr.f32.gmra.mrb[0].mxu0 %v1116
    %v1301 = vpop.f32.mrb[0].mxu0
    %v1302 = vadd.f32 %v1077, %v1301
    %v1303 = vpop.f32.mrb[0].mxu0
    %1304 = vmatprep.mubr.f32.mxu0 0.0
    %1305 = vmatmul.mubr.f32.gmra.mrb[0].mxu0 %v1119
    %v1306 = vpop.f32.mrb[0].mxu0
    %v1307 = vadd.f32 %v1077, %v1306
    %v1308 = vpop.f32.mrb[0].mxu0
    %1309 = vmatprep.mubr.f32.mxu0 0.0
    %1310 = vmatmul.mubr.f32.gmra.mrb[0].mxu0 %v1122
    %v1311 = vpop.f32.mrb[0].mxu0
    %v1312 = vadd.f32 %v1077, %v1311
    %v1313 = vpop.f32.mrb[0].mxu0
    %1314 = vmatprep.mubr.f32.mxu0 0.0
    %1315 = vmatmul.mubr.f32.gmra.mrb[0].mxu0 %v1125
    %v1316 = vpop.f32.mrb[0].mxu0
    %v1317 = vadd.f32 %v1077, %v1316
    %v1318 = vpop.f32.mrb[0].mxu0
    %1319 = vmatprep.mubr.f32.mxu0 0.0
    %1320 = vmatmul.mubr.f32.gmra.mrb[0].mxu0 %v1128
    %v1321 = vpop.f32.mrb[0].mxu0
    %v1322 = vadd.f32 %v1077, %v1321
    %v1323 = vpop.f32.mrb[0].mxu0
    %1324 = vmatprep.mubr.f32.mxu0 0.0
    %1325 = vmatmul.mubr.f32.gmra.mrb[0].mxu0 %v1131
    %v1326 = vpop.f32.mrb[0].mxu0
    %v1327 = vadd.f32 %v1077, %v1326
    %v1328 = vpop.f32.mrb[0].mxu0
    %1329 = vmatprep.mubr.f32.mxu0 0.0
    %1330 = vmatmul.mubr.f32.gmra.mrb[0].mxu0 %v1134
    %v1331 = vpop.f32.mrb[0].mxu0
    %v1332 = vadd.f32 %v1077, %v1331
    %v1333 = vpop.f32.mrb[0].mxu0
    %1334 = vmatprep.mubr.f32.mxu0 0.0
    %1335 = vmatmul.mubr.f32.gmra.mrb[0].mxu0 %v1137
    %v1336 = vpop.f32.mrb[0].mxu0
    %v1337 = vadd.f32 %v1077, %v1336
    %v1338 = vpop.f32.mrb[0].mxu0
    %1339 = vmatprep.mubr.f32.mxu0 0.0
    %1340 = vmatmul.mubr.f32.gmra.mrb[0].mxu0 %v1140
    %v1341 = vpop.f32.mrb[0].mxu0
    %v1342 = vadd.f32 %v1077, %v1341
    %v1343 = vpop.f32.mrb[0].mxu0
    %1344 = vmatprep.mubr.f32.mxu0 0.0
    %1345 = vmatmul.mubr.f32.gmra.mrb[0].mxu0 %v1143
    %v1346 = vpop.f32.mrb[0].mxu0
    %v1347 = vadd.f32 %v1077, %v1346
    %v1348 = vpop.f32.mrb[0].mxu0
    %1349 = vmatprep.mubr.f32.mxu0 0.0
    %1350 = vmatmul.mubr.f32.gmra.mrb[0].mxu0 %v1146
    %v1351 = vpop.f32.mrb[0].mxu0
    %v1352 = vadd.f32 %v1077, %v1351
    %v1353 = vpop.f32.mrb[0].mxu0
    %1354 = vmatprep.mubr.f32.mxu0 0.0
    %1355 = vmatmul.mubr.f32.gmra.mrb[0].mxu0 %v1149
    %v1356 = vpop.f32.mrb[0].mxu0
    %v1357 = vadd.f32 %v1077, %v1356
    %v1358 = vpop.f32.mrb[0].mxu0
    %1359 = vmatprep.mubr.f32.mxu0 0.0
    %1360 = vmatmul.mubr.f32.gmra.mrb[0].mxu0 %v1152
    %v1361 = vpop.f32.mrb[0].mxu0
    %v1362 = vadd.f32 %v1077, %v1361
    %v1363 = vpop.f32.mrb[0].mxu0
    %1364 = vmatprep.mubr.f32.mxu0 0.0
    %1365 = vmatmul.mubr.f32.gmra.mrb[0].mxu0 %v1155
    %v1366 = vpop.f32.mrb[0].mxu0
    %v1367 = vadd.f32 %v1077, %v1366
    %v1368 = vpop.f32.mrb[0].mxu0
    %1369 = vmatprep.mubr.f32.mxu0 0.0
    %1370 = vmatmul.mubr.f32.gmra.mrb[0].mxu0 %v1158
    %v1371 = vpop.f32.mrb[0].mxu0
    %v1372 = vadd.f32 %v1077, %v1371
    %v1373 = vpop.f32.mrb[0].mxu0
    %1374 = vmatprep.mubr.f32.mxu0 0.0
    %1375 = vmatmul.mubr.f32.gmra.mrb[0].mxu0 %v1161
    %v1376 = vpop.f32.mrb[0].mxu0
    %v1377 = vadd.f32 %v1077, %v1376
    %v1378 = vpop.f32.mrb[0].mxu0
    %1379 = vmatprep.mubr.f32.mxu0 0.0
    %1380 = vmatmul.mubr.f32.gmra.mrb[0].mxu0 %v1164
    %v1381 = vpop.f32.mrb[0].mxu0
    %v1382 = vadd.f32 %v1077, %v1381
    %v1383 = vpop.f32.mrb[0].mxu0
    %1384 = vmatprep.mubr.f32.mxu0 0.0
    %1385 = vmatmul.mubr.f32.gmra.mrb[0].mxu0 %v1167
    %v1386 = vpop.f32.mrb[0].mxu0
    %v1387 = vadd.f32 %v1077, %v1386
    %v1388 = vpop.f32.mrb[0].mxu0
    %1389 = vmatprep.mubr.f32.mxu0 0.0
    %1390 = vmatmul.mubr.f32.gmra.mrb[0].mxu0 %v1170
    %v1391 = vpop.f32.mrb[0].mxu0
    %v1392 = vadd.f32 %v1077, %v1391
    %v1393 = vpop.f32.mrb[0].mxu0
    %1394 = vmatprep.mubr.f32.mxu0 0.0
    %1395 = vmatmul.mubr.f32.gmra.mrb[0].mxu0 %v1173
    %v1396 = vpop.f32.mrb[0].mxu0
    %v1397 = vadd.f32 %v1077, %v1396
    %v1398 = vpop.f32.mrb[0].mxu0
    %1399 = vdwg.mxu0
    %v1400 = vsel %vm444, %v1242, 0.0
    %1401 = vadd.xlane.f32.xlu0 %v1400
    %v1402 = vpop.xlane.xlu0 %1401
    %v1403 = vsel %vm444, %v1247, 0.0
    %1404 = vadd.xlane.f32.xlu0 %v1403
    %v1405 = vpop.xlane.xlu0 %1404
    %v1406 = vsel %vm444, %v1252, 0.0
    %1407 = vadd.xlane.f32.xlu0 %v1406
    %v1408 = vpop.xlane.xlu0 %1407
    %v1409 = vsel %vm444, %v1257, 0.0
    %1410 = vadd.xlane.f32.xlu0 %v1409
    %v1411 = vpop.xlane.xlu0 %1410
    %v1412 = vsel %vm444, %v1262, 0.0
    %1413 = vadd.xlane.f32.xlu0 %v1412
    %v1414 = vpop.xlane.xlu0 %1413
    %v1415 = vsel %vm444, %v1267, 0.0
    %1416 = vadd.xlane.f32.xlu0 %v1415
    %v1417 = vpop.xlane.xlu0 %1416
    %v1418 = vsel %vm444, %v1272, 0.0
    %1419 = vadd.xlane.f32.xlu0 %v1418
    %v1420 = vpop.xlane.xlu0 %1419
    %v1421 = vsel %vm444, %v1277, 0.0
    %1422 = vadd.xlane.f32.xlu0 %v1421
    %v1423 = vpop.xlane.xlu0 %1422
    %v1424 = vsel %vm444, %v1282, 0.0
    %1425 = vadd.xlane.f32.xlu0 %v1424
    %v1426 = vpop.xlane.xlu0 %1425
    %v1427 = vsel %vm444, %v1287, 0.0
    %1428 = vadd.xlane.f32.xlu0 %v1427
    %v1429 = vpop.xlane.xlu0 %1428
    %v1430 = vsel %vm444, %v1292, 0.0
    %1431 = vadd.xlane.f32.xlu0 %v1430
    %v1432 = vpop.xlane.xlu0 %1431
    %v1433 = vsel %vm444, %v1297, 0.0
    %1434 = vadd.xlane.f32.xlu0 %v1433
    %v1435 = vpop.xlane.xlu0 %1434
    %v1436 = vsel %vm444, %v1302, 0.0
    %1437 = vadd.xlane.f32.xlu0 %v1436
    %v1438 = vpop.xlane.xlu0 %1437
    %v1439 = vsel %vm444, %v1307, 0.0
    %1440 = vadd.xlane.f32.xlu0 %v1439
    %v1441 = vpop.xlane.xlu0 %1440
    %v1442 = vsel %vm444, %v1312, 0.0
    %1443 = vadd.xlane.f32.xlu0 %v1442
    %v1444 = vpop.xlane.xlu0 %1443
    %v1445 = vsel %vm444, %v1317, 0.0
    %1446 = vadd.xlane.f32.xlu0 %v1445
    %v1447 = vpop.xlane.xlu0 %1446
    %v1448 = vsel %vm444, %v1322, 0.0
    %1449 = vadd.xlane.f32.xlu0 %v1448
    %v1450 = vpop.xlane.xlu0 %1449
    %v1451 = vsel %vm444, %v1327, 0.0
    %1452 = vadd.xlane.f32.xlu0 %v1451
    %v1453 = vpop.xlane.xlu0 %1452
    %v1454 = vsel %vm444, %v1332, 0.0
    %1455 = vadd.xlane.f32.xlu0 %v1454
    %v1456 = vpop.xlane.xlu0 %1455
    %v1457 = vsel %vm444, %v1337, 0.0
    %1458 = vadd.xlane.f32.xlu0 %v1457
    %v1459 = vpop.xlane.xlu0 %1458
    %v1460 = vsel %vm444, %v1342, 0.0
    %1461 = vadd.xlane.f32.xlu0 %v1460
    %v1462 = vpop.xlane.xlu0 %1461
    %v1463 = vsel %vm444, %v1347, 0.0
    %1464 = vadd.xlane.f32.xlu0 %v1463
    %v1465 = vpop.xlane.xlu0 %1464
    %v1466 = vsel %vm444, %v1352, 0.0
    %1467 = vadd.xlane.f32.xlu0 %v1466
    %v1468 = vpop.xlane.xlu0 %1467
    %v1469 = vsel %vm444, %v1357, 0.0
    %1470 = vadd.xlane.f32.xlu0 %v1469
    %v1471 = vpop.xlane.xlu0 %1470
    %v1472 = vsel %vm444, %v1362, 0.0
    %1473 = vadd.xlane.f32.xlu0 %v1472
    %v1474 = vpop.xlane.xlu0 %1473
    %v1475 = vsel %vm444, %v1367, 0.0
    %1476 = vadd.xlane.f32.xlu0 %v1475
    %v1477 = vpop.xlane.xlu0 %1476
    %v1478 = vsel %vm444, %v1372, 0.0
    %1479 = vadd.xlane.f32.xlu0 %v1478
    %v1480 = vpop.xlane.xlu0 %1479
    %v1481 = vsel %vm444, %v1377, 0.0
    %1482 = vadd.xlane.f32.xlu0 %v1481
    %v1483 = vpop.xlane.xlu0 %1482
    %v1484 = vsel %vm444, %v1382, 0.0
    %1485 = vadd.xlane.f32.xlu0 %v1484
    %v1486 = vpop.xlane.xlu0 %1485
    %v1487 = vsel %vm444, %v1387, 0.0
    %1488 = vadd.xlane.f32.xlu0 %v1487
    %v1489 = vpop.xlane.xlu0 %1488
    %v1490 = vsel %vm444, %v1392, 0.0
    %1491 = vadd.xlane.f32.xlu0 %v1490
    %v1492 = vpop.xlane.xlu0 %1491
    %v1493 = vsel %vm444, %v1397, 0.0
    %1494 = vadd.xlane.f32.xlu0 %v1493
    %v1495 = vpop.xlane.xlu0 %1494
    %v1496 = vmul.f32 %v1402, %v541
    %v1497 = vmul.f32 %v1405, %v541
    %v1498 = vmul.f32 %v1408, %v541
    %v1499 = vmul.f32 %v1411, %v541
    %v1500 = vmul.f32 %v1414, %v541
    %v1501 = vmul.f32 %v1417, %v541
    %v1502 = vmul.f32 %v1420, %v541
    %v1503 = vmul.f32 %v1423, %v541
    %v1504 = vmul.f32 %v1426, %v541
    %v1505 = vmul.f32 %v1429, %v541
    %v1506 = vmul.f32 %v1432, %v541
    %v1507 = vmul.f32 %v1435, %v541
    %v1508 = vmul.f32 %v1438, %v541
    %v1509 = vmul.f32 %v1441, %v541
    %v1510 = vmul.f32 %v1444, %v541
    %v1511 = vmul.f32 %v1447, %v541
    %v1512 = vmul.f32 %v1450, %v541
    %v1513 = vmul.f32 %v1453, %v541
    %v1514 = vmul.f32 %v1456, %v541
    %v1515 = vmul.f32 %v1459, %v541
    %v1516 = vmul.f32 %v1462, %v541
    %v1517 = vmul.f32 %v1465, %v541
    %v1518 = vmul.f32 %v1468, %v541
    %v1519 = vmul.f32 %v1471, %v541
    %v1520 = vmul.f32 %v1474, %v541
    %v1521 = vmul.f32 %v1477, %v541
    %v1522 = vmul.f32 %v1480, %v541
    %v1523 = vmul.f32 %v1483, %v541
    %v1524 = vmul.f32 %v1486, %v541
    %v1525 = vmul.f32 %v1489, %v541
    %v1526 = vmul.f32 %v1492, %v541
    %v1527 = vmul.f32 %v1495, %v541
    %v1528 = vmul.f32 %v1242, %v1242
    %v1529 = vmul.f32 %v1247, %v1247
    %v1530 = vmul.f32 %v1252, %v1252
    %v1531 = vmul.f32 %v1257, %v1257
    %v1532 = vmul.f32 %v1262, %v1262
    %v1533 = vmul.f32 %v1267, %v1267
    %v1534 = vmul.f32 %v1272, %v1272
    %v1535 = vmul.f32 %v1277, %v1277
    %v1536 = vmul.f32 %v1282, %v1282
    %v1537 = vmul.f32 %v1287, %v1287
    %v1538 = vmul.f32 %v1292, %v1292
    %v1539 = vmul.f32 %v1297, %v1297
    %v1540 = vmul.f32 %v1302, %v1302
    %v1541 = vmul.f32 %v1307, %v1307
    %v1542 = vmul.f32 %v1312, %v1312
    %v1543 = vmul.f32 %v1317, %v1317
    %v1544 = vmul.f32 %v1322, %v1322
    %v1545 = vmul.f32 %v1327, %v1327
    %v1546 = vmul.f32 %v1332, %v1332
    %v1547 = vmul.f32 %v1337, %v1337
    %v1548 = vmul.f32 %v1342, %v1342
    %v1549 = vmul.f32 %v1347, %v1347
    %v1550 = vmul.f32 %v1352, %v1352
    %v1551 = vmul.f32 %v1357, %v1357
    %v1552 = vmul.f32 %v1362, %v1362
    %v1553 = vmul.f32 %v1367, %v1367
    %v1554 = vmul.f32 %v1372, %v1372
    %v1555 = vmul.f32 %v1377, %v1377
    %v1556 = vmul.f32 %v1382, %v1382
    %v1557 = vmul.f32 %v1387, %v1387
    %v1558 = vmul.f32 %v1392, %v1392
    %v1559 = vmul.f32 %v1397, %v1397
    %v1560 = vsel %vm444, %v1528, 0.0
    %1561 = vadd.xlane.f32.xlu0 %v1560
    %v1562 = vpop.xlane.xlu0 %1561
    %v1563 = vsel %vm444, %v1529, 0.0
    %1564 = vadd.xlane.f32.xlu0 %v1563
    %v1565 = vpop.xlane.xlu0 %1564
    %v1566 = vsel %vm444, %v1530, 0.0
    %1567 = vadd.xlane.f32.xlu0 %v1566
    %v1568 = vpop.xlane.xlu0 %1567
    %v1569 = vsel %vm444, %v1531, 0.0
    %1570 = vadd.xlane.f32.xlu0 %v1569
    %v1571 = vpop.xlane.xlu0 %1570
    %v1572 = vsel %vm444, %v1532, 0.0
    %1573 = vadd.xlane.f32.xlu0 %v1572
    %v1574 = vpop.xlane.xlu0 %1573
    %v1575 = vsel %vm444, %v1533, 0.0
    %1576 = vadd.xlane.f32.xlu0 %v1575
    %v1577 = vpop.xlane.xlu0 %1576
    %v1578 = vsel %vm444, %v1534, 0.0
    %1579 = vadd.xlane.f32.xlu0 %v1578
    %v1580 = vpop.xlane.xlu0 %1579
    %v1581 = vsel %vm444, %v1535, 0.0
    %1582 = vadd.xlane.f32.xlu0 %v1581
    %v1583 = vpop.xlane.xlu0 %1582
    %v1584 = vsel %vm444, %v1536, 0.0
    %1585 = vadd.xlane.f32.xlu0 %v1584
    %v1586 = vpop.xlane.xlu0 %1585
    %v1587 = vsel %vm444, %v1537, 0.0
    %1588 = vadd.xlane.f32.xlu0 %v1587
    %v1589 = vpop.xlane.xlu0 %1588
    %v1590 = vsel %vm444, %v1538, 0.0
    %1591 = vadd.xlane.f32.xlu0 %v1590
    %v1592 = vpop.xlane.xlu0 %1591
    %v1593 = vsel %vm444, %v1539, 0.0
    %1594 = vadd.xlane.f32.xlu0 %v1593
    %v1595 = vpop.xlane.xlu0 %1594
    %v1596 = vsel %vm444, %v1540, 0.0
    %1597 = vadd.xlane.f32.xlu0 %v1596
    %v1598 = vpop.xlane.xlu0 %1597
    %v1599 = vsel %vm444, %v1541, 0.0
    %1600 = vadd.xlane.f32.xlu0 %v1599
    %v1601 = vpop.xlane.xlu0 %1600
    %v1602 = vsel %vm444, %v1542, 0.0
    %1603 = vadd.xlane.f32.xlu0 %v1602
    %v1604 = vpop.xlane.xlu0 %1603
    %v1605 = vsel %vm444, %v1543, 0.0
    %1606 = vadd.xlane.f32.xlu0 %v1605
    %v1607 = vpop.xlane.xlu0 %1606
    %v1608 = vsel %vm444, %v1544, 0.0
    %1609 = vadd.xlane.f32.xlu0 %v1608
    %v1610 = vpop.xlane.xlu0 %1609
    %v1611 = vsel %vm444, %v1545, 0.0
    %1612 = vadd.xlane.f32.xlu0 %v1611
    %v1613 = vpop.xlane.xlu0 %1612
    %v1614 = vsel %vm444, %v1546, 0.0
    %1615 = vadd.xlane.f32.xlu0 %v1614
    %v1616 = vpop.xlane.xlu0 %1615
    %v1617 = vsel %vm444, %v1547, 0.0
    %1618 = vadd.xlane.f32.xlu0 %v1617
    %v1619 = vpop.xlane.xlu0 %1618
    %v1620 = vsel %vm444, %v1548, 0.0
    %1621 = vadd.xlane.f32.xlu0 %v1620
    %v1622 = vpop.xlane.xlu0 %1621
    %v1623 = vsel %vm444, %v1549, 0.0
    %1624 = vadd.xlane.f32.xlu0 %v1623
    %v1625 = vpop.xlane.xlu0 %1624
    %v1626 = vsel %vm444, %v1550, 0.0
    %1627 = vadd.xlane.f32.xlu0 %v1626
    %v1628 = vpop.xlane.xlu0 %1627
    %v1629 = vsel %vm444, %v1551, 0.0
    %1630 = vadd.xlane.f32.xlu0 %v1629
    %v1631 = vpop.xlane.xlu0 %1630
    %v1632 = vsel %vm444, %v1552, 0.0
    %1633 = vadd.xlane.f32.xlu0 %v1632
    %v1634 = vpop.xlane.xlu0 %1633
    %v1635 = vsel %vm444, %v1553, 0.0
    %1636 = vadd.xlane.f32.xlu0 %v1635
    %v1637 = vpop.xlane.xlu0 %1636
    %v1638 = vsel %vm444, %v1554, 0.0
    %1639 = vadd.xlane.f32.xlu0 %v1638
    %v1640 = vpop.xlane.xlu0 %1639
    %v1641 = vsel %vm444, %v1555, 0.0
    %1642 = vadd.xlane.f32.xlu0 %v1641
    %v1643 = vpop.xlane.xlu0 %1642
    %v1644 = vsel %vm444, %v1556, 0.0
    %1645 = vadd.xlane.f32.xlu0 %v1644
    %v1646 = vpop.xlane.xlu0 %1645
    %v1647 = vsel %vm444, %v1557, 0.0
    %1648 = vadd.xlane.f32.xlu0 %v1647
    %v1649 = vpop.xlane.xlu0 %1648
    %v1650 = vsel %vm444, %v1558, 0.0
    %1651 = vadd.xlane.f32.xlu0 %v1650
    %v1652 = vpop.xlane.xlu0 %1651
    %v1653 = vsel %vm444, %v1559, 0.0
    %1654 = vadd.xlane.f32.xlu0 %v1653
    %v1655 = vpop.xlane.xlu0 %1654
    %v1656 = vmul.f32 %v1562, %v541
    %v1657 = vmul.f32 %v1565, %v541
    %v1658 = vmul.f32 %v1568, %v541
    %v1659 = vmul.f32 %v1571, %v541
    %v1660 = vmul.f32 %v1574, %v541
    %v1661 = vmul.f32 %v1577, %v541
    %v1662 = vmul.f32 %v1580, %v541
    %v1663 = vmul.f32 %v1583, %v541
    %v1664 = vmul.f32 %v1586, %v541
    %v1665 = vmul.f32 %v1589, %v541
    %v1666 = vmul.f32 %v1592, %v541
    %v1667 = vmul.f32 %v1595, %v541
    %v1668 = vmul.f32 %v1598, %v541
    %v1669 = vmul.f32 %v1601, %v541
    %v1670 = vmul.f32 %v1604, %v541
    %v1671 = vmul.f32 %v1607, %v541
    %v1672 = vmul.f32 %v1610, %v541
    %v1673 = vmul.f32 %v1613, %v541
    %v1674 = vmul.f32 %v1616, %v541
    %v1675 = vmul.f32 %v1619, %v541
    %v1676 = vmul.f32 %v1622, %v541
    %v1677 = vmul.f32 %v1625, %v541
    %v1678 = vmul.f32 %v1628, %v541
    %v1679 = vmul.f32 %v1631, %v541
    %v1680 = vmul.f32 %v1634, %v541
    %v1681 = vmul.f32 %v1637, %v541
    %v1682 = vmul.f32 %v1640, %v541
    %v1683 = vmul.f32 %v1643, %v541
    %v1684 = vmul.f32 %v1646, %v541
    %v1685 = vmul.f32 %v1649, %v541
    %v1686 = vmul.f32 %v1652, %v541
    %v1687 = vmul.f32 %v1655, %v541
    %v1688 = vmul.f32 %v1496, %v1496
    %v1689 = vmul.f32 %v1497, %v1497
    %v1690 = vmul.f32 %v1498, %v1498
    %v1691 = vmul.f32 %v1499, %v1499
    %v1692 = vmul.f32 %v1500, %v1500
    %v1693 = vmul.f32 %v1501, %v1501
    %v1694 = vmul.f32 %v1502, %v1502
    %v1695 = vmul.f32 %v1503, %v1503
    %v1696 = vmul.f32 %v1504, %v1504
    %v1697 = vmul.f32 %v1505, %v1505
    %v1698 = vmul.f32 %v1506, %v1506
    %v1699 = vmul.f32 %v1507, %v1507
    %v1700 = vmul.f32 %v1508, %v1508
    %v1701 = vmul.f32 %v1509, %v1509
    %v1702 = vmul.f32 %v1510, %v1510
    %v1703 = vmul.f32 %v1511, %v1511
    %v1704 = vmul.f32 %v1512, %v1512
    %v1705 = vmul.f32 %v1513, %v1513
    %v1706 = vmul.f32 %v1514, %v1514
    %v1707 = vmul.f32 %v1515, %v1515
    %v1708 = vmul.f32 %v1516, %v1516
    %v1709 = vmul.f32 %v1517, %v1517
    %v1710 = vmul.f32 %v1518, %v1518
    %v1711 = vmul.f32 %v1519, %v1519
    %v1712 = vmul.f32 %v1520, %v1520
    %v1713 = vmul.f32 %v1521, %v1521
    %v1714 = vmul.f32 %v1522, %v1522
    %v1715 = vmul.f32 %v1523, %v1523
    %v1716 = vmul.f32 %v1524, %v1524
    %v1717 = vmul.f32 %v1525, %v1525
    %v1718 = vmul.f32 %v1526, %v1526
    %v1719 = vmul.f32 %v1527, %v1527
    %v1720 = vsub.f32 %v1656, %v1688
    %v1721 = vsub.f32 %v1657, %v1689
    %v1722 = vsub.f32 %v1658, %v1690
    %v1723 = vsub.f32 %v1659, %v1691
    %v1724 = vsub.f32 %v1660, %v1692
    %v1725 = vsub.f32 %v1661, %v1693
    %v1726 = vsub.f32 %v1662, %v1694
    %v1727 = vsub.f32 %v1663, %v1695
    %v1728 = vsub.f32 %v1664, %v1696
    %v1729 = vsub.f32 %v1665, %v1697
    %v1730 = vsub.f32 %v1666, %v1698
    %v1731 = vsub.f32 %v1667, %v1699
    %v1732 = vsub.f32 %v1668, %v1700
    %v1733 = vsub.f32 %v1669, %v1701
    %v1734 = vsub.f32 %v1670, %v1702
    %v1735 = vsub.f32 %v1671, %v1703
    %v1736 = vsub.f32 %v1672, %v1704
    %v1737 = vsub.f32 %v1673, %v1705
    %v1738 = vsub.f32 %v1674, %v1706
    %v1739 = vsub.f32 %v1675, %v1707
    %v1740 = vsub.f32 %v1676, %v1708
    %v1741 = vsub.f32 %v1677, %v1709
    %v1742 = vsub.f32 %v1678, %v1710
    %v1743 = vsub.f32 %v1679, %v1711
    %v1744 = vsub.f32 %v1680, %v1712
    %v1745 = vsub.f32 %v1681, %v1713
    %v1746 = vsub.f32 %v1682, %v1714
    %v1747 = vsub.f32 %v1683, %v1715
    %v1748 = vsub.f32 %v1684, %v1716
    %v1749 = vsub.f32 %v1685, %v1717
    %v1750 = vsub.f32 %v1686, %v1718
    %v1751 = vsub.f32 %v1687, %v1719
    %v1752 = vmax.f32 %v1720, 0.0
    %v1753 = vmax.f32 %v1721, 0.0
    %v1754 = vmax.f32 %v1722, 0.0
    %v1755 = vmax.f32 %v1723, 0.0
    %v1756 = vmax.f32 %v1724, 0.0
    %v1757 = vmax.f32 %v1725, 0.0
    %v1758 = vmax.f32 %v1726, 0.0
    %v1759 = vmax.f32 %v1727, 0.0
    %v1760 = vmax.f32 %v1728, 0.0
    %v1761 = vmax.f32 %v1729, 0.0
    %v1762 = vmax.f32 %v1730, 0.0
    %v1763 = vmax.f32 %v1731, 0.0
    %v1764 = vmax.f32 %v1732, 0.0
    %v1765 = vmax.f32 %v1733, 0.0
    %v1766 = vmax.f32 %v1734, 0.0
    %v1767 = vmax.f32 %v1735, 0.0
    %v1768 = vmax.f32 %v1736, 0.0
    %v1769 = vmax.f32 %v1737, 0.0
    %v1770 = vmax.f32 %v1738, 0.0
    %v1771 = vmax.f32 %v1739, 0.0
    %v1772 = vmax.f32 %v1740, 0.0
    %v1773 = vmax.f32 %v1741, 0.0
    %v1774 = vmax.f32 %v1742, 0.0
    %v1775 = vmax.f32 %v1743, 0.0
    %v1776 = vmax.f32 %v1744, 0.0
    %v1777 = vmax.f32 %v1745, 0.0
    %v1778 = vmax.f32 %v1746, 0.0
    %v1779 = vmax.f32 %v1747, 0.0
    %v1780 = vmax.f32 %v1748, 0.0
    %v1781 = vmax.f32 %v1749, 0.0
    %v1782 = vmax.f32 %v1750, 0.0
    %v1783 = vmax.f32 %v1751, 0.0
    %v1784 = vsub.f32 %v1242, %v1496
    %v1785 = vsub.f32 %v1247, %v1497
    %v1786 = vsub.f32 %v1252, %v1498
    %v1787 = vsub.f32 %v1257, %v1499
    %v1788 = vsub.f32 %v1262, %v1500
    %v1789 = vsub.f32 %v1267, %v1501
    %v1790 = vsub.f32 %v1272, %v1502
    %v1791 = vsub.f32 %v1277, %v1503
    %v1792 = vsub.f32 %v1282, %v1504
    %v1793 = vsub.f32 %v1287, %v1505
    %v1794 = vsub.f32 %v1292, %v1506
    %v1795 = vsub.f32 %v1297, %v1507
    %v1796 = vsub.f32 %v1302, %v1508
    %v1797 = vsub.f32 %v1307, %v1509
    %v1798 = vsub.f32 %v1312, %v1510
    %v1799 = vsub.f32 %v1317, %v1511
    %v1800 = vsub.f32 %v1322, %v1512
    %v1801 = vsub.f32 %v1327, %v1513
    %v1802 = vsub.f32 %v1332, %v1514
    %v1803 = vsub.f32 %v1337, %v1515
    %v1804 = vsub.f32 %v1342, %v1516
    %v1805 = vsub.f32 %v1347, %v1517
    %v1806 = vsub.f32 %v1352, %v1518
    %v1807 = vsub.f32 %v1357, %v1519
    %v1808 = vsub.f32 %v1362, %v1520
    %v1809 = vsub.f32 %v1367, %v1521
    %v1810 = vsub.f32 %v1372, %v1522
    %v1811 = vsub.f32 %v1377, %v1523
    %v1812 = vsub.f32 %v1382, %v1524
    %v1813 = vsub.f32 %v1387, %v1525
    %v1814 = vsub.f32 %v1392, %v1526
    %v1815 = vsub.f32 %v1397, %v1527
    %v1816 = vadd.f32 %v1752, 1e-05
    %v1817 = vadd.f32 %v1753, 1e-05
    %v1818 = vadd.f32 %v1754, 1e-05
    %v1819 = vadd.f32 %v1755, 1e-05
    %v1820 = vadd.f32 %v1756, 1e-05
    %v1821 = vadd.f32 %v1757, 1e-05
    %v1822 = vadd.f32 %v1758, 1e-05
    %v1823 = vadd.f32 %v1759, 1e-05
    %v1824 = vadd.f32 %v1760, 1e-05
    %v1825 = vadd.f32 %v1761, 1e-05
    %v1826 = vadd.f32 %v1762, 1e-05
    %v1827 = vadd.f32 %v1763, 1e-05
    %v1828 = vadd.f32 %v1764, 1e-05
    %v1829 = vadd.f32 %v1765, 1e-05
    %v1830 = vadd.f32 %v1766, 1e-05
    %v1831 = vadd.f32 %v1767, 1e-05
    %v1832 = vadd.f32 %v1768, 1e-05
    %v1833 = vadd.f32 %v1769, 1e-05
    %v1834 = vadd.f32 %v1770, 1e-05
    %v1835 = vadd.f32 %v1771, 1e-05
    %v1836 = vadd.f32 %v1772, 1e-05
    %v1837 = vadd.f32 %v1773, 1e-05
    %v1838 = vadd.f32 %v1774, 1e-05
    %v1839 = vadd.f32 %v1775, 1e-05
    %v1840 = vadd.f32 %v1776, 1e-05
    %v1841 = vadd.f32 %v1777, 1e-05
    %v1842 = vadd.f32 %v1778, 1e-05
    %v1843 = vadd.f32 %v1779, 1e-05
    %v1844 = vadd.f32 %v1780, 1e-05
    %v1845 = vadd.f32 %v1781, 1e-05
    %v1846 = vadd.f32 %v1782, 1e-05
    %v1847 = vadd.f32 %v1783, 1e-05
    %v1848 = vrsqrt.pop %v1816
    %v1849 = vrsqrt.pop %v1817
    %v1850 = vrsqrt.pop %v1818
    %v1851 = vrsqrt.pop %v1819
    %v1852 = vrsqrt.pop %v1820
    %v1853 = vrsqrt.pop %v1821
    %v1854 = vrsqrt.pop %v1822
    %v1855 = vrsqrt.pop %v1823
    %v1856 = vrsqrt.pop %v1824
    %v1857 = vrsqrt.pop %v1825
    %v1858 = vrsqrt.pop %v1826
    %v1859 = vrsqrt.pop %v1827
    %v1860 = vrsqrt.pop %v1828
    %v1861 = vrsqrt.pop %v1829
    %v1862 = vrsqrt.pop %v1830
    %v1863 = vrsqrt.pop %v1831
    %v1864 = vrsqrt.pop %v1832
    %v1865 = vrsqrt.pop %v1833
    %v1866 = vrsqrt.pop %v1834
    %v1867 = vrsqrt.pop %v1835
    %v1868 = vrsqrt.pop %v1836
    %v1869 = vrsqrt.pop %v1837
    %v1870 = vrsqrt.pop %v1838
    %v1871 = vrsqrt.pop %v1839
    %v1872 = vrsqrt.pop %v1840
    %v1873 = vrsqrt.pop %v1841
    %v1874 = vrsqrt.pop %v1842
    %v1875 = vrsqrt.pop %v1843
    %v1876 = vrsqrt.pop %v1844
    %v1877 = vrsqrt.pop %v1845
    %v1878 = vrsqrt.pop %v1846
    %v1879 = vrsqrt.pop %v1847
    %v1880 = vmul.f32 %v1784, %v1848
    %v1881 = vmul.f32 %v1785, %v1849
    %v1882 = vmul.f32 %v1786, %v1850
    %v1883 = vmul.f32 %v1787, %v1851
    %v1884 = vmul.f32 %v1788, %v1852
    %v1885 = vmul.f32 %v1789, %v1853
    %v1886 = vmul.f32 %v1790, %v1854
    %v1887 = vmul.f32 %v1791, %v1855
    %v1888 = vmul.f32 %v1792, %v1856
    %v1889 = vmul.f32 %v1793, %v1857
    %v1890 = vmul.f32 %v1794, %v1858
    %v1891 = vmul.f32 %v1795, %v1859
    %v1892 = vmul.f32 %v1796, %v1860
    %v1893 = vmul.f32 %v1797, %v1861
    %v1894 = vmul.f32 %v1798, %v1862
    %v1895 = vmul.f32 %v1799, %v1863
    %v1896 = vmul.f32 %v1800, %v1864
    %v1897 = vmul.f32 %v1801, %v1865
    %v1898 = vmul.f32 %v1802, %v1866
    %v1899 = vmul.f32 %v1803, %v1867
    %v1900 = vmul.f32 %v1804, %v1868
    %v1901 = vmul.f32 %v1805, %v1869
    %v1902 = vmul.f32 %v1806, %v1870
    %v1903 = vmul.f32 %v1807, %v1871
    %v1904 = vmul.f32 %v1808, %v1872
    %v1905 = vmul.f32 %v1809, %v1873
    %v1906 = vmul.f32 %v1810, %v1874
    %v1907 = vmul.f32 %v1811, %v1875
    %v1908 = vmul.f32 %v1812, %v1876
    %v1909 = vmul.f32 %v1813, %v1877
    %v1910 = vmul.f32 %v1814, %v1878
    %v1911 = vmul.f32 %v1815, %v1879
    %v1913 = vlaneseq
    %v1914 = vshrl.u32 %v1913, 7
    %v1915 = vsub.s32 0, %v1914
    %v1916 = vrot.slane %v1071, %v1915
    %v1918 = vmul.f32 %v1880, %v1916
    %v1919 = vmul.f32 %v1881, %v1916
    %v1920 = vmul.f32 %v1882, %v1916
    %v1921 = vmul.f32 %v1883, %v1916
    %v1922 = vmul.f32 %v1884, %v1916
    %v1923 = vmul.f32 %v1885, %v1916
    %v1924 = vmul.f32 %v1886, %v1916
    %v1925 = vmul.f32 %v1887, %v1916
    %v1926 = vmul.f32 %v1888, %v1916
    %v1927 = vmul.f32 %v1889, %v1916
    %v1928 = vmul.f32 %v1890, %v1916
    %v1929 = vmul.f32 %v1891, %v1916
    %v1930 = vmul.f32 %v1892, %v1916
    %v1931 = vmul.f32 %v1893, %v1916
    %v1932 = vmul.f32 %v1894, %v1916
    %v1933 = vmul.f32 %v1895, %v1916
    %v1934 = vmul.f32 %v1896, %v1916
    %v1935 = vmul.f32 %v1897, %v1916
    %v1936 = vmul.f32 %v1898, %v1916
    %v1937 = vmul.f32 %v1899, %v1916
    %v1938 = vmul.f32 %v1900, %v1916
    %v1939 = vmul.f32 %v1901, %v1916
    %v1940 = vmul.f32 %v1902, %v1916
    %v1941 = vmul.f32 %v1903, %v1916
    %v1942 = vmul.f32 %v1904, %v1916
    %v1943 = vmul.f32 %v1905, %v1916
    %v1944 = vmul.f32 %v1906, %v1916
    %v1945 = vmul.f32 %v1907, %v1916
    %v1946 = vmul.f32 %v1908, %v1916
    %v1947 = vmul.f32 %v1909, %v1916
    %v1948 = vmul.f32 %v1910, %v1916
    %v1949 = vmul.f32 %v1911, %v1916
    %v1951 = vlaneseq
    %v1952 = vshrl.u32 %v1951, 7
    %v1953 = vsub.s32 0, %v1952
    %v1954 = vrot.slane %v1072, %v1953
    %v1956 = vadd.f32 %v1918, %v1954
    %v1957 = vadd.f32 %v1919, %v1954
    %v1958 = vadd.f32 %v1920, %v1954
    %v1959 = vadd.f32 %v1921, %v1954
    %v1960 = vadd.f32 %v1922, %v1954
    %v1961 = vadd.f32 %v1923, %v1954
    %v1962 = vadd.f32 %v1924, %v1954
    %v1963 = vadd.f32 %v1925, %v1954
    %v1964 = vadd.f32 %v1926, %v1954
    %v1965 = vadd.f32 %v1927, %v1954
    %v1966 = vadd.f32 %v1928, %v1954
    %v1967 = vadd.f32 %v1929, %v1954
    %v1968 = vadd.f32 %v1930, %v1954
    %v1969 = vadd.f32 %v1931, %v1954
    %v1970 = vadd.f32 %v1932, %v1954
    %v1971 = vadd.f32 %v1933, %v1954
    %v1972 = vadd.f32 %v1934, %v1954
    %v1973 = vadd.f32 %v1935, %v1954
    %v1974 = vadd.f32 %v1936, %v1954
    %v1975 = vadd.f32 %v1937, %v1954
    %v1976 = vadd.f32 %v1938, %v1954
    %v1977 = vadd.f32 %v1939, %v1954
    %v1978 = vadd.f32 %v1940, %v1954
    %v1979 = vadd.f32 %v1941, %v1954
    %v1980 = vadd.f32 %v1942, %v1954
    %v1981 = vadd.f32 %v1943, %v1954
    %v1982 = vadd.f32 %v1944, %v1954
    %v1983 = vadd.f32 %v1945, %v1954
    %v1984 = vadd.f32 %v1946, %v1954
    %v1985 = vadd.f32 %v1947, %v1954
    %v1986 = vadd.f32 %v1948, %v1954
    %v1987 = vadd.f32 %v1949, %v1954
    %v1988 = vmax.f32 %v1956, 0.0
    %v1989 = vmax.f32 %v1957, 0.0
    %v1990 = vmax.f32 %v1958, 0.0
    %v1991 = vmax.f32 %v1959, 0.0
    %v1992 = vmax.f32 %v1960, 0.0
    %v1993 = vmax.f32 %v1961, 0.0
    %v1994 = vmax.f32 %v1962, 0.0
    %v1995 = vmax.f32 %v1963, 0.0
    %v1996 = vmax.f32 %v1964, 0.0
    %v1997 = vmax.f32 %v1965, 0.0
    %v1998 = vmax.f32 %v1966, 0.0
    %v1999 = vmax.f32 %v1967, 0.0
    %v2000 = vmax.f32 %v1968, 0.0
    %v2001 = vmax.f32 %v1969, 0.0
    %v2002 = vmax.f32 %v1970, 0.0
    %v2003 = vmax.f32 %v1971, 0.0
    %v2004 = vmax.f32 %v1972, 0.0
    %v2005 = vmax.f32 %v1973, 0.0
    %v2006 = vmax.f32 %v1974, 0.0
    %v2007 = vmax.f32 %v1975, 0.0
    %v2008 = vmax.f32 %v1976, 0.0
    %v2009 = vmax.f32 %v1977, 0.0
    %v2010 = vmax.f32 %v1978, 0.0
    %v2011 = vmax.f32 %v1979, 0.0
    %v2012 = vmax.f32 %v1980, 0.0
    %v2013 = vmax.f32 %v1981, 0.0
    %v2014 = vmax.f32 %v1982, 0.0
    %v2015 = vmax.f32 %v1983, 0.0
    %v2016 = vmax.f32 %v1984, 0.0
    %v2017 = vmax.f32 %v1985, 0.0
    %v2018 = vmax.f32 %v1986, 0.0
    %v2019 = vmax.f32 %v1987, 0.0
    %v2020 = vld [vmem:[%s10] sm:$0xff]
    %v2021 = vld [vmem:[%s10 + $0x8] sm:$0xff]
    %v2022 = vld [vmem:[%s10 + $0x10] sm:$0xff]
    %v2023 = vld [vmem:[%s10 + $0x18] sm:$0xff]
    %v2024 = vld [vmem:[%s11] sm:$0x1]
    %v2025 = vld [vmem:[%s12] sm:$0x1]
    %v2026 = vld [vmem:[%s13] sm:$0x1]
    %v2028 = vlaneseq
    %v2029 = vshrl.u32 %v2028, 7
    %v2030 = vsub.s32 0, %v2029
    %v2031 = vrot.slane %v2024, %v2030
    %v2034 = vsel %vm444, %v1988, 0
    %v2037 = vsel %vm444, %v1989, 0
    %v2040 = vsel %vm444, %v1990, 0
    %v2043 = vsel %vm444, %v1991, 0
    %v2046 = vsel %vm444, %v1992, 0
    %v2049 = vsel %vm444, %v1993, 0
    %v2052 = vsel %vm444, %v1994, 0
    %v2055 = vsel %vm444, %v1995, 0
    %v2058 = vsel %vm444, %v1996, 0
    %v2061 = vsel %vm444, %v1997, 0
    %v2064 = vsel %vm444, %v1998, 0
    %v2067 = vsel %vm444, %v1999, 0
    %v2070 = vsel %vm444, %v2000, 0
    %v2073 = vsel %vm444, %v2001, 0
    %v2076 = vsel %vm444, %v2002, 0
    %v2079 = vsel %vm444, %v2003, 0
    %v2082 = vsel %vm444, %v2004, 0
    %v2085 = vsel %vm444, %v2005, 0
    %v2088 = vsel %vm444, %v2006, 0
    %v2091 = vsel %vm444, %v2007, 0
    %v2094 = vsel %vm444, %v2008, 0
    %v2097 = vsel %vm444, %v2009, 0
    %v2100 = vsel %vm444, %v2010, 0
    %v2103 = vsel %vm444, %v2011, 0
    %v2106 = vsel %vm444, %v2012, 0
    %v2109 = vsel %vm444, %v2013, 0
    %v2112 = vsel %vm444, %v2014, 0
    %v2115 = vsel %vm444, %v2015, 0
    %v2118 = vsel %vm444, %v2016, 0
    %v2121 = vsel %vm444, %v2017, 0
    %v2124 = vsel %vm444, %v2018, 0
    %v2127 = vsel %vm444, %v2019, 0
    %2129 = vmatprep.subr.mxu0 0.0
    %2130 = vmatpush1.msra.mxu0 %v2020
    %2131 = vmatprep.subr.mxu0 0.0
    %2132 = vmatpush1.msra.mxu0 %v2021
    %2133 = vmatprep.subr.mxu0 0.0
    %2134 = vmatpush1.msra.mxu0 %v2022
    %2135 = vmatprep.subr.mxu0 0.0
    %2136 = vmatpush1.msra.mxu0 %v2023
    %2137 = vmatprep.subr.mxu0 0.0
    %2138 = vmatpush1.msra.mxu0 0.0
    %2139 = vmatprep.subr.mxu0 0.0
    %2140 = vmatpush1.msra.mxu0 0.0
    %2141 = vmatprep.subr.mxu0 0.0
    %2142 = vmatpush1.msra.mxu0 0.0
    %2143 = vmatprep.subr.mxu0 0.0
    %2144 = vmatpush1.msra.mxu0 0.0
    %2145 = vmatprep.subr.mxu0 0.0
    %2146 = vmatpush1.msra.mxu0 0.0
    %2147 = vmatprep.subr.mxu0 0.0
    %2148 = vmatpush1.msra.mxu0 0.0
    %2149 = vmatprep.subr.mxu0 0.0
    %2150 = vmatpush1.msra.mxu0 0.0
    %2151 = vmatprep.subr.mxu0 0.0
    %2152 = vmatpush1.msra.mxu0 0.0
    %2153 = vmatprep.subr.mxu0 0.0
    %2154 = vmatpush1.msra.mxu0 0.0
    %2155 = vmatprep.subr.mxu0 0.0
    %2156 = vmatpush1.msra.mxu0 0.0
    %2157 = vmatprep.subr.mxu0 0.0
    %2158 = vmatpush1.msra.mxu0 0.0
    %2159 = vmatprep.subr.mxu0 0.0
    %2160 = vmatpush1.msra.mxu0 0.0
    %2161 = vmatprep.subr.mxu0 0.0
    %2162 = vmatpush1.msra.mxu0 0.0
    %2163 = vmatprep.subr.mxu0 0.0
    %2164 = vmatpush1.msra.mxu0 0.0
    %2165 = vmatprep.subr.mxu0 0.0
    %2166 = vmatpush1.msra.mxu0 0.0
    %2167 = vmatprep.subr.mxu0 0.0
    %2168 = vmatpush1.msra.mxu0 0.0
    %2169 = vmatprep.subr.mxu0 0.0
    %2170 = vmatpush1.msra.mxu0 0.0
    %2171 = vmatprep.subr.mxu0 0.0
    %2172 = vmatpush1.msra.mxu0 0.0
    %2173 = vmatprep.subr.mxu0 0.0
    %2174 = vmatpush1.msra.mxu0 0.0
    %2175 = vmatprep.subr.mxu0 0.0
    %2176 = vmatpush1.msra.mxu0 0.0
    %2177 = vmatprep.subr.mxu0 0.0
    %2178 = vmatpush1.msra.mxu0 0.0
    %2179 = vmatprep.subr.mxu0 0.0
    %2180 = vmatpush1.msra.mxu0 0.0
    %2181 = vmatprep.subr.mxu0 0.0
    %2182 = vmatpush1.msra.mxu0 0.0
    %2183 = vmatprep.subr.mxu0 0.0
    %2184 = vmatpush1.msra.mxu0 0.0
    %2185 = vmatprep.subr.mxu0 0.0
    %2186 = vmatpush1.msra.mxu0 0.0
    %2187 = vmatprep.subr.mxu0 0.0
    %2188 = vmatpush1.msra.mxu0 0.0
    %2189 = vmatprep.subr.mxu0 0.0
    %2190 = vmatpush1.msra.mxu0 0.0
    %2191 = vmatprep.subr.mxu0 0.0
    %2192 = vmatpush1.msra.mxu0 0.0
    %2193 = vmatprep.mubr.f32.mxu0 0.0
    %2194 = vmatmul.mubr.f32.gmra.mrb[0].mxu0 %v2034
    %v2195 = vpop.f32.mrb[0].mxu0
    %v2196 = vadd.f32 %v2031, %v2195
    %v2197 = vpop.f32.mrb[0].mxu0
    %2198 = vmatprep.mubr.f32.mxu0 0.0
    %2199 = vmatmul.mubr.f32.gmra.mrb[0].mxu0 %v2037
    %v2200 = vpop.f32.mrb[0].mxu0
    %v2201 = vadd.f32 %v2031, %v2200
    %v2202 = vpop.f32.mrb[0].mxu0
    %2203 = vmatprep.mubr.f32.mxu0 0.0
    %2204 = vmatmul.mubr.f32.gmra.mrb[0].mxu0 %v2040
    %v2205 = vpop.f32.mrb[0].mxu0
    %v2206 = vadd.f32 %v2031, %v2205
    %v2207 = vpop.f32.mrb[0].mxu0
    %2208 = vmatprep.mubr.f32.mxu0 0.0
    %2209 = vmatmul.mubr.f32.gmra.mrb[0].mxu0 %v2043
    %v2210 = vpop.f32.mrb[0].mxu0
    %v2211 = vadd.f32 %v2031, %v2210
    %v2212 = vpop.f32.mrb[0].mxu0
    %2213 = vmatprep.mubr.f32.mxu0 0.0
    %2214 = vmatmul.mubr.f32.gmra.mrb[0].mxu0 %v2046
    %v2215 = vpop.f32.mrb[0].mxu0
    %v2216 = vadd.f32 %v2031, %v2215
    %v2217 = vpop.f32.mrb[0].mxu0
    %2218 = vmatprep.mubr.f32.mxu0 0.0
    %2219 = vmatmul.mubr.f32.gmra.mrb[0].mxu0 %v2049
    %v2220 = vpop.f32.mrb[0].mxu0
    %v2221 = vadd.f32 %v2031, %v2220
    %v2222 = vpop.f32.mrb[0].mxu0
    %2223 = vmatprep.mubr.f32.mxu0 0.0
    %2224 = vmatmul.mubr.f32.gmra.mrb[0].mxu0 %v2052
    %v2225 = vpop.f32.mrb[0].mxu0
    %v2226 = vadd.f32 %v2031, %v2225
    %v2227 = vpop.f32.mrb[0].mxu0
    %2228 = vmatprep.mubr.f32.mxu0 0.0
    %2229 = vmatmul.mubr.f32.gmra.mrb[0].mxu0 %v2055
    %v2230 = vpop.f32.mrb[0].mxu0
    %v2231 = vadd.f32 %v2031, %v2230
    %v2232 = vpop.f32.mrb[0].mxu0
    %2233 = vmatprep.mubr.f32.mxu0 0.0
    %2234 = vmatmul.mubr.f32.gmra.mrb[0].mxu0 %v2058
    %v2235 = vpop.f32.mrb[0].mxu0
    %v2236 = vadd.f32 %v2031, %v2235
    %v2237 = vpop.f32.mrb[0].mxu0
    %2238 = vmatprep.mubr.f32.mxu0 0.0
    %2239 = vmatmul.mubr.f32.gmra.mrb[0].mxu0 %v2061
    %v2240 = vpop.f32.mrb[0].mxu0
    %v2241 = vadd.f32 %v2031, %v2240
    %v2242 = vpop.f32.mrb[0].mxu0
    %2243 = vmatprep.mubr.f32.mxu0 0.0
    %2244 = vmatmul.mubr.f32.gmra.mrb[0].mxu0 %v2064
    %v2245 = vpop.f32.mrb[0].mxu0
    %v2246 = vadd.f32 %v2031, %v2245
    %v2247 = vpop.f32.mrb[0].mxu0
    %2248 = vmatprep.mubr.f32.mxu0 0.0
    %2249 = vmatmul.mubr.f32.gmra.mrb[0].mxu0 %v2067
    %v2250 = vpop.f32.mrb[0].mxu0
    %v2251 = vadd.f32 %v2031, %v2250
    %v2252 = vpop.f32.mrb[0].mxu0
    %2253 = vmatprep.mubr.f32.mxu0 0.0
    %2254 = vmatmul.mubr.f32.gmra.mrb[0].mxu0 %v2070
    %v2255 = vpop.f32.mrb[0].mxu0
    %v2256 = vadd.f32 %v2031, %v2255
    %v2257 = vpop.f32.mrb[0].mxu0
    %2258 = vmatprep.mubr.f32.mxu0 0.0
    %2259 = vmatmul.mubr.f32.gmra.mrb[0].mxu0 %v2073
    %v2260 = vpop.f32.mrb[0].mxu0
    %v2261 = vadd.f32 %v2031, %v2260
    %v2262 = vpop.f32.mrb[0].mxu0
    %2263 = vmatprep.mubr.f32.mxu0 0.0
    %2264 = vmatmul.mubr.f32.gmra.mrb[0].mxu0 %v2076
    %v2265 = vpop.f32.mrb[0].mxu0
    %v2266 = vadd.f32 %v2031, %v2265
    %v2267 = vpop.f32.mrb[0].mxu0
    %2268 = vmatprep.mubr.f32.mxu0 0.0
    %2269 = vmatmul.mubr.f32.gmra.mrb[0].mxu0 %v2079
    %v2270 = vpop.f32.mrb[0].mxu0
    %v2271 = vadd.f32 %v2031, %v2270
    %v2272 = vpop.f32.mrb[0].mxu0
    %2273 = vmatprep.mubr.f32.mxu0 0.0
    %2274 = vmatmul.mubr.f32.gmra.mrb[0].mxu0 %v2082
    %v2275 = vpop.f32.mrb[0].mxu0
    %v2276 = vadd.f32 %v2031, %v2275
    %v2277 = vpop.f32.mrb[0].mxu0
    %2278 = vmatprep.mubr.f32.mxu0 0.0
    %2279 = vmatmul.mubr.f32.gmra.mrb[0].mxu0 %v2085
    %v2280 = vpop.f32.mrb[0].mxu0
    %v2281 = vadd.f32 %v2031, %v2280
    %v2282 = vpop.f32.mrb[0].mxu0
    %2283 = vmatprep.mubr.f32.mxu0 0.0
    %2284 = vmatmul.mubr.f32.gmra.mrb[0].mxu0 %v2088
    %v2285 = vpop.f32.mrb[0].mxu0
    %v2286 = vadd.f32 %v2031, %v2285
    %v2287 = vpop.f32.mrb[0].mxu0
    %2288 = vmatprep.mubr.f32.mxu0 0.0
    %2289 = vmatmul.mubr.f32.gmra.mrb[0].mxu0 %v2091
    %v2290 = vpop.f32.mrb[0].mxu0
    %v2291 = vadd.f32 %v2031, %v2290
    %v2292 = vpop.f32.mrb[0].mxu0
    %2293 = vmatprep.mubr.f32.mxu0 0.0
    %2294 = vmatmul.mubr.f32.gmra.mrb[0].mxu0 %v2094
    %v2295 = vpop.f32.mrb[0].mxu0
    %v2296 = vadd.f32 %v2031, %v2295
    %v2297 = vpop.f32.mrb[0].mxu0
    %2298 = vmatprep.mubr.f32.mxu0 0.0
    %2299 = vmatmul.mubr.f32.gmra.mrb[0].mxu0 %v2097
    %v2300 = vpop.f32.mrb[0].mxu0
    %v2301 = vadd.f32 %v2031, %v2300
    %v2302 = vpop.f32.mrb[0].mxu0
    %2303 = vmatprep.mubr.f32.mxu0 0.0
    %2304 = vmatmul.mubr.f32.gmra.mrb[0].mxu0 %v2100
    %v2305 = vpop.f32.mrb[0].mxu0
    %v2306 = vadd.f32 %v2031, %v2305
    %v2307 = vpop.f32.mrb[0].mxu0
    %2308 = vmatprep.mubr.f32.mxu0 0.0
    %2309 = vmatmul.mubr.f32.gmra.mrb[0].mxu0 %v2103
    %v2310 = vpop.f32.mrb[0].mxu0
    %v2311 = vadd.f32 %v2031, %v2310
    %v2312 = vpop.f32.mrb[0].mxu0
    %2313 = vmatprep.mubr.f32.mxu0 0.0
    %2314 = vmatmul.mubr.f32.gmra.mrb[0].mxu0 %v2106
    %v2315 = vpop.f32.mrb[0].mxu0
    %v2316 = vadd.f32 %v2031, %v2315
    %v2317 = vpop.f32.mrb[0].mxu0
    %2318 = vmatprep.mubr.f32.mxu0 0.0
    %2319 = vmatmul.mubr.f32.gmra.mrb[0].mxu0 %v2109
    %v2320 = vpop.f32.mrb[0].mxu0
    %v2321 = vadd.f32 %v2031, %v2320
    %v2322 = vpop.f32.mrb[0].mxu0
    %2323 = vmatprep.mubr.f32.mxu0 0.0
    %2324 = vmatmul.mubr.f32.gmra.mrb[0].mxu0 %v2112
    %v2325 = vpop.f32.mrb[0].mxu0
    %v2326 = vadd.f32 %v2031, %v2325
    %v2327 = vpop.f32.mrb[0].mxu0
    %2328 = vmatprep.mubr.f32.mxu0 0.0
    %2329 = vmatmul.mubr.f32.gmra.mrb[0].mxu0 %v2115
    %v2330 = vpop.f32.mrb[0].mxu0
    %v2331 = vadd.f32 %v2031, %v2330
    %v2332 = vpop.f32.mrb[0].mxu0
    %2333 = vmatprep.mubr.f32.mxu0 0.0
    %2334 = vmatmul.mubr.f32.gmra.mrb[0].mxu0 %v2118
    %v2335 = vpop.f32.mrb[0].mxu0
    %v2336 = vadd.f32 %v2031, %v2335
    %v2337 = vpop.f32.mrb[0].mxu0
    %2338 = vmatprep.mubr.f32.mxu0 0.0
    %2339 = vmatmul.mubr.f32.gmra.mrb[0].mxu0 %v2121
    %v2340 = vpop.f32.mrb[0].mxu0
    %v2341 = vadd.f32 %v2031, %v2340
    %v2342 = vpop.f32.mrb[0].mxu0
    %2343 = vmatprep.mubr.f32.mxu0 0.0
    %2344 = vmatmul.mubr.f32.gmra.mrb[0].mxu0 %v2124
    %v2345 = vpop.f32.mrb[0].mxu0
    %v2346 = vadd.f32 %v2031, %v2345
    %v2347 = vpop.f32.mrb[0].mxu0
    %2348 = vmatprep.mubr.f32.mxu0 0.0
    %2349 = vmatmul.mubr.f32.gmra.mrb[0].mxu0 %v2127
    %v2350 = vpop.f32.mrb[0].mxu0
    %v2351 = vadd.f32 %v2031, %v2350
    %v2352 = vpop.f32.mrb[0].mxu0
    %2353 = vdwg.mxu0
    %vm2354 = vcmask 130048
    %v2355 = vsel %vm2354, %v2196, 0.0
    %2356 = vadd.xlane.f32.xlu0 %v2355
    %v2357 = vpop.xlane.xlu0 %2356
    %v2358 = vsel %vm2354, %v2201, 0.0
    %2359 = vadd.xlane.f32.xlu0 %v2358
    %v2360 = vpop.xlane.xlu0 %2359
    %v2361 = vsel %vm2354, %v2206, 0.0
    %2362 = vadd.xlane.f32.xlu0 %v2361
    %v2363 = vpop.xlane.xlu0 %2362
    %v2364 = vsel %vm2354, %v2211, 0.0
    %2365 = vadd.xlane.f32.xlu0 %v2364
    %v2366 = vpop.xlane.xlu0 %2365
    %v2367 = vsel %vm2354, %v2216, 0.0
    %2368 = vadd.xlane.f32.xlu0 %v2367
    %v2369 = vpop.xlane.xlu0 %2368
    %v2370 = vsel %vm2354, %v2221, 0.0
    %2371 = vadd.xlane.f32.xlu0 %v2370
    %v2372 = vpop.xlane.xlu0 %2371
    %v2373 = vsel %vm2354, %v2226, 0.0
    %2374 = vadd.xlane.f32.xlu0 %v2373
    %v2375 = vpop.xlane.xlu0 %2374
    %v2376 = vsel %vm2354, %v2231, 0.0
    %2377 = vadd.xlane.f32.xlu0 %v2376
    %v2378 = vpop.xlane.xlu0 %2377
    %v2379 = vsel %vm2354, %v2236, 0.0
    %2380 = vadd.xlane.f32.xlu0 %v2379
    %v2381 = vpop.xlane.xlu0 %2380
    %v2382 = vsel %vm2354, %v2241, 0.0
    %2383 = vadd.xlane.f32.xlu0 %v2382
    %v2384 = vpop.xlane.xlu0 %2383
    %v2385 = vsel %vm2354, %v2246, 0.0
    %2386 = vadd.xlane.f32.xlu0 %v2385
    %v2387 = vpop.xlane.xlu0 %2386
    %v2388 = vsel %vm2354, %v2251, 0.0
    %2389 = vadd.xlane.f32.xlu0 %v2388
    %v2390 = vpop.xlane.xlu0 %2389
    %v2391 = vsel %vm2354, %v2256, 0.0
    %2392 = vadd.xlane.f32.xlu0 %v2391
    %v2393 = vpop.xlane.xlu0 %2392
    %v2394 = vsel %vm2354, %v2261, 0.0
    %2395 = vadd.xlane.f32.xlu0 %v2394
    %v2396 = vpop.xlane.xlu0 %2395
    %v2397 = vsel %vm2354, %v2266, 0.0
    %2398 = vadd.xlane.f32.xlu0 %v2397
    %v2399 = vpop.xlane.xlu0 %2398
    %v2400 = vsel %vm2354, %v2271, 0.0
    %2401 = vadd.xlane.f32.xlu0 %v2400
    %v2402 = vpop.xlane.xlu0 %2401
    %v2403 = vsel %vm2354, %v2276, 0.0
    %2404 = vadd.xlane.f32.xlu0 %v2403
    %v2405 = vpop.xlane.xlu0 %2404
    %v2406 = vsel %vm2354, %v2281, 0.0
    %2407 = vadd.xlane.f32.xlu0 %v2406
    %v2408 = vpop.xlane.xlu0 %2407
    %v2409 = vsel %vm2354, %v2286, 0.0
    %2410 = vadd.xlane.f32.xlu0 %v2409
    %v2411 = vpop.xlane.xlu0 %2410
    %v2412 = vsel %vm2354, %v2291, 0.0
    %2413 = vadd.xlane.f32.xlu0 %v2412
    %v2414 = vpop.xlane.xlu0 %2413
    %v2415 = vsel %vm2354, %v2296, 0.0
    %2416 = vadd.xlane.f32.xlu0 %v2415
    %v2417 = vpop.xlane.xlu0 %2416
    %v2418 = vsel %vm2354, %v2301, 0.0
    %2419 = vadd.xlane.f32.xlu0 %v2418
    %v2420 = vpop.xlane.xlu0 %2419
    %v2421 = vsel %vm2354, %v2306, 0.0
    %2422 = vadd.xlane.f32.xlu0 %v2421
    %v2423 = vpop.xlane.xlu0 %2422
    %v2424 = vsel %vm2354, %v2311, 0.0
    %2425 = vadd.xlane.f32.xlu0 %v2424
    %v2426 = vpop.xlane.xlu0 %2425
    %v2427 = vsel %vm2354, %v2316, 0.0
    %2428 = vadd.xlane.f32.xlu0 %v2427
    %v2429 = vpop.xlane.xlu0 %2428
    %v2430 = vsel %vm2354, %v2321, 0.0
    %2431 = vadd.xlane.f32.xlu0 %v2430
    %v2432 = vpop.xlane.xlu0 %2431
    %v2433 = vsel %vm2354, %v2326, 0.0
    %2434 = vadd.xlane.f32.xlu0 %v2433
    %v2435 = vpop.xlane.xlu0 %2434
    %v2436 = vsel %vm2354, %v2331, 0.0
    %2437 = vadd.xlane.f32.xlu0 %v2436
    %v2438 = vpop.xlane.xlu0 %2437
    %v2439 = vsel %vm2354, %v2336, 0.0
    %2440 = vadd.xlane.f32.xlu0 %v2439
    %v2441 = vpop.xlane.xlu0 %2440
    %v2442 = vsel %vm2354, %v2341, 0.0
    %2443 = vadd.xlane.f32.xlu0 %v2442
    %v2444 = vpop.xlane.xlu0 %2443
    %v2445 = vsel %vm2354, %v2346, 0.0
    %2446 = vadd.xlane.f32.xlu0 %v2445
    %v2447 = vpop.xlane.xlu0 %2446
    %v2448 = vsel %vm2354, %v2351, 0.0
    %2449 = vadd.xlane.f32.xlu0 %v2448
    %v2450 = vpop.xlane.xlu0 %2449
    %v2451 = vrcp.pop 16.0
    %v2452 = vmul.f32 %v2357, %v2451
    %v2453 = vmul.f32 %v2360, %v2451
    %v2454 = vmul.f32 %v2363, %v2451
    %v2455 = vmul.f32 %v2366, %v2451
    %v2456 = vmul.f32 %v2369, %v2451
    %v2457 = vmul.f32 %v2372, %v2451
    %v2458 = vmul.f32 %v2375, %v2451
    %v2459 = vmul.f32 %v2378, %v2451
    %v2460 = vmul.f32 %v2381, %v2451
    %v2461 = vmul.f32 %v2384, %v2451
    %v2462 = vmul.f32 %v2387, %v2451
    %v2463 = vmul.f32 %v2390, %v2451
    %v2464 = vmul.f32 %v2393, %v2451
    %v2465 = vmul.f32 %v2396, %v2451
    %v2466 = vmul.f32 %v2399, %v2451
    %v2467 = vmul.f32 %v2402, %v2451
    %v2468 = vmul.f32 %v2405, %v2451
    %v2469 = vmul.f32 %v2408, %v2451
    %v2470 = vmul.f32 %v2411, %v2451
    %v2471 = vmul.f32 %v2414, %v2451
    %v2472 = vmul.f32 %v2417, %v2451
    %v2473 = vmul.f32 %v2420, %v2451
    %v2474 = vmul.f32 %v2423, %v2451
    %v2475 = vmul.f32 %v2426, %v2451
    %v2476 = vmul.f32 %v2429, %v2451
    %v2477 = vmul.f32 %v2432, %v2451
    %v2478 = vmul.f32 %v2435, %v2451
    %v2479 = vmul.f32 %v2438, %v2451
    %v2480 = vmul.f32 %v2441, %v2451
    %v2481 = vmul.f32 %v2444, %v2451
    %v2482 = vmul.f32 %v2447, %v2451
    %v2483 = vmul.f32 %v2450, %v2451
    %v2484 = vmul.f32 %v2196, %v2196
    %v2485 = vmul.f32 %v2201, %v2201
    %v2486 = vmul.f32 %v2206, %v2206
    %v2487 = vmul.f32 %v2211, %v2211
    %v2488 = vmul.f32 %v2216, %v2216
    %v2489 = vmul.f32 %v2221, %v2221
    %v2490 = vmul.f32 %v2226, %v2226
    %v2491 = vmul.f32 %v2231, %v2231
    %v2492 = vmul.f32 %v2236, %v2236
    %v2493 = vmul.f32 %v2241, %v2241
    %v2494 = vmul.f32 %v2246, %v2246
    %v2495 = vmul.f32 %v2251, %v2251
    %v2496 = vmul.f32 %v2256, %v2256
    %v2497 = vmul.f32 %v2261, %v2261
    %v2498 = vmul.f32 %v2266, %v2266
    %v2499 = vmul.f32 %v2271, %v2271
    %v2500 = vmul.f32 %v2276, %v2276
    %v2501 = vmul.f32 %v2281, %v2281
    %v2502 = vmul.f32 %v2286, %v2286
    %v2503 = vmul.f32 %v2291, %v2291
    %v2504 = vmul.f32 %v2296, %v2296
    %v2505 = vmul.f32 %v2301, %v2301
    %v2506 = vmul.f32 %v2306, %v2306
    %v2507 = vmul.f32 %v2311, %v2311
    %v2508 = vmul.f32 %v2316, %v2316
    %v2509 = vmul.f32 %v2321, %v2321
    %v2510 = vmul.f32 %v2326, %v2326
    %v2511 = vmul.f32 %v2331, %v2331
    %v2512 = vmul.f32 %v2336, %v2336
    %v2513 = vmul.f32 %v2341, %v2341
    %v2514 = vmul.f32 %v2346, %v2346
    %v2515 = vmul.f32 %v2351, %v2351
    %v2516 = vsel %vm2354, %v2484, 0.0
    %2517 = vadd.xlane.f32.xlu0 %v2516
    %v2518 = vpop.xlane.xlu0 %2517
    %v2519 = vsel %vm2354, %v2485, 0.0
    %2520 = vadd.xlane.f32.xlu0 %v2519
    %v2521 = vpop.xlane.xlu0 %2520
    %v2522 = vsel %vm2354, %v2486, 0.0
    %2523 = vadd.xlane.f32.xlu0 %v2522
    %v2524 = vpop.xlane.xlu0 %2523
    %v2525 = vsel %vm2354, %v2487, 0.0
    %2526 = vadd.xlane.f32.xlu0 %v2525
    %v2527 = vpop.xlane.xlu0 %2526
    %v2528 = vsel %vm2354, %v2488, 0.0
    %2529 = vadd.xlane.f32.xlu0 %v2528
    %v2530 = vpop.xlane.xlu0 %2529
    %v2531 = vsel %vm2354, %v2489, 0.0
    %2532 = vadd.xlane.f32.xlu0 %v2531
    %v2533 = vpop.xlane.xlu0 %2532
    %v2534 = vsel %vm2354, %v2490, 0.0
    %2535 = vadd.xlane.f32.xlu0 %v2534
    %v2536 = vpop.xlane.xlu0 %2535
    %v2537 = vsel %vm2354, %v2491, 0.0
    %2538 = vadd.xlane.f32.xlu0 %v2537
    %v2539 = vpop.xlane.xlu0 %2538
    %v2540 = vsel %vm2354, %v2492, 0.0
    %2541 = vadd.xlane.f32.xlu0 %v2540
    %v2542 = vpop.xlane.xlu0 %2541
    %v2543 = vsel %vm2354, %v2493, 0.0
    %2544 = vadd.xlane.f32.xlu0 %v2543
    %v2545 = vpop.xlane.xlu0 %2544
    %v2546 = vsel %vm2354, %v2494, 0.0
    %2547 = vadd.xlane.f32.xlu0 %v2546
    %v2548 = vpop.xlane.xlu0 %2547
    %v2549 = vsel %vm2354, %v2495, 0.0
    %2550 = vadd.xlane.f32.xlu0 %v2549
    %v2551 = vpop.xlane.xlu0 %2550
    %v2552 = vsel %vm2354, %v2496, 0.0
    %2553 = vadd.xlane.f32.xlu0 %v2552
    %v2554 = vpop.xlane.xlu0 %2553
    %v2555 = vsel %vm2354, %v2497, 0.0
    %2556 = vadd.xlane.f32.xlu0 %v2555
    %v2557 = vpop.xlane.xlu0 %2556
    %v2558 = vsel %vm2354, %v2498, 0.0
    %2559 = vadd.xlane.f32.xlu0 %v2558
    %v2560 = vpop.xlane.xlu0 %2559
    %v2561 = vsel %vm2354, %v2499, 0.0
    %2562 = vadd.xlane.f32.xlu0 %v2561
    %v2563 = vpop.xlane.xlu0 %2562
    %v2564 = vsel %vm2354, %v2500, 0.0
    %2565 = vadd.xlane.f32.xlu0 %v2564
    %v2566 = vpop.xlane.xlu0 %2565
    %v2567 = vsel %vm2354, %v2501, 0.0
    %2568 = vadd.xlane.f32.xlu0 %v2567
    %v2569 = vpop.xlane.xlu0 %2568
    %v2570 = vsel %vm2354, %v2502, 0.0
    %2571 = vadd.xlane.f32.xlu0 %v2570
    %v2572 = vpop.xlane.xlu0 %2571
    %v2573 = vsel %vm2354, %v2503, 0.0
    %2574 = vadd.xlane.f32.xlu0 %v2573
    %v2575 = vpop.xlane.xlu0 %2574
    %v2576 = vsel %vm2354, %v2504, 0.0
    %2577 = vadd.xlane.f32.xlu0 %v2576
    %v2578 = vpop.xlane.xlu0 %2577
    %v2579 = vsel %vm2354, %v2505, 0.0
    %2580 = vadd.xlane.f32.xlu0 %v2579
    %v2581 = vpop.xlane.xlu0 %2580
    %v2582 = vsel %vm2354, %v2506, 0.0
    %2583 = vadd.xlane.f32.xlu0 %v2582
    %v2584 = vpop.xlane.xlu0 %2583
    %v2585 = vsel %vm2354, %v2507, 0.0
    %2586 = vadd.xlane.f32.xlu0 %v2585
    %v2587 = vpop.xlane.xlu0 %2586
    %v2588 = vsel %vm2354, %v2508, 0.0
    %2589 = vadd.xlane.f32.xlu0 %v2588
    %v2590 = vpop.xlane.xlu0 %2589
    %v2591 = vsel %vm2354, %v2509, 0.0
    %2592 = vadd.xlane.f32.xlu0 %v2591
    %v2593 = vpop.xlane.xlu0 %2592
    %v2594 = vsel %vm2354, %v2510, 0.0
    %2595 = vadd.xlane.f32.xlu0 %v2594
    %v2596 = vpop.xlane.xlu0 %2595
    %v2597 = vsel %vm2354, %v2511, 0.0
    %2598 = vadd.xlane.f32.xlu0 %v2597
    %v2599 = vpop.xlane.xlu0 %2598
    %v2600 = vsel %vm2354, %v2512, 0.0
    %2601 = vadd.xlane.f32.xlu0 %v2600
    %v2602 = vpop.xlane.xlu0 %2601
    %v2603 = vsel %vm2354, %v2513, 0.0
    %2604 = vadd.xlane.f32.xlu0 %v2603
    %v2605 = vpop.xlane.xlu0 %2604
    %v2606 = vsel %vm2354, %v2514, 0.0
    %2607 = vadd.xlane.f32.xlu0 %v2606
    %v2608 = vpop.xlane.xlu0 %2607
    %v2609 = vsel %vm2354, %v2515, 0.0
    %2610 = vadd.xlane.f32.xlu0 %v2609
    %v2611 = vpop.xlane.xlu0 %2610
    %v2612 = vmul.f32 %v2518, %v2451
    %v2613 = vmul.f32 %v2521, %v2451
    %v2614 = vmul.f32 %v2524, %v2451
    %v2615 = vmul.f32 %v2527, %v2451
    %v2616 = vmul.f32 %v2530, %v2451
    %v2617 = vmul.f32 %v2533, %v2451
    %v2618 = vmul.f32 %v2536, %v2451
    %v2619 = vmul.f32 %v2539, %v2451
    %v2620 = vmul.f32 %v2542, %v2451
    %v2621 = vmul.f32 %v2545, %v2451
    %v2622 = vmul.f32 %v2548, %v2451
    %v2623 = vmul.f32 %v2551, %v2451
    %v2624 = vmul.f32 %v2554, %v2451
    %v2625 = vmul.f32 %v2557, %v2451
    %v2626 = vmul.f32 %v2560, %v2451
    %v2627 = vmul.f32 %v2563, %v2451
    %v2628 = vmul.f32 %v2566, %v2451
    %v2629 = vmul.f32 %v2569, %v2451
    %v2630 = vmul.f32 %v2572, %v2451
    %v2631 = vmul.f32 %v2575, %v2451
    %v2632 = vmul.f32 %v2578, %v2451
    %v2633 = vmul.f32 %v2581, %v2451
    %v2634 = vmul.f32 %v2584, %v2451
    %v2635 = vmul.f32 %v2587, %v2451
    %v2636 = vmul.f32 %v2590, %v2451
    %v2637 = vmul.f32 %v2593, %v2451
    %v2638 = vmul.f32 %v2596, %v2451
    %v2639 = vmul.f32 %v2599, %v2451
    %v2640 = vmul.f32 %v2602, %v2451
    %v2641 = vmul.f32 %v2605, %v2451
    %v2642 = vmul.f32 %v2608, %v2451
    %v2643 = vmul.f32 %v2611, %v2451
    %v2644 = vmul.f32 %v2452, %v2452
    %v2645 = vmul.f32 %v2453, %v2453
    %v2646 = vmul.f32 %v2454, %v2454
    %v2647 = vmul.f32 %v2455, %v2455
    %v2648 = vmul.f32 %v2456, %v2456
    %v2649 = vmul.f32 %v2457, %v2457
    %v2650 = vmul.f32 %v2458, %v2458
    %v2651 = vmul.f32 %v2459, %v2459
    %v2652 = vmul.f32 %v2460, %v2460
    %v2653 = vmul.f32 %v2461, %v2461
    %v2654 = vmul.f32 %v2462, %v2462
    %v2655 = vmul.f32 %v2463, %v2463
    %v2656 = vmul.f32 %v2464, %v2464
    %v2657 = vmul.f32 %v2465, %v2465
    %v2658 = vmul.f32 %v2466, %v2466
    %v2659 = vmul.f32 %v2467, %v2467
    %v2660 = vmul.f32 %v2468, %v2468
    %v2661 = vmul.f32 %v2469, %v2469
    %v2662 = vmul.f32 %v2470, %v2470
    %v2663 = vmul.f32 %v2471, %v2471
    %v2664 = vmul.f32 %v2472, %v2472
    %v2665 = vmul.f32 %v2473, %v2473
    %v2666 = vmul.f32 %v2474, %v2474
    %v2667 = vmul.f32 %v2475, %v2475
    %v2668 = vmul.f32 %v2476, %v2476
    %v2669 = vmul.f32 %v2477, %v2477
    %v2670 = vmul.f32 %v2478, %v2478
    %v2671 = vmul.f32 %v2479, %v2479
    %v2672 = vmul.f32 %v2480, %v2480
    %v2673 = vmul.f32 %v2481, %v2481
    %v2674 = vmul.f32 %v2482, %v2482
    %v2675 = vmul.f32 %v2483, %v2483
    %v2676 = vsub.f32 %v2612, %v2644
    %v2677 = vsub.f32 %v2613, %v2645
    %v2678 = vsub.f32 %v2614, %v2646
    %v2679 = vsub.f32 %v2615, %v2647
    %v2680 = vsub.f32 %v2616, %v2648
    %v2681 = vsub.f32 %v2617, %v2649
    %v2682 = vsub.f32 %v2618, %v2650
    %v2683 = vsub.f32 %v2619, %v2651
    %v2684 = vsub.f32 %v2620, %v2652
    %v2685 = vsub.f32 %v2621, %v2653
    %v2686 = vsub.f32 %v2622, %v2654
    %v2687 = vsub.f32 %v2623, %v2655
    %v2688 = vsub.f32 %v2624, %v2656
    %v2689 = vsub.f32 %v2625, %v2657
    %v2690 = vsub.f32 %v2626, %v2658
    %v2691 = vsub.f32 %v2627, %v2659
    %v2692 = vsub.f32 %v2628, %v2660
    %v2693 = vsub.f32 %v2629, %v2661
    %v2694 = vsub.f32 %v2630, %v2662
    %v2695 = vsub.f32 %v2631, %v2663
    %v2696 = vsub.f32 %v2632, %v2664
    %v2697 = vsub.f32 %v2633, %v2665
    %v2698 = vsub.f32 %v2634, %v2666
    %v2699 = vsub.f32 %v2635, %v2667
    %v2700 = vsub.f32 %v2636, %v2668
    %v2701 = vsub.f32 %v2637, %v2669
    %v2702 = vsub.f32 %v2638, %v2670
    %v2703 = vsub.f32 %v2639, %v2671
    %v2704 = vsub.f32 %v2640, %v2672
    %v2705 = vsub.f32 %v2641, %v2673
    %v2706 = vsub.f32 %v2642, %v2674
    %v2707 = vsub.f32 %v2643, %v2675
    %v2708 = vmax.f32 %v2676, 0.0
    %v2709 = vmax.f32 %v2677, 0.0
    %v2710 = vmax.f32 %v2678, 0.0
    %v2711 = vmax.f32 %v2679, 0.0
    %v2712 = vmax.f32 %v2680, 0.0
    %v2713 = vmax.f32 %v2681, 0.0
    %v2714 = vmax.f32 %v2682, 0.0
    %v2715 = vmax.f32 %v2683, 0.0
    %v2716 = vmax.f32 %v2684, 0.0
    %v2717 = vmax.f32 %v2685, 0.0
    %v2718 = vmax.f32 %v2686, 0.0
    %v2719 = vmax.f32 %v2687, 0.0
    %v2720 = vmax.f32 %v2688, 0.0
    %v2721 = vmax.f32 %v2689, 0.0
    %v2722 = vmax.f32 %v2690, 0.0
    %v2723 = vmax.f32 %v2691, 0.0
    %v2724 = vmax.f32 %v2692, 0.0
    %v2725 = vmax.f32 %v2693, 0.0
    %v2726 = vmax.f32 %v2694, 0.0
    %v2727 = vmax.f32 %v2695, 0.0
    %v2728 = vmax.f32 %v2696, 0.0
    %v2729 = vmax.f32 %v2697, 0.0
    %v2730 = vmax.f32 %v2698, 0.0
    %v2731 = vmax.f32 %v2699, 0.0
    %v2732 = vmax.f32 %v2700, 0.0
    %v2733 = vmax.f32 %v2701, 0.0
    %v2734 = vmax.f32 %v2702, 0.0
    %v2735 = vmax.f32 %v2703, 0.0
    %v2736 = vmax.f32 %v2704, 0.0
    %v2737 = vmax.f32 %v2705, 0.0
    %v2738 = vmax.f32 %v2706, 0.0
    %v2739 = vmax.f32 %v2707, 0.0
    %v2740 = vsub.f32 %v2196, %v2452
    %v2741 = vsub.f32 %v2201, %v2453
    %v2742 = vsub.f32 %v2206, %v2454
    %v2743 = vsub.f32 %v2211, %v2455
    %v2744 = vsub.f32 %v2216, %v2456
    %v2745 = vsub.f32 %v2221, %v2457
    %v2746 = vsub.f32 %v2226, %v2458
    %v2747 = vsub.f32 %v2231, %v2459
    %v2748 = vsub.f32 %v2236, %v2460
    %v2749 = vsub.f32 %v2241, %v2461
    %v2750 = vsub.f32 %v2246, %v2462
    %v2751 = vsub.f32 %v2251, %v2463
    %v2752 = vsub.f32 %v2256, %v2464
    %v2753 = vsub.f32 %v2261, %v2465
    %v2754 = vsub.f32 %v2266, %v2466
    %v2755 = vsub.f32 %v2271, %v2467
    %v2756 = vsub.f32 %v2276, %v2468
    %v2757 = vsub.f32 %v2281, %v2469
    %v2758 = vsub.f32 %v2286, %v2470
    %v2759 = vsub.f32 %v2291, %v2471
    %v2760 = vsub.f32 %v2296, %v2472
    %v2761 = vsub.f32 %v2301, %v2473
    %v2762 = vsub.f32 %v2306, %v2474
    %v2763 = vsub.f32 %v2311, %v2475
    %v2764 = vsub.f32 %v2316, %v2476
    %v2765 = vsub.f32 %v2321, %v2477
    %v2766 = vsub.f32 %v2326, %v2478
    %v2767 = vsub.f32 %v2331, %v2479
    %v2768 = vsub.f32 %v2336, %v2480
    %v2769 = vsub.f32 %v2341, %v2481
    %v2770 = vsub.f32 %v2346, %v2482
    %v2771 = vsub.f32 %v2351, %v2483
    %v2772 = vadd.f32 %v2708, 1e-05
    %v2773 = vadd.f32 %v2709, 1e-05
    %v2774 = vadd.f32 %v2710, 1e-05
    %v2775 = vadd.f32 %v2711, 1e-05
    %v2776 = vadd.f32 %v2712, 1e-05
    %v2777 = vadd.f32 %v2713, 1e-05
    %v2778 = vadd.f32 %v2714, 1e-05
    %v2779 = vadd.f32 %v2715, 1e-05
    %v2780 = vadd.f32 %v2716, 1e-05
    %v2781 = vadd.f32 %v2717, 1e-05
    %v2782 = vadd.f32 %v2718, 1e-05
    %v2783 = vadd.f32 %v2719, 1e-05
    %v2784 = vadd.f32 %v2720, 1e-05
    %v2785 = vadd.f32 %v2721, 1e-05
    %v2786 = vadd.f32 %v2722, 1e-05
    %v2787 = vadd.f32 %v2723, 1e-05
    %v2788 = vadd.f32 %v2724, 1e-05
    %v2789 = vadd.f32 %v2725, 1e-05
    %v2790 = vadd.f32 %v2726, 1e-05
    %v2791 = vadd.f32 %v2727, 1e-05
    %v2792 = vadd.f32 %v2728, 1e-05
    %v2793 = vadd.f32 %v2729, 1e-05
    %v2794 = vadd.f32 %v2730, 1e-05
    %v2795 = vadd.f32 %v2731, 1e-05
    %v2796 = vadd.f32 %v2732, 1e-05
    %v2797 = vadd.f32 %v2733, 1e-05
    %v2798 = vadd.f32 %v2734, 1e-05
    %v2799 = vadd.f32 %v2735, 1e-05
    %v2800 = vadd.f32 %v2736, 1e-05
    %v2801 = vadd.f32 %v2737, 1e-05
    %v2802 = vadd.f32 %v2738, 1e-05
    %v2803 = vadd.f32 %v2739, 1e-05
    %v2804 = vrsqrt.pop %v2772
    %v2805 = vrsqrt.pop %v2773
    %v2806 = vrsqrt.pop %v2774
    %v2807 = vrsqrt.pop %v2775
    %v2808 = vrsqrt.pop %v2776
    %v2809 = vrsqrt.pop %v2777
    %v2810 = vrsqrt.pop %v2778
    %v2811 = vrsqrt.pop %v2779
    %v2812 = vrsqrt.pop %v2780
    %v2813 = vrsqrt.pop %v2781
    %v2814 = vrsqrt.pop %v2782
    %v2815 = vrsqrt.pop %v2783
    %v2816 = vrsqrt.pop %v2784
    %v2817 = vrsqrt.pop %v2785
    %v2818 = vrsqrt.pop %v2786
    %v2819 = vrsqrt.pop %v2787
    %v2820 = vrsqrt.pop %v2788
    %v2821 = vrsqrt.pop %v2789
    %v2822 = vrsqrt.pop %v2790
    %v2823 = vrsqrt.pop %v2791
    %v2824 = vrsqrt.pop %v2792
    %v2825 = vrsqrt.pop %v2793
    %v2826 = vrsqrt.pop %v2794
    %v2827 = vrsqrt.pop %v2795
    %v2828 = vrsqrt.pop %v2796
    %v2829 = vrsqrt.pop %v2797
    %v2830 = vrsqrt.pop %v2798
    %v2831 = vrsqrt.pop %v2799
    %v2832 = vrsqrt.pop %v2800
    %v2833 = vrsqrt.pop %v2801
    %v2834 = vrsqrt.pop %v2802
    %v2835 = vrsqrt.pop %v2803
    %v2836 = vmul.f32 %v2740, %v2804
    %v2837 = vmul.f32 %v2741, %v2805
    %v2838 = vmul.f32 %v2742, %v2806
    %v2839 = vmul.f32 %v2743, %v2807
    %v2840 = vmul.f32 %v2744, %v2808
    %v2841 = vmul.f32 %v2745, %v2809
    %v2842 = vmul.f32 %v2746, %v2810
    %v2843 = vmul.f32 %v2747, %v2811
    %v2844 = vmul.f32 %v2748, %v2812
    %v2845 = vmul.f32 %v2749, %v2813
    %v2846 = vmul.f32 %v2750, %v2814
    %v2847 = vmul.f32 %v2751, %v2815
    %v2848 = vmul.f32 %v2752, %v2816
    %v2849 = vmul.f32 %v2753, %v2817
    %v2850 = vmul.f32 %v2754, %v2818
    %v2851 = vmul.f32 %v2755, %v2819
    %v2852 = vmul.f32 %v2756, %v2820
    %v2853 = vmul.f32 %v2757, %v2821
    %v2854 = vmul.f32 %v2758, %v2822
    %v2855 = vmul.f32 %v2759, %v2823
    %v2856 = vmul.f32 %v2760, %v2824
    %v2857 = vmul.f32 %v2761, %v2825
    %v2858 = vmul.f32 %v2762, %v2826
    %v2859 = vmul.f32 %v2763, %v2827
    %v2860 = vmul.f32 %v2764, %v2828
    %v2861 = vmul.f32 %v2765, %v2829
    %v2862 = vmul.f32 %v2766, %v2830
    %v2863 = vmul.f32 %v2767, %v2831
    %v2864 = vmul.f32 %v2768, %v2832
    %v2865 = vmul.f32 %v2769, %v2833
    %v2866 = vmul.f32 %v2770, %v2834
    %v2867 = vmul.f32 %v2771, %v2835
    %v2869 = vlaneseq
    %v2870 = vshrl.u32 %v2869, 7
    %v2871 = vsub.s32 0, %v2870
    %v2872 = vrot.slane %v2025, %v2871
    %v2874 = vmul.f32 %v2836, %v2872
    %v2875 = vmul.f32 %v2837, %v2872
    %v2876 = vmul.f32 %v2838, %v2872
    %v2877 = vmul.f32 %v2839, %v2872
    %v2878 = vmul.f32 %v2840, %v2872
    %v2879 = vmul.f32 %v2841, %v2872
    %v2880 = vmul.f32 %v2842, %v2872
    %v2881 = vmul.f32 %v2843, %v2872
    %v2882 = vmul.f32 %v2844, %v2872
    %v2883 = vmul.f32 %v2845, %v2872
    %v2884 = vmul.f32 %v2846, %v2872
    %v2885 = vmul.f32 %v2847, %v2872
    %v2886 = vmul.f32 %v2848, %v2872
    %v2887 = vmul.f32 %v2849, %v2872
    %v2888 = vmul.f32 %v2850, %v2872
    %v2889 = vmul.f32 %v2851, %v2872
    %v2890 = vmul.f32 %v2852, %v2872
    %v2891 = vmul.f32 %v2853, %v2872
    %v2892 = vmul.f32 %v2854, %v2872
    %v2893 = vmul.f32 %v2855, %v2872
    %v2894 = vmul.f32 %v2856, %v2872
    %v2895 = vmul.f32 %v2857, %v2872
    %v2896 = vmul.f32 %v2858, %v2872
    %v2897 = vmul.f32 %v2859, %v2872
    %v2898 = vmul.f32 %v2860, %v2872
    %v2899 = vmul.f32 %v2861, %v2872
    %v2900 = vmul.f32 %v2862, %v2872
    %v2901 = vmul.f32 %v2863, %v2872
    %v2902 = vmul.f32 %v2864, %v2872
    %v2903 = vmul.f32 %v2865, %v2872
    %v2904 = vmul.f32 %v2866, %v2872
    %v2905 = vmul.f32 %v2867, %v2872
    %v2907 = vlaneseq
    %v2908 = vshrl.u32 %v2907, 7
    %v2909 = vsub.s32 0, %v2908
    %v2910 = vrot.slane %v2026, %v2909
    %v2912 = vadd.f32 %v2874, %v2910
    %v2913 = vadd.f32 %v2875, %v2910
    %v2914 = vadd.f32 %v2876, %v2910
    %v2915 = vadd.f32 %v2877, %v2910
    %v2916 = vadd.f32 %v2878, %v2910
    %v2917 = vadd.f32 %v2879, %v2910
    %v2918 = vadd.f32 %v2880, %v2910
    %v2919 = vadd.f32 %v2881, %v2910
    %v2920 = vadd.f32 %v2882, %v2910
    %v2921 = vadd.f32 %v2883, %v2910
    %v2922 = vadd.f32 %v2884, %v2910
    %v2923 = vadd.f32 %v2885, %v2910
    %v2924 = vadd.f32 %v2886, %v2910
    %v2925 = vadd.f32 %v2887, %v2910
    %v2926 = vadd.f32 %v2888, %v2910
    %v2927 = vadd.f32 %v2889, %v2910
    %v2928 = vadd.f32 %v2890, %v2910
    %v2929 = vadd.f32 %v2891, %v2910
    %v2930 = vadd.f32 %v2892, %v2910
    %v2931 = vadd.f32 %v2893, %v2910
    %v2932 = vadd.f32 %v2894, %v2910
    %v2933 = vadd.f32 %v2895, %v2910
    %v2934 = vadd.f32 %v2896, %v2910
    %v2935 = vadd.f32 %v2897, %v2910
    %v2936 = vadd.f32 %v2898, %v2910
    %v2937 = vadd.f32 %v2899, %v2910
    %v2938 = vadd.f32 %v2900, %v2910
    %v2939 = vadd.f32 %v2901, %v2910
    %v2940 = vadd.f32 %v2902, %v2910
    %v2941 = vadd.f32 %v2903, %v2910
    %v2942 = vadd.f32 %v2904, %v2910
    %v2943 = vadd.f32 %v2905, %v2910
    %v2944 = vmax.f32 %v2912, 0.0
    %v2945 = vmax.f32 %v2913, 0.0
    %v2946 = vmax.f32 %v2914, 0.0
    %v2947 = vmax.f32 %v2915, 0.0
    %v2948 = vmax.f32 %v2916, 0.0
    %v2949 = vmax.f32 %v2917, 0.0
    %v2950 = vmax.f32 %v2918, 0.0
    %v2951 = vmax.f32 %v2919, 0.0
    %v2952 = vmax.f32 %v2920, 0.0
    %v2953 = vmax.f32 %v2921, 0.0
    %v2954 = vmax.f32 %v2922, 0.0
    %v2955 = vmax.f32 %v2923, 0.0
    %v2956 = vmax.f32 %v2924, 0.0
    %v2957 = vmax.f32 %v2925, 0.0
    %v2958 = vmax.f32 %v2926, 0.0
    %v2959 = vmax.f32 %v2927, 0.0
    %v2960 = vmax.f32 %v2928, 0.0
    %v2961 = vmax.f32 %v2929, 0.0
    %v2962 = vmax.f32 %v2930, 0.0
    %v2963 = vmax.f32 %v2931, 0.0
    %v2964 = vmax.f32 %v2932, 0.0
    %v2965 = vmax.f32 %v2933, 0.0
    %v2966 = vmax.f32 %v2934, 0.0
    %v2967 = vmax.f32 %v2935, 0.0
    %v2968 = vmax.f32 %v2936, 0.0
    %v2969 = vmax.f32 %v2937, 0.0
    %v2970 = vmax.f32 %v2938, 0.0
    %v2971 = vmax.f32 %v2939, 0.0
    %v2972 = vmax.f32 %v2940, 0.0
    %v2973 = vmax.f32 %v2941, 0.0
    %v2974 = vmax.f32 %v2942, 0.0
    %v2975 = vmax.f32 %v2943, 0.0
    %v2976 = vld [vmem:[%s1] sm:$0xff]
    %v2977 = vld [vmem:[%s1 + $0x8] sm:$0xff]
    %v2978 = vlaneseq
    %v2979 = vand.u32 %v2978, 127
    %2980 = vset.pattern.permute.xlu0 0
    %2981 = vperm.xlu0 %2980, %v2976
    %v2982 = vpop.permute.xlu0 %2981
    %2983 = vset.pattern.permute.xlu0 0
    %2984 = vperm.xlu0 %2983, %v2977
    %v2985 = vpop.permute.xlu0 %2984
    %vm2986 = vcmp.lt.s32.totalorder %v2979, %v2982
    %vm2987 = vcmp.lt.s32.totalorder %v2979, %v2985
    %v2988 = vsel %vm2986, 1, 0
    %v2989 = vsel %vm2987, 1, 0
    %v2990 = vcvt.s32.f32 %v2988
    %v2991 = vcvt.s32.f32 %v2989
    %v2992 = vlaneseq
    %v2993 = vshrl.u32 %v2992, 7
    %v2994 = vsub.s32 0, %v2993
    %v2995 = vrot.slane %v2990, %v2994
    %2997 = vbcast.lane.b32.xlu0 %v2995, 256
    %v2998 = vpop.permute.xlu0 %2997
    %s3000 = sor.u32 256, 8
    %3001 = vbcast.lane.b32.xlu0 %v2995, %s3000
    %v3002 = vpop.permute.xlu0 %3001
    %v3003 = vlaneseq
    %v3004 = vshrl.u32 %v3003, 7
    %v3005 = vsub.s32 1, %v3004
    %v3006 = vrot.slane %v2990, %v3005
    %3008 = vbcast.lane.b32.xlu0 %v3006, 256
    %v3009 = vpop.permute.xlu0 %3008
    %s3011 = sor.u32 256, 8
    %3012 = vbcast.lane.b32.xlu0 %v3006, %s3011
    %v3013 = vpop.permute.xlu0 %3012
    %v3014 = vlaneseq
    %v3015 = vshrl.u32 %v3014, 7
    %v3016 = vsub.s32 2, %v3015
    %v3017 = vrot.slane %v2990, %v3016
    %3019 = vbcast.lane.b32.xlu0 %v3017, 256
    %v3020 = vpop.permute.xlu0 %3019
    %s3022 = sor.u32 256, 8
    %3023 = vbcast.lane.b32.xlu0 %v3017, %s3022
    %v3024 = vpop.permute.xlu0 %3023
    %v3025 = vlaneseq
    %v3026 = vshrl.u32 %v3025, 7
    %v3027 = vsub.s32 3, %v3026
    %v3028 = vrot.slane %v2990, %v3027
    %3030 = vbcast.lane.b32.xlu0 %v3028, 256
    %v3031 = vpop.permute.xlu0 %3030
    %s3033 = sor.u32 256, 8
    %3034 = vbcast.lane.b32.xlu0 %v3028, %s3033
    %v3035 = vpop.permute.xlu0 %3034
    %v3036 = vlaneseq
    %v3037 = vshrl.u32 %v3036, 7
    %v3038 = vsub.s32 4, %v3037
    %v3039 = vrot.slane %v2990, %v3038
    %3041 = vbcast.lane.b32.xlu0 %v3039, 256
    %v3042 = vpop.permute.xlu0 %3041
    %s3044 = sor.u32 256, 8
    %3045 = vbcast.lane.b32.xlu0 %v3039, %s3044
    %v3046 = vpop.permute.xlu0 %3045
    %v3047 = vlaneseq
    %v3048 = vshrl.u32 %v3047, 7
    %v3049 = vsub.s32 5, %v3048
    %v3050 = vrot.slane %v2990, %v3049
    %3052 = vbcast.lane.b32.xlu0 %v3050, 256
    %v3053 = vpop.permute.xlu0 %3052
    %s3055 = sor.u32 256, 8
    %3056 = vbcast.lane.b32.xlu0 %v3050, %s3055
    %v3057 = vpop.permute.xlu0 %3056
    %v3058 = vlaneseq
    %v3059 = vshrl.u32 %v3058, 7
    %v3060 = vsub.s32 6, %v3059
    %v3061 = vrot.slane %v2990, %v3060
    %3063 = vbcast.lane.b32.xlu0 %v3061, 256
    %v3064 = vpop.permute.xlu0 %3063
    %s3066 = sor.u32 256, 8
    %3067 = vbcast.lane.b32.xlu0 %v3061, %s3066
    %v3068 = vpop.permute.xlu0 %3067
    %v3069 = vlaneseq
    %v3070 = vshrl.u32 %v3069, 7
    %v3071 = vsub.s32 7, %v3070
    %v3072 = vrot.slane %v2990, %v3071
    %3074 = vbcast.lane.b32.xlu0 %v3072, 256
    %v3075 = vpop.permute.xlu0 %3074
    %s3077 = sor.u32 256, 8
    %3078 = vbcast.lane.b32.xlu0 %v3072, %s3077
    %v3079 = vpop.permute.xlu0 %3078
    %v3080 = vlaneseq
    %v3081 = vshrl.u32 %v3080, 7
    %v3082 = vsub.s32 0, %v3081
    %v3083 = vrot.slane %v2991, %v3082
    %3085 = vbcast.lane.b32.xlu0 %v3083, 256
    %v3086 = vpop.permute.xlu0 %3085
    %s3088 = sor.u32 256, 8
    %3089 = vbcast.lane.b32.xlu0 %v3083, %s3088
    %v3090 = vpop.permute.xlu0 %3089
    %v3091 = vlaneseq
    %v3092 = vshrl.u32 %v3091, 7
    %v3093 = vsub.s32 1, %v3092
    %v3094 = vrot.slane %v2991, %v3093
    %3096 = vbcast.lane.b32.xlu0 %v3094, 256
    %v3097 = vpop.permute.xlu0 %3096
    %s3099 = sor.u32 256, 8
    %3100 = vbcast.lane.b32.xlu0 %v3094, %s3099
    %v3101 = vpop.permute.xlu0 %3100
    %v3102 = vlaneseq
    %v3103 = vshrl.u32 %v3102, 7
    %v3104 = vsub.s32 2, %v3103
    %v3105 = vrot.slane %v2991, %v3104
    %3107 = vbcast.lane.b32.xlu0 %v3105, 256
    %v3108 = vpop.permute.xlu0 %3107
    %s3110 = sor.u32 256, 8
    %3111 = vbcast.lane.b32.xlu0 %v3105, %s3110
    %v3112 = vpop.permute.xlu0 %3111
    %v3113 = vlaneseq
    %v3114 = vshrl.u32 %v3113, 7
    %v3115 = vsub.s32 3, %v3114
    %v3116 = vrot.slane %v2991, %v3115
    %3118 = vbcast.lane.b32.xlu0 %v3116, 256
    %v3119 = vpop.permute.xlu0 %3118
    %s3121 = sor.u32 256, 8
    %3122 = vbcast.lane.b32.xlu0 %v3116, %s3121
    %v3123 = vpop.permute.xlu0 %3122
    %v3124 = vlaneseq
    %v3125 = vshrl.u32 %v3124, 7
    %v3126 = vsub.s32 4, %v3125
    %v3127 = vrot.slane %v2991, %v3126
    %3129 = vbcast.lane.b32.xlu0 %v3127, 256
    %v3130 = vpop.permute.xlu0 %3129
    %s3132 = sor.u32 256, 8
    %3133 = vbcast.lane.b32.xlu0 %v3127, %s3132
    %v3134 = vpop.permute.xlu0 %3133
    %v3135 = vlaneseq
    %v3136 = vshrl.u32 %v3135, 7
    %v3137 = vsub.s32 5, %v3136
    %v3138 = vrot.slane %v2991, %v3137
    %3140 = vbcast.lane.b32.xlu0 %v3138, 256
    %v3141 = vpop.permute.xlu0 %3140
    %s3143 = sor.u32 256, 8
    %3144 = vbcast.lane.b32.xlu0 %v3138, %s3143
    %v3145 = vpop.permute.xlu0 %3144
    %v3146 = vlaneseq
    %v3147 = vshrl.u32 %v3146, 7
    %v3148 = vsub.s32 6, %v3147
    %v3149 = vrot.slane %v2991, %v3148
    %3151 = vbcast.lane.b32.xlu0 %v3149, 256
    %v3152 = vpop.permute.xlu0 %3151
    %s3154 = sor.u32 256, 8
    %3155 = vbcast.lane.b32.xlu0 %v3149, %s3154
    %v3156 = vpop.permute.xlu0 %3155
    %v3157 = vlaneseq
    %v3158 = vshrl.u32 %v3157, 7
    %v3159 = vsub.s32 7, %v3158
    %v3160 = vrot.slane %v2991, %v3159
    %3162 = vbcast.lane.b32.xlu0 %v3160, 256
    %v3163 = vpop.permute.xlu0 %3162
    %s3165 = sor.u32 256, 8
    %3166 = vbcast.lane.b32.xlu0 %v3160, %s3165
    %v3167 = vpop.permute.xlu0 %3166
    %v3168 = vmul.f32 %v2944, %v2998
    %v3169 = vmul.f32 %v2945, %v3002
    %v3170 = vmul.f32 %v2946, %v3009
    %v3171 = vmul.f32 %v2947, %v3013
    %v3172 = vmul.f32 %v2948, %v3020
    %v3173 = vmul.f32 %v2949, %v3024
    %v3174 = vmul.f32 %v2950, %v3031
    %v3175 = vmul.f32 %v2951, %v3035
    %v3176 = vmul.f32 %v2952, %v3042
    %v3177 = vmul.f32 %v2953, %v3046
    %v3178 = vmul.f32 %v2954, %v3053
    %v3179 = vmul.f32 %v2955, %v3057
    %v3180 = vmul.f32 %v2956, %v3064
    %v3181 = vmul.f32 %v2957, %v3068
    %v3182 = vmul.f32 %v2958, %v3075
    %v3183 = vmul.f32 %v2959, %v3079
    %v3184 = vmul.f32 %v2960, %v3086
    %v3185 = vmul.f32 %v2961, %v3090
    %v3186 = vmul.f32 %v2962, %v3097
    %v3187 = vmul.f32 %v2963, %v3101
    %v3188 = vmul.f32 %v2964, %v3108
    %v3189 = vmul.f32 %v2965, %v3112
    %v3190 = vmul.f32 %v2966, %v3119
    %v3191 = vmul.f32 %v2967, %v3123
    %v3192 = vmul.f32 %v2968, %v3130
    %v3193 = vmul.f32 %v2969, %v3134
    %v3194 = vmul.f32 %v2970, %v3141
    %v3195 = vmul.f32 %v2971, %v3145
    %v3196 = vmul.f32 %v2972, %v3152
    %v3197 = vmul.f32 %v2973, %v3156
    %v3198 = vmul.f32 %v2974, %v3163
    %v3199 = vmul.f32 %v2975, %v3167
    %v3200 = vsel %vm2354, %v3168, 0.0
    %v3201 = vsel %vm2354, %v3169, 0.0
    %v3202 = vadd.f32 %v3200, %v3201
    %v3203 = vrot.slane %v3202, 4
    %v3204 = vadd.f32 %v3202, %v3203
    %v3205 = vrot.slane %v3204, 2
    %v3206 = vadd.f32 %v3204, %v3205
    %v3207 = vrot.slane %v3206, 1
    %v3208 = vadd.f32 %v3206, %v3207
    %v3209 = vsel %vm2354, %v3170, 0.0
    %v3210 = vsel %vm2354, %v3171, 0.0
    %v3211 = vadd.f32 %v3209, %v3210
    %v3212 = vrot.slane %v3211, 4
    %v3213 = vadd.f32 %v3211, %v3212
    %v3214 = vrot.slane %v3213, 2
    %v3215 = vadd.f32 %v3213, %v3214
    %v3216 = vrot.slane %v3215, 1
    %v3217 = vadd.f32 %v3215, %v3216
    %v3218 = vsel %vm2354, %v3172, 0.0
    %v3219 = vsel %vm2354, %v3173, 0.0
    %v3220 = vadd.f32 %v3218, %v3219
    %v3221 = vrot.slane %v3220, 4
    %v3222 = vadd.f32 %v3220, %v3221
    %v3223 = vrot.slane %v3222, 2
    %v3224 = vadd.f32 %v3222, %v3223
    %v3225 = vrot.slane %v3224, 1
    %v3226 = vadd.f32 %v3224, %v3225
    %v3227 = vsel %vm2354, %v3174, 0.0
    %v3228 = vsel %vm2354, %v3175, 0.0
    %v3229 = vadd.f32 %v3227, %v3228
    %v3230 = vrot.slane %v3229, 4
    %v3231 = vadd.f32 %v3229, %v3230
    %v3232 = vrot.slane %v3231, 2
    %v3233 = vadd.f32 %v3231, %v3232
    %v3234 = vrot.slane %v3233, 1
    %v3235 = vadd.f32 %v3233, %v3234
    %v3236 = vsel %vm2354, %v3176, 0.0
    %v3237 = vsel %vm2354, %v3177, 0.0
    %v3238 = vadd.f32 %v3236, %v3237
    %v3239 = vrot.slane %v3238, 4
    %v3240 = vadd.f32 %v3238, %v3239
    %v3241 = vrot.slane %v3240, 2
    %v3242 = vadd.f32 %v3240, %v3241
    %v3243 = vrot.slane %v3242, 1
    %v3244 = vadd.f32 %v3242, %v3243
    %v3245 = vsel %vm2354, %v3178, 0.0
    %v3246 = vsel %vm2354, %v3179, 0.0
    %v3247 = vadd.f32 %v3245, %v3246
    %v3248 = vrot.slane %v3247, 4
    %v3249 = vadd.f32 %v3247, %v3248
    %v3250 = vrot.slane %v3249, 2
    %v3251 = vadd.f32 %v3249, %v3250
    %v3252 = vrot.slane %v3251, 1
    %v3253 = vadd.f32 %v3251, %v3252
    %v3254 = vsel %vm2354, %v3180, 0.0
    %v3255 = vsel %vm2354, %v3181, 0.0
    %v3256 = vadd.f32 %v3254, %v3255
    %v3257 = vrot.slane %v3256, 4
    %v3258 = vadd.f32 %v3256, %v3257
    %v3259 = vrot.slane %v3258, 2
    %v3260 = vadd.f32 %v3258, %v3259
    %v3261 = vrot.slane %v3260, 1
    %v3262 = vadd.f32 %v3260, %v3261
    %v3263 = vsel %vm2354, %v3182, 0.0
    %v3264 = vsel %vm2354, %v3183, 0.0
    %v3265 = vadd.f32 %v3263, %v3264
    %v3266 = vrot.slane %v3265, 4
    %v3267 = vadd.f32 %v3265, %v3266
    %v3268 = vrot.slane %v3267, 2
    %v3269 = vadd.f32 %v3267, %v3268
    %v3270 = vrot.slane %v3269, 1
    %v3271 = vadd.f32 %v3269, %v3270
    %v3272 = vsel %vm2354, %v3184, 0.0
    %v3273 = vsel %vm2354, %v3185, 0.0
    %v3274 = vadd.f32 %v3272, %v3273
    %v3275 = vrot.slane %v3274, 4
    %v3276 = vadd.f32 %v3274, %v3275
    %v3277 = vrot.slane %v3276, 2
    %v3278 = vadd.f32 %v3276, %v3277
    %v3279 = vrot.slane %v3278, 1
    %v3280 = vadd.f32 %v3278, %v3279
    %v3281 = vsel %vm2354, %v3186, 0.0
    %v3282 = vsel %vm2354, %v3187, 0.0
    %v3283 = vadd.f32 %v3281, %v3282
    %v3284 = vrot.slane %v3283, 4
    %v3285 = vadd.f32 %v3283, %v3284
    %v3286 = vrot.slane %v3285, 2
    %v3287 = vadd.f32 %v3285, %v3286
    %v3288 = vrot.slane %v3287, 1
    %v3289 = vadd.f32 %v3287, %v3288
    %v3290 = vsel %vm2354, %v3188, 0.0
    %v3291 = vsel %vm2354, %v3189, 0.0
    %v3292 = vadd.f32 %v3290, %v3291
    %v3293 = vrot.slane %v3292, 4
    %v3294 = vadd.f32 %v3292, %v3293
    %v3295 = vrot.slane %v3294, 2
    %v3296 = vadd.f32 %v3294, %v3295
    %v3297 = vrot.slane %v3296, 1
    %v3298 = vadd.f32 %v3296, %v3297
    %v3299 = vsel %vm2354, %v3190, 0.0
    %v3300 = vsel %vm2354, %v3191, 0.0
    %v3301 = vadd.f32 %v3299, %v3300
    %v3302 = vrot.slane %v3301, 4
    %v3303 = vadd.f32 %v3301, %v3302
    %v3304 = vrot.slane %v3303, 2
    %v3305 = vadd.f32 %v3303, %v3304
    %v3306 = vrot.slane %v3305, 1
    %v3307 = vadd.f32 %v3305, %v3306
    %v3308 = vsel %vm2354, %v3192, 0.0
    %v3309 = vsel %vm2354, %v3193, 0.0
    %v3310 = vadd.f32 %v3308, %v3309
    %v3311 = vrot.slane %v3310, 4
    %v3312 = vadd.f32 %v3310, %v3311
    %v3313 = vrot.slane %v3312, 2
    %v3314 = vadd.f32 %v3312, %v3313
    %v3315 = vrot.slane %v3314, 1
    %v3316 = vadd.f32 %v3314, %v3315
    %v3317 = vsel %vm2354, %v3194, 0.0
    %v3318 = vsel %vm2354, %v3195, 0.0
    %v3319 = vadd.f32 %v3317, %v3318
    %v3320 = vrot.slane %v3319, 4
    %v3321 = vadd.f32 %v3319, %v3320
    %v3322 = vrot.slane %v3321, 2
    %v3323 = vadd.f32 %v3321, %v3322
    %v3324 = vrot.slane %v3323, 1
    %v3325 = vadd.f32 %v3323, %v3324
    %v3326 = vsel %vm2354, %v3196, 0.0
    %v3327 = vsel %vm2354, %v3197, 0.0
    %v3328 = vadd.f32 %v3326, %v3327
    %v3329 = vrot.slane %v3328, 4
    %v3330 = vadd.f32 %v3328, %v3329
    %v3331 = vrot.slane %v3330, 2
    %v3332 = vadd.f32 %v3330, %v3331
    %v3333 = vrot.slane %v3332, 1
    %v3334 = vadd.f32 %v3332, %v3333
    %v3335 = vsel %vm2354, %v3198, 0.0
    %v3336 = vsel %vm2354, %v3199, 0.0
    %v3337 = vadd.f32 %v3335, %v3336
    %v3338 = vrot.slane %v3337, 4
    %v3339 = vadd.f32 %v3337, %v3338
    %v3340 = vrot.slane %v3339, 2
    %v3341 = vadd.f32 %v3339, %v3340
    %v3342 = vrot.slane %v3341, 1
    %v3343 = vadd.f32 %v3341, %v3342
    %vm3360 = vcmask 1041409
    %v3361 = vsel %vm3360, %v3217, %v3208
    %vm3362 = vcmask 1042434
    %v3363 = vsel %vm3362, %v3226, %v3361
    %vm3364 = vcmask 1043459
    %v3365 = vsel %vm3364, %v3235, %v3363
    %vm3366 = vcmask 1044484
    %v3367 = vsel %vm3366, %v3244, %v3365
    %vm3368 = vcmask 1045509
    %v3369 = vsel %vm3368, %v3253, %v3367
    %vm3370 = vcmask 1046534
    %v3371 = vsel %vm3370, %v3262, %v3369
    %vm3372 = vcmask 1047559
    %v3373 = vsel %vm3372, %v3271, %v3371
    %v3374 = vsel %vm3360, %v3289, %v3280
    %v3375 = vsel %vm3362, %v3298, %v3374
    %v3376 = vsel %vm3364, %v3307, %v3375
    %v3377 = vsel %vm3366, %v3316, %v3376
    %v3378 = vsel %vm3368, %v3325, %v3377
    %v3379 = vsel %vm3370, %v3334, %v3378
    %v3380 = vsel %vm3372, %v3343, %v3379
    %3383 = vst.msk [vmem:[#allocation2] sm:$0xff] %vm2354, %v3373
    %3384 = vst.msk [vmem:[#allocation2 + $0x8] sm:$0xff] %vm2354, %v3380
    // Predicated region
    $region58: #{tpu_custom_call.1} parent=1 // pred_check
      _
    $region59: #{tpu_custom_call.1} parent=1 // pred_check_branch
      %3386 = sbr.rel (0) target = $region61
    $region60: #{tpu_custom_call.1} parent=1 // pred_region
      %s3388 = ssub.s32 256, 256
      %3389 = vsyncadd [#allocation3], %s3388
      %s3390 = sshll.u32 [#allocation2], 4
      %s3391 = int_to_ptr.vmem [resolvable:$true] %s3390
      %3396 = dma.vmem_to_hbm [thread:$0]  %s3391, 256, %s14, [#allocation3], 128, 128, 8
    $region61: #{tpu_custom_call.1} parent=1 // pred_fallthru
      _
    // Predicated region
    $region62: #{tpu_custom_call.1} parent=1 // pred_check
      _
    $region63: #{tpu_custom_call.1} parent=1 // pred_check_branch
      %3398 = sbr.rel (0) target = $region65
    $region64: #{tpu_custom_call.1} parent=1 // pred_region
      %3399 = dma.done [#allocation3], 256
    $region65: #{tpu_custom_call.1} parent=1 // pred_fallthru
      _
    %3400 = vsyncpa [#allocation3], 1

</llo_original>
